<compile_context>
chip_gen: v6e
topology: v6e:2x2x1
jax: 0.10.0
libtpu: 0.0.40
codegen_flags: <defaults>
</compile_context>

<pallas_src>
import functools

import jax
import jax.numpy as jnp
from jax import lax
from jax.experimental import pallas as pl
from jax.experimental.pallas import tpu as pltpu


def pad_amount(k, p=None, d=1):
    """Same semantics as the PyTorch `pad` helper."""
    if d > 1:
        k = d * (k - 1) + 1
    if p is None:
        p = k // 2
    return p


def _round_up(v, m):
    return ((v + m - 1) // m) * m


def _vmem_limit_bytes():
    """Generation-aware scoped-VMEM limit: ~96 MiB on v5e/v6e, ~48 MiB on v7x."""
    try:
        cap = int(pltpu.get_tpu_info().vmem_capacity_bytes)
    except Exception:
        cap = 64 * 1024 * 1024
    return int(min(100 * 1024 * 1024, (cap * 3) // 4))


def _choose_hw_tile(hw, cp, cout, compute_dtype, vmem_limit):
    """VMEM-budget-derived lane tile for the flattened H*W axis (multiple of 128)."""
    dtb = jnp.dtype(compute_dtype).itemsize
    budget = min(vmem_limit // 3, 24 * 1024 * 1024)
    # rough per-lane-element bytes in the 3x3 path (taps + pmat + window + out/res buffers)
    per_elem = dtb * (38 * cp + 16 * cout) + 16
    t = max(128, (budget // per_elem) // 128 * 128)
    return int(min(t, _round_up(hw, 128)))


# ----------------------------------------------------------------------------- kernels


def _pw_kernel(*refs, n_in, has_residual):
    """Fused 1x1 conv (BN scale folded into weights) + bias + SiLU (+ residual add).

    Inputs may be several channel chunks (concat-free conv3): acc = sum_i w_i @ x_i.
    x_i: (1, Ci, T); w_i: (Cout, Ci); bias: (Cout, 1) f32; out: (1, Cout, T).
    """
    xs = refs[:n_in]
    ws = refs[n_in:2 * n_in]
    b_ref = refs[2 * n_in]
    res_ref = refs[2 * n_in + 1] if has_residual else None
    o_ref = refs[-1]

    acc = jnp.dot(ws[0][...], xs[0][0], preferred_element_type=jnp.float32)
    for i in range(1, n_in):
        acc = acc + jnp.dot(ws[i][...], xs[i][0], preferred_element_type=jnp.float32)
    y = acc + b_ref[...]
    y = y * lax.logistic(y)                     # SiLU, f32
    if has_residual:
        y = y + res_ref[0].astype(jnp.float32)
    o_ref[0] = y.astype(o_ref.dtype)


def _pw_dual_kernel(x_ref, w1_ref, b1_ref, w2_ref, b2_ref, o1_ref, o2_ref):
    """conv1(x) and conv2(x) of the CSP fused in one kernel: x read from HBM once."""
    x = x_ref[0]                                # (Cin, T)
    a1 = jnp.dot(w1_ref[...], x, preferred_element_type=jnp.float32) + b1_ref[...]
    o1_ref[0] = (a1 * lax.logistic(a1)).astype(o1_ref.dtype)
    a2 = jnp.dot(w2_ref[...], x, preferred_element_type=jnp.float32) + b2_ref[...]
    o2_ref[0] = (a2 * lax.logistic(a2)).astype(o2_ref.dtype)


def _conv_kxk_kernel(xp_ref, row_ref, col_ref, w_ref, b_ref, *rest,
                     tap_offsets, halo, tile, wsz, H, W, has_residual):
    """k x k stride-1 same-size conv + folded BN + SiLU (+ residual), halo-tiled.

    xp_ref:  (N, Cp, HALO + HWt + HALO) in HBM (pl.ANY) - a halo window is DMA'd per tile.
    row/col: (1, T) int32 global row/col indices of this tile's output positions.
    w_ref:   (Cout, k*k*Cp) im2col weight with BN scale folded in.
    """
    if has_residual:
        res_ref, o_ref, xwin, sem = rest
    else:
        o_ref, xwin, sem = rest

    n = pl.program_id(0)
    r = pl.program_id(1)
    start = pl.multiple_of(r * tile, 128)
    cp = pltpu.make_async_copy(xp_ref.at[n, :, pl.ds(start, wsz)], xwin, sem)
    cp.start()

    # Border-validity masks from global row/col indices while the DMA is in flight.
    row = row_ref[...]                          # (1, T) int32
    col = col_ref[...]
    masks = []
    for (dh, dw) in tap_offsets:
        masks.append((row + dh >= 0) & (row + dh < H) &
                     (col + dw >= 0) & (col + dw < W))

    cp.wait()
    x = xwin[...]                               # (Cp, T + 2*HALO)
    taps = []
    for t, (dh, dw) in enumerate(tap_offsets):
        off = halo + dh * W + dw                # static slice offset inside the window
        xt = x[:, off:off + tile]               # (Cp, T)
        taps.append(jnp.where(masks[t], xt, 0))
    pmat = jnp.concatenate(taps, axis=0)        # (k*k*Cp, T)
    acc = jnp.dot(w_ref[...], pmat, preferred_element_type=jnp.float32)   # (Cout, T)
    y = acc + b_ref[...]
    y = y * lax.logistic(y)
    if has_residual:
        y = y + res_ref[0].astype(jnp.float32)
    o_ref[0] = y.astype(o_ref.dtype)


# ----------------------------------------------------------------------------- wrappers


def _pw_conv(x_chunks, w, scale, bias, *, T, residual=None, out_dtype,
             compute_dtype, vmem_limit):
    """SiLU(BN(1x1 conv)) over channel-chunked flat input; chunks are (N, Ci, HWt)."""
    N, _, HWt = x_chunks[0].shape
    Cout = w.shape[0]
    n_tiles = HWt // T
    wf = (w.reshape(Cout, -1).astype(jnp.float32)
          * scale.reshape(Cout, 1).astype(jnp.float32))     # BN scale folded into weights
    b2 = bias.reshape(Cout, 1).astype(jnp.float32)
    w_chunks, off = [], 0
    for xc in x_chunks:
        ci = xc.shape[1]
        w_chunks.append(wf[:, off:off + ci].astype(compute_dtype))
        off += ci
    has_res = residual is not None
    n_in = len(x_chunks)

    in_specs = [pl.BlockSpec((1, xc.shape[1], T), lambda n, r: (n, 0, r))
                for xc in x_chunks]
    in_specs += [pl.BlockSpec(wc.shape, lambda n, r: (0, 0)) for wc in w_chunks]
    in_specs.append(pl.BlockSpec((Cout, 1), lambda n, r: (0, 0)))
    args = list(x_chunks) + w_chunks + [b2]
    if has_res:
        in_specs.append(pl.BlockSpec((1, Cout, T), lambda n, r: (n, 0, r)))
        args.append(residual)
    out_spec = pl.BlockSpec((1, Cout, T), lambda n, r: (n, 0, r))

    kernel = functools.partial(_pw_kernel, n_in=n_in, has_residual=has_res)
    return pl.pallas_call(
        kernel,
        out_shape=jax.ShapeDtypeStruct((N, Cout, HWt), out_dtype),
        grid_spec=pltpu.PrefetchScalarGridSpec(
            num_scalar_prefetch=0, grid=(N, n_tiles),
            in_specs=in_specs, out_specs=out_spec),
        compiler_params=pltpu.CompilerParams(
            dimension_semantics=("parallel", "parallel"),
            vmem_limit_bytes=vmem_limit),
    )(*args)


def _pw_conv_dual(x, p1, p2, *, T, out_dtype, compute_dtype, vmem_limit):
    """conv1(x) and conv2(x) (both 1x1 + BN + SiLU) fused into one pallas_call."""
    N, Cin, HWt = x.shape
    n_tiles = HWt // T

    def fold(p):
        w, scale, bias = p
        cout = w.shape[0]
        wf = (w.reshape(cout, Cin).astype(jnp.float32)
              * scale.reshape(cout, 1).astype(jnp.float32)).astype(compute_dtype)
        return wf, bias.reshape(cout, 1).astype(jnp.float32), cout

    w1, b1, c1 = fold(p1)
    w2, b2, c2 = fold(p2)
    in_specs = [
        pl.BlockSpec((1, Cin, T), lambda n, r: (n, 0, r)),
        pl.BlockSpec((c1, Cin), lambda n, r: (0, 0)),
        pl.BlockSpec((c1, 1), lambda n, r: (0, 0)),
        pl.BlockSpec((c2, Cin), lambda n, r: (0, 0)),
        pl.BlockSpec((c2, 1), lambda n, r: (0, 0)),
    ]
    out_specs = [pl.BlockSpec((1, c1, T), lambda n, r: (n, 0, r)),
                 pl.BlockSpec((1, c2, T), lambda n, r: (n, 0, r))]
    out_shape = (jax.ShapeDtypeStruct((N, c1, HWt), out_dtype),
                 jax.ShapeDtypeStruct((N, c2, HWt), out_dtype))
    return pl.pallas_call(
        _pw_dual_kernel,
        out_shape=out_shape,
        grid_spec=pltpu.PrefetchScalarGridSpec(
            num_scalar_prefetch=0, grid=(N, n_tiles),
            in_specs=in_specs, out_specs=out_specs),
        compiler_params=pltpu.CompilerParams(
            dimension_semantics=("parallel", "parallel"),
            vmem_limit_bytes=vmem_limit),
    )(x, w1, b1, w2, b2)


def _conv_kxk(x, w, scale, bias, H, W, *, T, k=3, d=1, residual=None,
              out_dtype, compute_dtype, vmem_limit):
    """k x k stride-1 same-size conv + folded BN + SiLU (+ residual) on (N, Cin, HWt)."""
    N, Cin, HWt = x.shape
    Cout = w.shape[0]
    n_tiles = HWt // T
    pd = pad_amount(k, None, d)
    # Pad channels to the sublane tile (8 f32 / 16 bf16) so the tap concat is tile-aligned.
    sub = 8 * (4 // jnp.dtype(compute_dtype).itemsize)
    Cp = _round_up(Cin, sub)
    halo = _round_up(pd * W + pd, 128)          # 128-aligned halo in flat-H*W elements
    wsz = T + 2 * halo

    xp = jnp.pad(x, ((0, 0), (0, Cp - Cin), (halo, halo)))      # (N, Cp, halo+HWt+halo)

    # BN scale folded into the weights; (Cout, k, k, Cp) -> (Cout, k*k*Cp) im2col layout.
    wf = w.astype(jnp.float32) * scale.reshape(Cout, 1, 1, 1).astype(jnp.float32)
    wf = jnp.transpose(wf, (0, 2, 3, 1))
    if Cp != Cin:
        wf = jnp.pad(wf, ((0, 0), (0, 0), (0, 0), (0, Cp - Cin)))
    w2 = wf.reshape(Cout, k * k * Cp).astype(compute_dtype)
    b2 = bias.reshape(Cout, 1).astype(jnp.float32)

    ar = jnp.arange(HWt, dtype=jnp.int32)
    row_idx = (ar // W).reshape(1, HWt)
    col_idx = (ar % W).reshape(1, HWt)
    tap_offsets = tuple((kh * d - pd, kw * d - pd)
                        for kh in range(k) for kw in range(k))

    in_specs = [
        pl.BlockSpec(memory_space=pl.ANY),                       # xp (manual halo DMA)
        pl.BlockSpec((1, T), lambda n, r: (0, r)),               # row indices
        pl.BlockSpec((1, T), lambda n, r: (0, r)),               # col indices
        pl.BlockSpec((Cout, k * k * Cp), lambda n, r: (0, 0)),   # folded weight
        pl.BlockSpec((Cout, 1), lambda n, r: (0, 0)),            # bias
    ]
    args = [xp, row_idx, col_idx, w2, b2]
    has_res = residual is not None
    if has_res:
        in_specs.append(pl.BlockSpec((1, Cout, T), lambda n, r: (n, 0, r)))
        args.append(residual)
    out_spec = pl.BlockSpec((1, Cout, T), lambda n, r: (n, 0, r))

    kernel = functools.partial(_conv_kxk_kernel, tap_offsets=tap_offsets, halo=halo,
                               tile=T, wsz=wsz, H=H, W=W, has_residual=has_res)
    return pl.pallas_call(
        kernel,
        out_shape=jax.ShapeDtypeStruct((N, Cout, HWt), out_dtype),
        grid_spec=pltpu.PrefetchScalarGridSpec(
            num_scalar_prefetch=0, grid=(N, n_tiles),
            in_specs=in_specs, out_specs=out_spec,
            scratch_shapes=[pltpu.VMEM((Cp, wsz), compute_dtype),
                            pltpu.SemaphoreType.DMA]),
        compiler_params=pltpu.CompilerParams(
            dimension_semantics=("parallel", "parallel"),
            vmem_limit_bytes=vmem_limit),
    )(*args)


# ----------------------------------------------------------------------------- CSP


def csp_forward(x, params, *, add=True, compute_dtype=jnp.bfloat16, hw_tile=None):
    """CSP.forward: y = [conv1(x), conv2(x)]; chained Residual blocks; conv3 over chunks."""
    N, Cin, H, W = x.shape
    HW = H * W
    half = params["conv1"][0].shape[0]
    out_ch = params["conv3"][0].shape[0]
    vmem_limit = _vmem_limit_bytes()
    sub = 8 * (4 // jnp.dtype(compute_dtype).itemsize)
    if hw_tile is not None:
        T = int(hw_tile)
    else:
        T = _choose_hw_tile(HW, _round_up(half, sub), max(half, out_ch),
                            compute_dtype, vmem_limit)
    assert T % 128 == 0, "hw tile must be a multiple of 128"
    HWt = _round_up(HW, T)
    n_pad = HWt - HW

    x_flat = x.astype(compute_dtype).reshape(N, Cin, HW)
    if n_pad:
        x_flat = jnp.pad(x_flat, ((0, 0), (0, 0), (0, n_pad)))

    common = dict(T=T, compute_dtype=compute_dtype, vmem_limit=vmem_limit)

    # conv1 & conv2 fused into one pallas_call: x is read from HBM once.
    y1, y2 = _pw_conv_dual(x_flat, params["conv1"], params["conv2"],
                           out_dtype=compute_dtype, **common)
    ys = [y1, y2]
    last = y2
    for blk in params["res"]:
        h = _conv_kxk(last, *blk[0], H, W, k=3, out_dtype=compute_dtype, **common)
        h = _conv_kxk(h, *blk[1], H, W, k=3,
                      residual=last if add else None,          # fused skip add
                      out_dtype=compute_dtype, **common)
        ys.append(h)
        last = h

    # conv3 without materializing the channel concat: partial dots over the y chunks.
    w3, s3, b3 = params["conv3"]
    out = _pw_conv(ys, w3, s3, b3, residual=None, out_dtype=x.dtype, **common)
    if n_pad:
        out = out[:, :, :HW]
    return out.reshape(N, out_ch, H, W)


# ------------------------------------------------------------------- pure-JAX reference


def _conv_bn_silu_ref(x, w, scale, bias, *, k=1, s=1, p=None, d=1,
                      residual=None, out_dtype=None, compute_dtype=jnp.bfloat16):
    pd = pad_amount(k, p, d)
    if out_dtype is None:
        out_dtype = compute_dtype
    y = lax.conv_general_dilated(
        x.astype(compute_dtype), w.astype(compute_dtype),
        window_strides=(s, s), padding=[(pd, pd), (pd, pd)],
        rhs_dilation=(d, d),
        dimension_numbers=("NCHW", "OIHW", "NCHW"),
        preferred_element_type=jnp.float32)
    y = (y * scale.astype(jnp.float32)[None, :, None, None]
         + bias.astype(jnp.float32)[None, :, None, None])
    y = y * lax.logistic(y)
    if residual is not None:
        y = y + residual.astype(jnp.float32)
    return y.astype(out_dtype)


def csp_forward_ref(x, params, *, add=True, compute_dtype=jnp.bfloat16):
    conv = functools.partial(_conv_bn_silu_ref, compute_dtype=compute_dtype)
    y = [conv(x, *params["conv1"], k=1), conv(x, *params["conv2"], k=1)]
    for blk in params["res"]:
        h = conv(y[-1], *blk[0], k=3)
        h = conv(h, *blk[1], k=3, residual=y[-1] if add else None)
        y.append(h)
    cat = jnp.concatenate(y, axis=1)
    return conv(cat, *params["conv3"], k=1, out_dtype=x.dtype)


# -------------------------------------------------------------------------- parameters


def _init_conv_params(key, in_ch, out_ch, k, eps=1e-3):
    kw, kg, kb, km, kv = jax.random.split(key, 5)
    w = jax.random.normal(kw, (out_ch, in_ch, k, k), jnp.float32)
    w = w * (1.0 / float(in_ch * k * k) ** 0.5)
    gamma = jax.random.uniform(kg, (out_ch,), jnp.float32, 0.5, 1.5)
    beta = 0.1 * jax.random.normal(kb, (out_ch,), jnp.float32)
    mean = 0.1 * jax.random.normal(km, (out_ch,), jnp.float32)
    var = jax.random.uniform(kv, (out_ch,), jnp.float32, 0.5, 1.5)
    # eval-mode BatchNorm2d(out_ch, eps=1e-3) folded to per-channel scale / bias
    scale = gamma / jnp.sqrt(var + eps)
    bias = beta - mean * scale
    return w, scale, bias


def init_csp_params(key, in_ch, out_ch, n=1):
    keys = jax.random.split(key, 3 + 2 * n)
    half = out_ch // 2
    return {
        "conv1": _init_conv_params(keys[0], in_ch, half, 1),
        "conv2": _init_conv_params(keys[1], in_ch, half, 1),
        "conv3": _init_conv_params(keys[2], (2 + n) * half, out_ch, 1),
        "res": [(_init_conv_params(keys[3 + 2 * i], half, half, 3),
                 _init_conv_params(keys[4 + 2 * i], half, half, 3))
                for i in range(n)],
    }


if __name__ == "__main__":
    # CSP(in_ch=4, out_ch=8, n=1, add=True)
    N, IN_CH, OUT_CH, NBLK = 2, 4, 8, 1
    key = jax.random.PRNGKey(0)
    kx, kp, kx2 = jax.random.split(key, 3)
    params = init_csp_params(kp, IN_CH, OUT_CH, n=NBLK)

    # 1) Default (single-tile) path, bf16 matmuls / bf16 intermediates, f32 accum+BN+SiLU.
    x = jax.random.normal(kx, (N, IN_CH, 16, 16), dtype=jnp.float32)
    out = jax.block_until_ready(
        jax.jit(functools.partial(csp_forward, add=True,
                                  compute_dtype=jnp.bfloat16))(x, params))
    ref = jax.block_until_ready(
        jax.jit(functools.partial(csp_forward_ref, add=True,
                                  compute_dtype=jnp.bfloat16))(x, params))
    assert out.shape == (N, OUT_CH, 16, 16), out.shape
    assert out.dtype == x.dtype, out.dtype
    err = float(jnp.max(jnp.abs(out - ref)))
    assert err < 1e-1, f"bf16 path mismatch vs reference: max abs err {err}"

    # 2) Same kernels with full-f32 compute (tight numerical check of the conv/BN/SiLU math).
    out32 = jax.block_until_ready(
        jax.jit(functools.partial(csp_forward, add=True,
                                  compute_dtype=jnp.float32))(x, params))
    ref32 = jax.block_until_ready(
        jax.jit(functools.partial(csp_forward_ref, add=True,
                                  compute_dtype=jnp.float32))(x, params))
    err32 = float(jnp.max(jnp.abs(out32 - ref32)))
    assert err32 < 2e-2, f"f32 path mismatch vs reference: max abs err {err32}"

    # 3) Forced multi-tile path (exercises halo window DMA + padded H*W tail): 20x20 image,
    #    hw_tile=128 -> 4 lane tiles of 128 with HW=400 padded to 512.
    x2 = jax.random.normal(kx2, (N, IN_CH, 20, 20), dtype=jnp.float32)
    out_t = jax.block_until_ready(
        jax.jit(functools.partial(csp_forward, add=True, compute_dtype=jnp.bfloat16,
                                  hw_tile=128))(x2, params))
    ref_t = jax.block_until_ready(
        jax.jit(functools.partial(csp_forward_ref, add=True,
                                  compute_dtype=jnp.bfloat16))(x2, params))
    assert out_t.shape == (N, OUT_CH, 20, 20), out_t.shape
    err_t = float(jnp.max(jnp.abs(out_t - ref_t)))
    assert err_t < 1e-1, f"tiled path mismatch vs reference: max abs err {err_t}"

    print("KERNEL_OK")
</pallas_src>

<mosaic_0001>
module attributes {stable_mosaic.version = 11 : i64} {
  func.func @_pw_kernel(%arg0: i32, %arg1: i32, %arg2: memref<1x4x256xbf16, #tpu.memory_space<vmem>>, %arg3: memref<1x4x256xbf16, #tpu.memory_space<vmem>>, %arg4: memref<1x4x256xbf16, #tpu.memory_space<vmem>>, %arg5: memref<8x4xbf16, #tpu.memory_space<vmem>>, %arg6: memref<8x4xbf16, #tpu.memory_space<vmem>>, %arg7: memref<8x4xbf16, #tpu.memory_space<vmem>>, %arg8: memref<8x1xf32, #tpu.memory_space<vmem>>, %arg9: memref<1x8x256xf32, #tpu.memory_space<vmem>>) attributes {dimension_semantics = [#tpu.dimension_semantics<parallel>, #tpu.dimension_semantics<parallel>], iteration_bounds = array<i64: 2, 1>, scalar_prefetch = 0 : i64, scratch_operands = 0 : i64, tpu.core_type = #tpu.core_type<tc>, window_params = [{transform_indices = @transform_0, window_bounds = array<i64: 1, 4, 256>}, {transform_indices = @transform_1, window_bounds = array<i64: 1, 4, 256>}, {transform_indices = @transform_2, window_bounds = array<i64: 1, 4, 256>}, {pipeline_mode = #tpu.pipeline_mode<synchronous>, transform_indices = @transform_3, window_bounds = array<i64: 8, 4>}, {pipeline_mode = #tpu.pipeline_mode<synchronous>, transform_indices = @transform_4, window_bounds = array<i64: 8, 4>}, {pipeline_mode = #tpu.pipeline_mode<synchronous>, transform_indices = @transform_5, window_bounds = array<i64: 8, 4>}, {pipeline_mode = #tpu.pipeline_mode<synchronous>, transform_indices = @transform_6, window_bounds = array<i64: 8, 1>}, {transform_indices = @transform_7, window_bounds = array<i64: 1, 8, 256>}]} {
    %c0 = arith.constant 0 : index
    %c0_0 = arith.constant 0 : index
    %0 = vector.load %arg5[%c0, %c0_0] : memref<8x4xbf16, #tpu.memory_space<vmem>>, vector<8x4xbf16>
    %c0_1 = arith.constant 0 : index
    %c0_2 = arith.constant 0 : index
    %c0_3 = arith.constant 0 : index
    %1 = vector.load %arg2[%c0_1, %c0_2, %c0_3] : memref<1x4x256xbf16, #tpu.memory_space<vmem>>, vector<1x4x256xbf16>
    %2 = vector.shape_cast %1 : vector<1x4x256xbf16> to vector<4x256xbf16>
    %cst = arith.constant dense<0.000000e+00> : vector<8x256xf32>
    %3 = tpu.matmul %0, %2, %cst {dimension_numbers = #tpu.dot_dimension_numbers<[1], [0], [0], [1], [0, 0, 1, 1], [], []>} : vector<8x4xbf16>, vector<4x256xbf16>, vector<8x256xf32> -> vector<8x256xf32>
    %c0_4 = arith.constant 0 : index
    %c0_5 = arith.constant 0 : index
    %4 = vector.load %arg6[%c0_4, %c0_5] : memref<8x4xbf16, #tpu.memory_space<vmem>>, vector<8x4xbf16>
    %c0_6 = arith.constant 0 : index
    %c0_7 = arith.constant 0 : index
    %c0_8 = arith.constant 0 : index
    %5 = vector.load %arg3[%c0_6, %c0_7, %c0_8] : memref<1x4x256xbf16, #tpu.memory_space<vmem>>, vector<1x4x256xbf16>
    %6 = vector.shape_cast %5 : vector<1x4x256xbf16> to vector<4x256xbf16>
    %cst_9 = arith.constant dense<0.000000e+00> : vector<8x256xf32>
    %7 = tpu.matmul %4, %6, %cst_9 {dimension_numbers = #tpu.dot_dimension_numbers<[1], [0], [0], [1], [0, 0, 1, 1], [], []>} : vector<8x4xbf16>, vector<4x256xbf16>, vector<8x256xf32> -> vector<8x256xf32>
    %8 = arith.addf %3, %7 : vector<8x256xf32>
    %c0_10 = arith.constant 0 : index
    %c0_11 = arith.constant 0 : index
    %9 = vector.load %arg7[%c0_10, %c0_11] : memref<8x4xbf16, #tpu.memory_space<vmem>>, vector<8x4xbf16>
    %c0_12 = arith.constant 0 : index
    %c0_13 = arith.constant 0 : index
    %c0_14 = arith.constant 0 : index
    %10 = vector.load %arg4[%c0_12, %c0_13, %c0_14] : memref<1x4x256xbf16, #tpu.memory_space<vmem>>, vector<1x4x256xbf16>
    %11 = vector.shape_cast %10 : vector<1x4x256xbf16> to vector<4x256xbf16>
    %cst_15 = arith.constant dense<0.000000e+00> : vector<8x256xf32>
    %12 = tpu.matmul %9, %11, %cst_15 {dimension_numbers = #tpu.dot_dimension_numbers<[1], [0], [0], [1], [0, 0, 1, 1], [], []>} : vector<8x4xbf16>, vector<4x256xbf16>, vector<8x256xf32> -> vector<8x256xf32>
    %13 = arith.addf %8, %12 : vector<8x256xf32>
    %c0_16 = arith.constant 0 : index
    %c0_17 = arith.constant 0 : index
    %14 = vector.load %arg8[%c0_16, %c0_17] : memref<8x1xf32, #tpu.memory_space<vmem>>, vector<8x1xf32>
    %15 = vector.broadcast %14 : vector<8x1xf32> to vector<8x256xf32>
    %16 = arith.addf %13, %15 : vector<8x256xf32>
    %17 = arith.negf %16 : vector<8x256xf32>
    %18 = math.exp %17 : vector<8x256xf32>
    %cst_18 = arith.constant 1.000000e+00 : f32
    %19 = vector.broadcast %cst_18 : f32 to vector<8x256xf32>
    %20 = arith.addf %19, %18 : vector<8x256xf32>
    %21 = arith.divf %19, %20 : vector<8x256xf32>
    %22 = arith.mulf %16, %21 : vector<8x256xf32>
    %c0_19 = arith.constant 0 : index
    %c0_20 = arith.constant 0 : index
    %c0_21 = arith.constant 0 : index
    %23 = vector.load %arg9[%c0_19, %c0_20, %c0_21] : memref<1x8x256xf32, #tpu.memory_space<vmem>>, vector<1x8x256xf32>
    %24 = vector.shape_cast %23 : vector<1x8x256xf32> to vector<8x256xf32>
    %25 = vector.shape_cast %22 : vector<8x256xf32> to vector<1x8x256xf32>
    tpu.vector_store %arg9[%c0_19, %c0_20, %c0_21], %25 {strides = array<i32>} : memref<1x8x256xf32, #tpu.memory_space<vmem>>, vector<1x8x256xf32>,
    return
  }
  func.func @transform_0(%arg0: i32, %arg1: i32) -> (i32, i32, i32) {
    %c0_i32 = arith.constant 0 : i32
    %c0_i32_0 = arith.constant 0 : i32
    return %arg0, %c0_i32, %arg1 : i32, i32, i32
  }
  func.func @transform_1(%arg0: i32, %arg1: i32) -> (i32, i32, i32) {
    %c0_i32 = arith.constant 0 : i32
    %c0_i32_0 = arith.constant 0 : i32
    return %arg0, %c0_i32, %arg1 : i32, i32, i32
  }
  func.func @transform_2(%arg0: i32, %arg1: i32) -> (i32, i32, i32) {
    %c0_i32 = arith.constant 0 : i32
    %c0_i32_0 = arith.constant 0 : i32
    return %arg0, %c0_i32, %arg1 : i32, i32, i32
  }
  func.func @transform_3(%arg0: i32, %arg1: i32) -> (i32, i32) {
    %c0_i32 = arith.constant 0 : i32
    %c0_i32_0 = arith.constant 0 : i32
    %c0_i32_1 = arith.constant 0 : i32
    return %c0_i32, %c0_i32_0 : i32, i32
  }
  func.func @transform_4(%arg0: i32, %arg1: i32) -> (i32, i32) {
    %c0_i32 = arith.constant 0 : i32
    %c0_i32_0 = arith.constant 0 : i32
    %c0_i32_1 = arith.constant 0 : i32
    return %c0_i32, %c0_i32_0 : i32, i32
  }
  func.func @transform_5(%arg0: i32, %arg1: i32) -> (i32, i32) {
    %c0_i32 = arith.constant 0 : i32
    %c0_i32_0 = arith.constant 0 : i32
    %c0_i32_1 = arith.constant 0 : i32
    return %c0_i32, %c0_i32_0 : i32, i32
  }
  func.func @transform_6(%arg0: i32, %arg1: i32) -> (i32, i32) {
    %c0_i32 = arith.constant 0 : i32
    %c0_i32_0 = arith.constant 0 : i32
    %c0_i32_1 = arith.constant 0 : i32
    return %c0_i32, %c0_i32_0 : i32, i32
  }
  func.func @transform_7(%arg0: i32, %arg1: i32) -> (i32, i32, i32) {
    %c0_i32 = arith.constant 0 : i32
    %c0_i32_0 = arith.constant 0 : i32
    return %arg0, %c0_i32, %arg1 : i32, i32, i32
  }
}

module attributes {stable_mosaic.version = 11 : i64} {
  func.func @_pw_dual_kernel(%arg0: i32, %arg1: i32, %arg2: memref<1x4x256xbf16, #tpu.memory_space<vmem>>, %arg3: memref<4x4xbf16, #tpu.memory_space<vmem>>, %arg4: memref<4x1xf32, #tpu.memory_space<vmem>>, %arg5: memref<4x4xbf16, #tpu.memory_space<vmem>>, %arg6: memref<4x1xf32, #tpu.memory_space<vmem>>, %arg7: memref<1x4x256xbf16, #tpu.memory_space<vmem>>, %arg8: memref<1x4x256xbf16, #tpu.memory_space<vmem>>) attributes {dimension_semantics = [#tpu.dimension_semantics<parallel>, #tpu.dimension_semantics<parallel>], iteration_bounds = array<i64: 2, 1>, scalar_prefetch = 0 : i64, scratch_operands = 0 : i64, tpu.core_type = #tpu.core_type<tc>, window_params = [{transform_indices = @transform_0, window_bounds = array<i64: 1, 4, 256>}, {pipeline_mode = #tpu.pipeline_mode<synchronous>, transform_indices = @transform_1, window_bounds = array<i64: 4, 4>}, {pipeline_mode = #tpu.pipeline_mode<synchronous>, transform_indices = @transform_2, window_bounds = array<i64: 4, 1>}, {pipeline_mode = #tpu.pipeline_mode<synchronous>, transform_indices = @transform_3, window_bounds = array<i64: 4, 4>}, {pipeline_mode = #tpu.pipeline_mode<synchronous>, transform_indices = @transform_4, window_bounds = array<i64: 4, 1>}, {transform_indices = @transform_5, window_bounds = array<i64: 1, 4, 256>}, {transform_indices = @transform_6, window_bounds = array<i64: 1, 4, 256>}]} {
    %c0 = arith.constant 0 : index
    %c0_0 = arith.constant 0 : index
    %c0_1 = arith.constant 0 : index
    %0 = vector.load %arg2[%c0, %c0_0, %c0_1] : memref<1x4x256xbf16, #tpu.memory_space<vmem>>, vector<1x4x256xbf16>
    %1 = vector.shape_cast %0 : vector<1x4x256xbf16> to vector<4x256xbf16>
    %c0_2 = arith.constant 0 : index
    %c0_3 = arith.constant 0 : index
    %2 = vector.load %arg3[%c0_2, %c0_3] : memref<4x4xbf16, #tpu.memory_space<vmem>>, vector<4x4xbf16>
    %cst = arith.constant dense<0.000000e+00> : vector<4x256xf32>
    %3 = tpu.matmul %2, %1, %cst {dimension_numbers = #tpu.dot_dimension_numbers<[1], [0], [0], [1], [0, 0, 1, 1], [], []>} : vector<4x4xbf16>, vector<4x256xbf16>, vector<4x256xf32> -> vector<4x256xf32>
    %c0_4 = arith.constant 0 : index
    %c0_5 = arith.constant 0 : index
    %4 = vector.load %arg4[%c0_4, %c0_5] : memref<4x1xf32, #tpu.memory_space<vmem>>, vector<4x1xf32>
    %5 = vector.broadcast %4 : vector<4x1xf32> to vector<4x256xf32>
    %6 = arith.addf %3, %5 : vector<4x256xf32>
    %7 = arith.negf %6 : vector<4x256xf32>
    %8 = math.exp %7 : vector<4x256xf32>
    %cst_6 = arith.constant 1.000000e+00 : f32
    %9 = vector.broadcast %cst_6 : f32 to vector<4x256xf32>
    %10 = arith.addf %9, %8 : vector<4x256xf32>
    %11 = arith.divf %9, %10 : vector<4x256xf32>
    %12 = arith.mulf %6, %11 : vector<4x256xf32>
    %13 = arith.truncf %12 : vector<4x256xf32> to vector<4x256xbf16>
    %c0_7 = arith.constant 0 : index
    %c0_8 = arith.constant 0 : index
    %c0_9 = arith.constant 0 : index
    %14 = vector.load %arg7[%c0_7, %c0_8, %c0_9] : memref<1x4x256xbf16, #tpu.memory_space<vmem>>, vector<1x4x256xbf16>
    %15 = vector.shape_cast %14 : vector<1x4x256xbf16> to vector<4x256xbf16>
    %16 = vector.shape_cast %13 : vector<4x256xbf16> to vector<1x4x256xbf16>
    tpu.vector_store %arg7[%c0_7, %c0_8, %c0_9], %16 {strides = array<i32>} : memref<1x4x256xbf16, #tpu.memory_space<vmem>>, vector<1x4x256xbf16>,
    %c0_10 = arith.constant 0 : index
    %c0_11 = arith.constant 0 : index
    %17 = vector.load %arg5[%c0_10, %c0_11] : memref<4x4xbf16, #tpu.memory_space<vmem>>, vector<4x4xbf16>
    %cst_12 = arith.constant dense<0.000000e+00> : vector<4x256xf32>
    %18 = tpu.matmul %17, %1, %cst_12 {dimension_numbers = #tpu.dot_dimension_numbers<[1], [0], [0], [1], [0, 0, 1, 1], [], []>} : vector<4x4xbf16>, vector<4x256xbf16>, vector<4x256xf32> -> vector<4x256xf32>
    %c0_13 = arith.constant 0 : index
    %c0_14 = arith.constant 0 : index
    %19 = vector.load %arg6[%c0_13, %c0_14] : memref<4x1xf32, #tpu.memory_space<vmem>>, vector<4x1xf32>
    %20 = vector.broadcast %19 : vector<4x1xf32> to vector<4x256xf32>
    %21 = arith.addf %18, %20 : vector<4x256xf32>
    %22 = arith.negf %21 : vector<4x256xf32>
    %23 = math.exp %22 : vector<4x256xf32>
    %cst_15 = arith.constant 1.000000e+00 : f32
    %24 = vector.broadcast %cst_15 : f32 to vector<4x256xf32>
    %25 = arith.addf %24, %23 : vector<4x256xf32>
    %26 = arith.divf %24, %25 : vector<4x256xf32>
    %27 = arith.mulf %21, %26 : vector<4x256xf32>
    %28 = arith.truncf %27 : vector<4x256xf32> to vector<4x256xbf16>
    %c0_16 = arith.constant 0 : index
    %c0_17 = arith.constant 0 : index
    %c0_18 = arith.constant 0 : index
    %29 = vector.load %arg8[%c0_16, %c0_17, %c0_18] : memref<1x4x256xbf16, #tpu.memory_space<vmem>>, vector<1x4x256xbf16>
    %30 = vector.shape_cast %29 : vector<1x4x256xbf16> to vector<4x256xbf16>
    %31 = vector.shape_cast %28 : vector<4x256xbf16> to vector<1x4x256xbf16>
    tpu.vector_store %arg8[%c0_16, %c0_17, %c0_18], %31 {strides = array<i32>} : memref<1x4x256xbf16, #tpu.memory_space<vmem>>, vector<1x4x256xbf16>,
    return
  }
  func.func @transform_0(%arg0: i32, %arg1: i32) -> (i32, i32, i32) {
    %c0_i32 = arith.constant 0 : i32
    %c0_i32_0 = arith.constant 0 : i32
    return %arg0, %c0_i32, %arg1 : i32, i32, i32
  }
  func.func @transform_1(%arg0: i32, %arg1: i32) -> (i32, i32) {
    %c0_i32 = arith.constant 0 : i32
    %c0_i32_0 = arith.constant 0 : i32
    %c0_i32_1 = arith.constant 0 : i32
    return %c0_i32, %c0_i32_0 : i32, i32
  }
  func.func @transform_2(%arg0: i32, %arg1: i32) -> (i32, i32) {
    %c0_i32 = arith.constant 0 : i32
    %c0_i32_0 = arith.constant 0 : i32
    %c0_i32_1 = arith.constant 0 : i32
    return %c0_i32, %c0_i32_0 : i32, i32
  }
  func.func @transform_3(%arg0: i32, %arg1: i32) -> (i32, i32) {
    %c0_i32 = arith.constant 0 : i32
    %c0_i32_0 = arith.constant 0 : i32
    %c0_i32_1 = arith.constant 0 : i32
    return %c0_i32, %c0_i32_0 : i32, i32
  }
  func.func @transform_4(%arg0: i32, %arg1: i32) -> (i32, i32) {
    %c0_i32 = arith.constant 0 : i32
    %c0_i32_0 = arith.constant 0 : i32
    %c0_i32_1 = arith.constant 0 : i32
    return %c0_i32, %c0_i32_0 : i32, i32
  }
  func.func @transform_5(%arg0: i32, %arg1: i32) -> (i32, i32, i32) {
    %c0_i32 = arith.constant 0 : i32
    %c0_i32_0 = arith.constant 0 : i32
    return %arg0, %c0_i32, %arg1 : i32, i32, i32
  }
  func.func @transform_6(%arg0: i32, %arg1: i32) -> (i32, i32, i32) {
    %c0_i32 = arith.constant 0 : i32
    %c0_i32_0 = arith.constant 0 : i32
    return %arg0, %c0_i32, %arg1 : i32, i32, i32
  }
}

module attributes {stable_mosaic.version = 11 : i64} {
  func.func @_conv_kxk_kernel(%arg0: i32, %arg1: i32, %arg2: memref<2x16x512xbf16, #tpu.memory_space<any>>, %arg3: memref<1x256xi32, #tpu.memory_space<vmem>>, %arg4: memref<1x256xi32, #tpu.memory_space<vmem>>, %arg5: memref<4x144xbf16, #tpu.memory_space<vmem>>, %arg6: memref<4x1xf32, #tpu.memory_space<vmem>>, %arg7: memref<1x4x256xbf16, #tpu.memory_space<vmem>>, %arg8: memref<1x4x256xbf16, #tpu.memory_space<vmem>>, %arg9: memref<16x512xbf16, #tpu.memory_space<vmem>>, %arg10: memref<!tpu.dma_semaphore, #tpu.memory_space<semaphore_mem>>) attributes {dimension_semantics = [#tpu.dimension_semantics<parallel>, #tpu.dimension_semantics<parallel>], iteration_bounds = array<i64: 2, 1>, scalar_prefetch = 0 : i64, scratch_operands = 2 : i64, tpu.core_type = #tpu.core_type<tc>, window_params = [{}, {transform_indices = @transform_1, window_bounds = array<i64: 1, 256>}, {transform_indices = @transform_2, window_bounds = array<i64: 1, 256>}, {pipeline_mode = #tpu.pipeline_mode<synchronous>, transform_indices = @transform_3, window_bounds = array<i64: 4, 144>}, {pipeline_mode = #tpu.pipeline_mode<synchronous>, transform_indices = @transform_4, window_bounds = array<i64: 4, 1>}, {transform_indices = @transform_5, window_bounds = array<i64: 1, 4, 256>}, {transform_indices = @transform_6, window_bounds = array<i64: 1, 4, 256>}]} {
    %c256_i32 = arith.constant 256 : i32
    %0 = arith.muli %arg1, %c256_i32 : i32
    %1 = tpu.assume_multiple %0, 128 : i32
    %c0_i32 = arith.constant 0 : i32
    %2 = tpu.memref_slice %arg2[%arg0, %c0_i32, %1] : memref<2x16x512xbf16, #tpu.memory_space<any>> -> memref<1x16x512xbf16, #tpu.memory_space<any>>
    %3 = tpu.memref_squeeze %2 : memref<1x16x512xbf16, #tpu.memory_space<any>> -> memref<16x512xbf16, #tpu.memory_space<any>>
    tpu.enqueue_dma source(%3 : memref<16x512xbf16, #tpu.memory_space<any>>) target(%arg9 : memref<16x512xbf16, #tpu.memory_space<vmem>>) target_semaphore(%arg10 : memref<!tpu.dma_semaphore, #tpu.memory_space<semaphore_mem>>)
    %c0 = arith.constant 0 : index
    %c0_0 = arith.constant 0 : index
    %4 = vector.load %arg3[%c0, %c0_0] : memref<1x256xi32, #tpu.memory_space<vmem>>, vector<1x256xi32>
    %c0_1 = arith.constant 0 : index
    %c0_2 = arith.constant 0 : index
    %5 = vector.load %arg4[%c0_1, %c0_2] : memref<1x256xi32, #tpu.memory_space<vmem>>, vector<1x256xi32>
    %c-1_i32 = arith.constant -1 : i32
    %6 = vector.broadcast %c-1_i32 : i32 to vector<1x256xi32>
    %7 = arith.addi %4, %6 : vector<1x256xi32>
    %c0_i32_3 = arith.constant 0 : i32
    %8 = vector.broadcast %c0_i32_3 : i32 to vector<1x256xi32>
    %9 = arith.cmpi sge, %7, %8 : vector<1x256xi32>
    %c-1_i32_4 = arith.constant -1 : i32
    %10 = vector.broadcast %c-1_i32_4 : i32 to vector<1x256xi32>
    %11 = arith.addi %4, %10 : vector<1x256xi32>
    %c16_i32 = arith.constant 16 : i32
    %12 = vector.broadcast %c16_i32 : i32 to vector<1x256xi32>
    %13 = arith.cmpi slt, %11, %12 : vector<1x256xi32>
    %14 = arith.andi %9, %13 : vector<1x256xi1>
    %c-1_i32_5 = arith.constant -1 : i32
    %15 = vector.broadcast %c-1_i32_5 : i32 to vector<1x256xi32>
    %16 = arith.addi %5, %15 : vector<1x256xi32>
    %c0_i32_6 = arith.constant 0 : i32
    %17 = vector.broadcast %c0_i32_6 : i32 to vector<1x256xi32>
    %18 = arith.cmpi sge, %16, %17 : vector<1x256xi32>
    %19 = arith.andi %14, %18 : vector<1x256xi1>
    %c-1_i32_7 = arith.constant -1 : i32
    %20 = vector.broadcast %c-1_i32_7 : i32 to vector<1x256xi32>
    %21 = arith.addi %5, %20 : vector<1x256xi32>
    %c16_i32_8 = arith.constant 16 : i32
    %22 = vector.broadcast %c16_i32_8 : i32 to vector<1x256xi32>
    %23 = arith.cmpi slt, %21, %22 : vector<1x256xi32>
    %24 = arith.andi %19, %23 : vector<1x256xi1>
    %c-1_i32_9 = arith.constant -1 : i32
    %25 = vector.broadcast %c-1_i32_9 : i32 to vector<1x256xi32>
    %26 = arith.addi %4, %25 : vector<1x256xi32>
    %c0_i32_10 = arith.constant 0 : i32
    %27 = vector.broadcast %c0_i32_10 : i32 to vector<1x256xi32>
    %28 = arith.cmpi sge, %26, %27 : vector<1x256xi32>
    %c-1_i32_11 = arith.constant -1 : i32
    %29 = vector.broadcast %c-1_i32_11 : i32 to vector<1x256xi32>
    %30 = arith.addi %4, %29 : vector<1x256xi32>
    %c16_i32_12 = arith.constant 16 : i32
    %31 = vector.broadcast %c16_i32_12 : i32 to vector<1x256xi32>
    %32 = arith.cmpi slt, %30, %31 : vector<1x256xi32>
    %33 = arith.andi %28, %32 : vector<1x256xi1>
    %c0_i32_13 = arith.constant 0 : i32
    %34 = vector.broadcast %c0_i32_13 : i32 to vector<1x256xi32>
    %35 = arith.addi %5, %34 : vector<1x256xi32>
    %c0_i32_14 = arith.constant 0 : i32
    %36 = vector.broadcast %c0_i32_14 : i32 to vector<1x256xi32>
    %37 = arith.cmpi sge, %35, %36 : vector<1x256xi32>
    %38 = arith.andi %33, %37 : vector<1x256xi1>
    %c0_i32_15 = arith.constant 0 : i32
    %39 = vector.broadcast %c0_i32_15 : i32 to vector<1x256xi32>
    %40 = arith.addi %5, %39 : vector<1x256xi32>
    %c16_i32_16 = arith.constant 16 : i32
    %41 = vector.broadcast %c16_i32_16 : i32 to vector<1x256xi32>
    %42 = arith.cmpi slt, %40, %41 : vector<1x256xi32>
    %43 = arith.andi %38, %42 : vector<1x256xi1>
    %c-1_i32_17 = arith.constant -1 : i32
    %44 = vector.broadcast %c-1_i32_17 : i32 to vector<1x256xi32>
    %45 = arith.addi %4, %44 : vector<1x256xi32>
    %c0_i32_18 = arith.constant 0 : i32
    %46 = vector.broadcast %c0_i32_18 : i32 to vector<1x256xi32>
    %47 = arith.cmpi sge, %45, %46 : vector<1x256xi32>
    %c-1_i32_19 = arith.constant -1 : i32
    %48 = vector.broadcast %c-1_i32_19 : i32 to vector<1x256xi32>
    %49 = arith.addi %4, %48 : vector<1x256xi32>
    %c16_i32_20 = arith.constant 16 : i32
    %50 = vector.broadcast %c16_i32_20 : i32 to vector<1x256xi32>
    %51 = arith.cmpi slt, %49, %50 : vector<1x256xi32>
    %52 = arith.andi %47, %51 : vector<1x256xi1>
    %c1_i32 = arith.constant 1 : i32
    %53 = vector.broadcast %c1_i32 : i32 to vector<1x256xi32>
    %54 = arith.addi %5, %53 : vector<1x256xi32>
    %c0_i32_21 = arith.constant 0 : i32
    %55 = vector.broadcast %c0_i32_21 : i32 to vector<1x256xi32>
    %56 = arith.cmpi sge, %54, %55 : vector<1x256xi32>
    %57 = arith.andi %52, %56 : vector<1x256xi1>
    %c1_i32_22 = arith.constant 1 : i32
    %58 = vector.broadcast %c1_i32_22 : i32 to vector<1x256xi32>
    %59 = arith.addi %5, %58 : vector<1x256xi32>
    %c16_i32_23 = arith.constant 16 : i32
    %60 = vector.broadcast %c16_i32_23 : i32 to vector<1x256xi32>
    %61 = arith.cmpi slt, %59, %60 : vector<1x256xi32>
    %62 = arith.andi %57, %61 : vector<1x256xi1>
    %c0_i32_24 = arith.constant 0 : i32
    %63 = vector.broadcast %c0_i32_24 : i32 to vector<1x256xi32>
    %64 = arith.addi %4, %63 : vector<1x256xi32>
    %c0_i32_25 = arith.constant 0 : i32
    %65 = vector.broadcast %c0_i32_25 : i32 to vector<1x256xi32>
    %66 = arith.cmpi sge, %64, %65 : vector<1x256xi32>
    %c0_i32_26 = arith.constant 0 : i32
    %67 = vector.broadcast %c0_i32_26 : i32 to vector<1x256xi32>
    %68 = arith.addi %4, %67 : vector<1x256xi32>
    %c16_i32_27 = arith.constant 16 : i32
    %69 = vector.broadcast %c16_i32_27 : i32 to vector<1x256xi32>
    %70 = arith.cmpi slt, %68, %69 : vector<1x256xi32>
    %71 = arith.andi %66, %70 : vector<1x256xi1>
    %c-1_i32_28 = arith.constant -1 : i32
    %72 = vector.broadcast %c-1_i32_28 : i32 to vector<1x256xi32>
    %73 = arith.addi %5, %72 : vector<1x256xi32>
    %c0_i32_29 = arith.constant 0 : i32
    %74 = vector.broadcast %c0_i32_29 : i32 to vector<1x256xi32>
    %75 = arith.cmpi sge, %73, %74 : vector<1x256xi32>
    %76 = arith.andi %71, %75 : vector<1x256xi1>
    %c-1_i32_30 = arith.constant -1 : i32
    %77 = vector.broadcast %c-1_i32_30 : i32 to vector<1x256xi32>
    %78 = arith.addi %5, %77 : vector<1x256xi32>
    %c16_i32_31 = arith.constant 16 : i32
    %79 = vector.broadcast %c16_i32_31 : i32 to vector<1x256xi32>
    %80 = arith.cmpi slt, %78, %79 : vector<1x256xi32>
    %81 = arith.andi %76, %80 : vector<1x256xi1>
    %c0_i32_32 = arith.constant 0 : i32
    %82 = vector.broadcast %c0_i32_32 : i32 to vector<1x256xi32>
    %83 = arith.addi %4, %82 : vector<1x256xi32>
    %c0_i32_33 = arith.constant 0 : i32
    %84 = vector.broadcast %c0_i32_33 : i32 to vector<1x256xi32>
    %85 = arith.cmpi sge, %83, %84 : vector<1x256xi32>
    %c0_i32_34 = arith.constant 0 : i32
    %86 = vector.broadcast %c0_i32_34 : i32 to vector<1x256xi32>
    %87 = arith.addi %4, %86 : vector<1x256xi32>
    %c16_i32_35 = arith.constant 16 : i32
    %88 = vector.broadcast %c16_i32_35 : i32 to vector<1x256xi32>
    %89 = arith.cmpi slt, %87, %88 : vector<1x256xi32>
    %90 = arith.andi %85, %89 : vector<1x256xi1>
    %c0_i32_36 = arith.constant 0 : i32
    %91 = vector.broadcast %c0_i32_36 : i32 to vector<1x256xi32>
    %92 = arith.addi %5, %91 : vector<1x256xi32>
    %c0_i32_37 = arith.constant 0 : i32
    %93 = vector.broadcast %c0_i32_37 : i32 to vector<1x256xi32>
    %94 = arith.cmpi sge, %92, %93 : vector<1x256xi32>
    %95 = arith.andi %90, %94 : vector<1x256xi1>
    %c0_i32_38 = arith.constant 0 : i32
    %96 = vector.broadcast %c0_i32_38 : i32 to vector<1x256xi32>
    %97 = arith.addi %5, %96 : vector<1x256xi32>
    %c16_i32_39 = arith.constant 16 : i32
    %98 = vector.broadcast %c16_i32_39 : i32 to vector<1x256xi32>
    %99 = arith.cmpi slt, %97, %98 : vector<1x256xi32>
    %100 = arith.andi %95, %99 : vector<1x256xi1>
    %c0_i32_40 = arith.constant 0 : i32
    %101 = vector.broadcast %c0_i32_40 : i32 to vector<1x256xi32>
    %102 = arith.addi %4, %101 : vector<1x256xi32>
    %c0_i32_41 = arith.constant 0 : i32
    %103 = vector.broadcast %c0_i32_41 : i32 to vector<1x256xi32>
    %104 = arith.cmpi sge, %102, %103 : vector<1x256xi32>
    %c0_i32_42 = arith.constant 0 : i32
    %105 = vector.broadcast %c0_i32_42 : i32 to vector<1x256xi32>
    %106 = arith.addi %4, %105 : vector<1x256xi32>
    %c16_i32_43 = arith.constant 16 : i32
    %107 = vector.broadcast %c16_i32_43 : i32 to vector<1x256xi32>
    %108 = arith.cmpi slt, %106, %107 : vector<1x256xi32>
    %109 = arith.andi %104, %108 : vector<1x256xi1>
    %c1_i32_44 = arith.constant 1 : i32
    %110 = vector.broadcast %c1_i32_44 : i32 to vector<1x256xi32>
    %111 = arith.addi %5, %110 : vector<1x256xi32>
    %c0_i32_45 = arith.constant 0 : i32
    %112 = vector.broadcast %c0_i32_45 : i32 to vector<1x256xi32>
    %113 = arith.cmpi sge, %111, %112 : vector<1x256xi32>
    %114 = arith.andi %109, %113 : vector<1x256xi1>
    %c1_i32_46 = arith.constant 1 : i32
    %115 = vector.broadcast %c1_i32_46 : i32 to vector<1x256xi32>
    %116 = arith.addi %5, %115 : vector<1x256xi32>
    %c16_i32_47 = arith.constant 16 : i32
    %117 = vector.broadcast %c16_i32_47 : i32 to vector<1x256xi32>
    %118 = arith.cmpi slt, %116, %117 : vector<1x256xi32>
    %119 = arith.andi %114, %118 : vector<1x256xi1>
    %c1_i32_48 = arith.constant 1 : i32
    %120 = vector.broadcast %c1_i32_48 : i32 to vector<1x256xi32>
    %121 = arith.addi %4, %120 : vector<1x256xi32>
    %c0_i32_49 = arith.constant 0 : i32
    %122 = vector.broadcast %c0_i32_49 : i32 to vector<1x256xi32>
    %123 = arith.cmpi sge, %121, %122 : vector<1x256xi32>
    %c1_i32_50 = arith.constant 1 : i32
    %124 = vector.broadcast %c1_i32_50 : i32 to vector<1x256xi32>
    %125 = arith.addi %4, %124 : vector<1x256xi32>
    %c16_i32_51 = arith.constant 16 : i32
    %126 = vector.broadcast %c16_i32_51 : i32 to vector<1x256xi32>
    %127 = arith.cmpi slt, %125, %126 : vector<1x256xi32>
    %128 = arith.andi %123, %127 : vector<1x256xi1>
    %c-1_i32_52 = arith.constant -1 : i32
    %129 = vector.broadcast %c-1_i32_52 : i32 to vector<1x256xi32>
    %130 = arith.addi %5, %129 : vector<1x256xi32>
    %c0_i32_53 = arith.constant 0 : i32
    %131 = vector.broadcast %c0_i32_53 : i32 to vector<1x256xi32>
    %132 = arith.cmpi sge, %130, %131 : vector<1x256xi32>
    %133 = arith.andi %128, %132 : vector<1x256xi1>
    %c-1_i32_54 = arith.constant -1 : i32
    %134 = vector.broadcast %c-1_i32_54 : i32 to vector<1x256xi32>
    %135 = arith.addi %5, %134 : vector<1x256xi32>
    %c16_i32_55 = arith.constant 16 : i32
    %136 = vector.broadcast %c16_i32_55 : i32 to vector<1x256xi32>
    %137 = arith.cmpi slt, %135, %136 : vector<1x256xi32>
    %138 = arith.andi %133, %137 : vector<1x256xi1>
    %c1_i32_56 = arith.constant 1 : i32
    %139 = vector.broadcast %c1_i32_56 : i32 to vector<1x256xi32>
    %140 = arith.addi %4, %139 : vector<1x256xi32>
    %c0_i32_57 = arith.constant 0 : i32
    %141 = vector.broadcast %c0_i32_57 : i32 to vector<1x256xi32>
    %142 = arith.cmpi sge, %140, %141 : vector<1x256xi32>
    %c1_i32_58 = arith.constant 1 : i32
    %143 = vector.broadcast %c1_i32_58 : i32 to vector<1x256xi32>
    %144 = arith.addi %4, %143 : vector<1x256xi32>
    %c16_i32_59 = arith.constant 16 : i32
    %145 = vector.broadcast %c16_i32_59 : i32 to vector<1x256xi32>
    %146 = arith.cmpi slt, %144, %145 : vector<1x256xi32>
    %147 = arith.andi %142, %146 : vector<1x256xi1>
    %c0_i32_60 = arith.constant 0 : i32
    %148 = vector.broadcast %c0_i32_60 : i32 to vector<1x256xi32>
    %149 = arith.addi %5, %148 : vector<1x256xi32>
    %c0_i32_61 = arith.constant 0 : i32
    %150 = vector.broadcast %c0_i32_61 : i32 to vector<1x256xi32>
    %151 = arith.cmpi sge, %149, %150 : vector<1x256xi32>
    %152 = arith.andi %147, %151 : vector<1x256xi1>
    %c0_i32_62 = arith.constant 0 : i32
    %153 = vector.broadcast %c0_i32_62 : i32 to vector<1x256xi32>
    %154 = arith.addi %5, %153 : vector<1x256xi32>
    %c16_i32_63 = arith.constant 16 : i32
    %155 = vector.broadcast %c16_i32_63 : i32 to vector<1x256xi32>
    %156 = arith.cmpi slt, %154, %155 : vector<1x256xi32>
    %157 = arith.andi %152, %156 : vector<1x256xi1>
    %c1_i32_64 = arith.constant 1 : i32
    %158 = vector.broadcast %c1_i32_64 : i32 to vector<1x256xi32>
    %159 = arith.addi %4, %158 : vector<1x256xi32>
    %c0_i32_65 = arith.constant 0 : i32
    %160 = vector.broadcast %c0_i32_65 : i32 to vector<1x256xi32>
    %161 = arith.cmpi sge, %159, %160 : vector<1x256xi32>
    %c1_i32_66 = arith.constant 1 : i32
    %162 = vector.broadcast %c1_i32_66 : i32 to vector<1x256xi32>
    %163 = arith.addi %4, %162 : vector<1x256xi32>
    %c16_i32_67 = arith.constant 16 : i32
    %164 = vector.broadcast %c16_i32_67 : i32 to vector<1x256xi32>
    %165 = arith.cmpi slt, %163, %164 : vector<1x256xi32>
    %166 = arith.andi %161, %165 : vector<1x256xi1>
    %c1_i32_68 = arith.constant 1 : i32
    %167 = vector.broadcast %c1_i32_68 : i32 to vector<1x256xi32>
    %168 = arith.addi %5, %167 : vector<1x256xi32>
    %c0_i32_69 = arith.constant 0 : i32
    %169 = vector.broadcast %c0_i32_69 : i32 to vector<1x256xi32>
    %170 = arith.cmpi sge, %168, %169 : vector<1x256xi32>
    %171 = arith.andi %166, %170 : vector<1x256xi1>
    %c1_i32_70 = arith.constant 1 : i32
    %172 = vector.broadcast %c1_i32_70 : i32 to vector<1x256xi32>
    %173 = arith.addi %5, %172 : vector<1x256xi32>
    %c16_i32_71 = arith.constant 16 : i32
    %174 = vector.broadcast %c16_i32_71 : i32 to vector<1x256xi32>
    %175 = arith.cmpi slt, %173, %174 : vector<1x256xi32>
    %176 = arith.andi %171, %175 : vector<1x256xi1>
    %c0_i32_72 = arith.constant 0 : i32
    %177 = tpu.memref_slice %arg2[%arg0, %c0_i32_72, %1] : memref<2x16x512xbf16, #tpu.memory_space<any>> -> memref<1x16x512xbf16, #tpu.memory_space<any>>
    %178 = tpu.memref_squeeze %177 : memref<1x16x512xbf16, #tpu.memory_space<any>> -> memref<16x512xbf16, #tpu.memory_space<any>>
    tpu.wait_dma2 semaphore(%arg10 : memref<!tpu.dma_semaphore, #tpu.memory_space<semaphore_mem>>) src(%178 : memref<16x512xbf16, #tpu.memory_space<any>>) dst(%arg9 : memref<16x512xbf16, #tpu.memory_space<vmem>>)
    %c0_73 = arith.constant 0 : index
    %c0_74 = arith.constant 0 : index
    %179 = vector.load %arg9[%c0_73, %c0_74] : memref<16x512xbf16, #tpu.memory_space<vmem>>, vector<16x512xbf16>
    %180 = vector.extract_strided_slice %179 {offsets = [0, 111], sizes = [16, 256], strides = [1, 1]} : vector<16x512xbf16> to vector<16x256xbf16>
    %c0_i32_75 = arith.constant 0 : i32
    %181 = arith.sitofp %c0_i32_75 : i32 to bf16
    %182 = vector.shape_cast %24 : vector<1x256xi1> to vector<1x256xi1>
    %183 = vector.broadcast %182 : vector<1x256xi1> to vector<16x256xi1>
    %184 = vector.broadcast %181 : bf16 to vector<16x256xbf16>
    %185 = arith.select %183, %180, %184 : vector<16x256xi1>, vector<16x256xbf16>
    %186 = vector.extract_strided_slice %179 {offsets = [0, 112], sizes = [16, 256], strides = [1, 1]} : vector<16x512xbf16> to vector<16x256xbf16>
    %c0_i32_76 = arith.constant 0 : i32
    %187 = arith.sitofp %c0_i32_76 : i32 to bf16
    %188 = vector.shape_cast %43 : vector<1x256xi1> to vector<1x256xi1>
    %189 = vector.broadcast %188 : vector<1x256xi1> to vector<16x256xi1>
    %190 = vector.broadcast %187 : bf16 to vector<16x256xbf16>
    %191 = arith.select %189, %186, %190 : vector<16x256xi1>, vector<16x256xbf16>
    %192 = vector.extract_strided_slice %179 {offsets = [0, 113], sizes = [16, 256], strides = [1, 1]} : vector<16x512xbf16> to vector<16x256xbf16>
    %c0_i32_77 = arith.constant 0 : i32
    %193 = arith.sitofp %c0_i32_77 : i32 to bf16
    %194 = vector.shape_cast %62 : vector<1x256xi1> to vector<1x256xi1>
    %195 = vector.broadcast %194 : vector<1x256xi1> to vector<16x256xi1>
    %196 = vector.broadcast %193 : bf16 to vector<16x256xbf16>
    %197 = arith.select %195, %192, %196 : vector<16x256xi1>, vector<16x256xbf16>
    %198 = vector.extract_strided_slice %179 {offsets = [0, 127], sizes = [16, 256], strides = [1, 1]} : vector<16x512xbf16> to vector<16x256xbf16>
    %c0_i32_78 = arith.constant 0 : i32
    %199 = arith.sitofp %c0_i32_78 : i32 to bf16
    %200 = vector.shape_cast %81 : vector<1x256xi1> to vector<1x256xi1>
    %201 = vector.broadcast %200 : vector<1x256xi1> to vector<16x256xi1>
    %202 = vector.broadcast %199 : bf16 to vector<16x256xbf16>
    %203 = arith.select %201, %198, %202 : vector<16x256xi1>, vector<16x256xbf16>
    %204 = vector.extract_strided_slice %179 {offsets = [0, 128], sizes = [16, 256], strides = [1, 1]} : vector<16x512xbf16> to vector<16x256xbf16>
    %c0_i32_79 = arith.constant 0 : i32
    %205 = arith.sitofp %c0_i32_79 : i32 to bf16
    %206 = vector.shape_cast %100 : vector<1x256xi1> to vector<1x256xi1>
    %207 = vector.broadcast %206 : vector<1x256xi1> to vector<16x256xi1>
    %208 = vector.broadcast %205 : bf16 to vector<16x256xbf16>
    %209 = arith.select %207, %204, %208 : vector<16x256xi1>, vector<16x256xbf16>
    %210 = vector.extract_strided_slice %179 {offsets = [0, 129], sizes = [16, 256], strides = [1, 1]} : vector<16x512xbf16> to vector<16x256xbf16>
    %c0_i32_80 = arith.constant 0 : i32
    %211 = arith.sitofp %c0_i32_80 : i32 to bf16
    %212 = vector.shape_cast %119 : vector<1x256xi1> to vector<1x256xi1>
    %213 = vector.broadcast %212 : vector<1x256xi1> to vector<16x256xi1>
    %214 = vector.broadcast %211 : bf16 to vector<16x256xbf16>
    %215 = arith.select %213, %210, %214 : vector<16x256xi1>, vector<16x256xbf16>
    %216 = vector.extract_strided_slice %179 {offsets = [0, 143], sizes = [16, 256], strides = [1, 1]} : vector<16x512xbf16> to vector<16x256xbf16>
    %c0_i32_81 = arith.constant 0 : i32
    %217 = arith.sitofp %c0_i32_81 : i32 to bf16
    %218 = vector.shape_cast %138 : vector<1x256xi1> to vector<1x256xi1>
    %219 = vector.broadcast %218 : vector<1x256xi1> to vector<16x256xi1>
    %220 = vector.broadcast %217 : bf16 to vector<16x256xbf16>
    %221 = arith.select %219, %216, %220 : vector<16x256xi1>, vector<16x256xbf16>
    %222 = vector.extract_strided_slice %179 {offsets = [0, 144], sizes = [16, 256], strides = [1, 1]} : vector<16x512xbf16> to vector<16x256xbf16>
    %c0_i32_82 = arith.constant 0 : i32
    %223 = arith.sitofp %c0_i32_82 : i32 to bf16
    %224 = vector.shape_cast %157 : vector<1x256xi1> to vector<1x256xi1>
    %225 = vector.broadcast %224 : vector<1x256xi1> to vector<16x256xi1>
    %226 = vector.broadcast %223 : bf16 to vector<16x256xbf16>
    %227 = arith.select %225, %222, %226 : vector<16x256xi1>, vector<16x256xbf16>
    %228 = vector.extract_strided_slice %179 {offsets = [0, 145], sizes = [16, 256], strides = [1, 1]} : vector<16x512xbf16> to vector<16x256xbf16>
    %c0_i32_83 = arith.constant 0 : i32
    %229 = arith.sitofp %c0_i32_83 : i32 to bf16
    %230 = vector.shape_cast %176 : vector<1x256xi1> to vector<1x256xi1>
    %231 = vector.broadcast %230 : vector<1x256xi1> to vector<16x256xi1>
    %232 = vector.broadcast %229 : bf16 to vector<16x256xbf16>
    %233 = arith.select %231, %228, %232 : vector<16x256xi1>, vector<16x256xbf16>
    %234 = tpu.concatenate %185, %191, %197, %203, %209, %215, %221, %227, %233 in 0 : vector<16x256xbf16>, vector<16x256xbf16>, vector<16x256xbf16>, vector<16x256xbf16>, vector<16x256xbf16>, vector<16x256xbf16>, vector<16x256xbf16>, vector<16x256xbf16>, vector<16x256xbf16> -> vector<144x256xbf16>
    %c0_84 = arith.constant 0 : index
    %c0_85 = arith.constant 0 : index
    %235 = vector.load %arg5[%c0_84, %c0_85] : memref<4x144xbf16, #tpu.memory_space<vmem>>, vector<4x144xbf16>
    %cst = arith.constant dense<0.000000e+00> : vector<4x256xf32>
    %236 = tpu.matmul %235, %234, %cst {dimension_numbers = #tpu.dot_dimension_numbers<[1], [0], [0], [1], [0, 0, 1, 1], [], []>} : vector<4x144xbf16>, vector<144x256xbf16>, vector<4x256xf32> -> vector<4x256xf32>
    %c0_86 = arith.constant 0 : index
    %c0_87 = arith.constant 0 : index
    %237 = vector.load %arg6[%c0_86, %c0_87] : memref<4x1xf32, #tpu.memory_space<vmem>>, vector<4x1xf32>
    %238 = vector.broadcast %237 : vector<4x1xf32> to vector<4x256xf32>
    %239 = arith.addf %236, %238 : vector<4x256xf32>
    %240 = arith.negf %239 : vector<4x256xf32>
    %241 = math.exp %240 : vector<4x256xf32>
    %cst_88 = arith.constant 1.000000e+00 : f32
    %242 = vector.broadcast %cst_88 : f32 to vector<4x256xf32>
    %243 = arith.addf %242, %241 : vector<4x256xf32>
    %244 = arith.divf %242, %243 : vector<4x256xf32>
    %245 = arith.mulf %239, %244 : vector<4x256xf32>
    %c0_89 = arith.constant 0 : index
    %c0_90 = arith.constant 0 : index
    %c0_91 = arith.constant 0 : index
    %246 = vector.load %arg7[%c0_89, %c0_90, %c0_91] : memref<1x4x256xbf16, #tpu.memory_space<vmem>>, vector<1x4x256xbf16>
    %247 = vector.shape_cast %246 : vector<1x4x256xbf16> to vector<4x256xbf16>
    %248 = arith.extf %247 : vector<4x256xbf16> to vector<4x256xf32>
    %249 = arith.addf %245, %248 : vector<4x256xf32>
    %250 = arith.truncf %249 : vector<4x256xf32> to vector<4x256xbf16>
    %c0_92 = arith.constant 0 : index
    %c0_93 = arith.constant 0 : index
    %c0_94 = arith.constant 0 : index
    %251 = vector.load %arg8[%c0_92, %c0_93, %c0_94] : memref<1x4x256xbf16, #tpu.memory_space<vmem>>, vector<1x4x256xbf16>
    %252 = vector.shape_cast %251 : vector<1x4x256xbf16> to vector<4x256xbf16>
    %253 = vector.shape_cast %250 : vector<4x256xbf16> to vector<1x4x256xbf16>
    tpu.vector_store %arg8[%c0_92, %c0_93, %c0_94], %253 {strides = array<i32>} : memref<1x4x256xbf16, #tpu.memory_space<vmem>>, vector<1x4x256xbf16>,
    return
  }
  func.func @transform_1(%arg0: i32, %arg1: i32) -> (i32, i32) {
    %c0_i32 = arith.constant 0 : i32
    %c0_i32_0 = arith.constant 0 : i32
    return %c0_i32, %arg1 : i32, i32
  }
  func.func @transform_2(%arg0: i32, %arg1: i32) -> (i32, i32) {
    %c0_i32 = arith.constant 0 : i32
    %c0_i32_0 = arith.constant 0 : i32
    return %c0_i32, %arg1 : i32, i32
  }
  func.func @transform_3(%arg0: i32, %arg1: i32) -> (i32, i32) {
    %c0_i32 = arith.constant 0 : i32
    %c0_i32_0 = arith.constant 0 : i32
    %c0_i32_1 = arith.constant 0 : i32
    return %c0_i32, %c0_i32_0 : i32, i32
  }
  func.func @transform_4(%arg0: i32, %arg1: i32) -> (i32, i32) {
    %c0_i32 = arith.constant 0 : i32
    %c0_i32_0 = arith.constant 0 : i32
    %c0_i32_1 = arith.constant 0 : i32
    return %c0_i32, %c0_i32_0 : i32, i32
  }
  func.func @transform_5(%arg0: i32, %arg1: i32) -> (i32, i32, i32) {
    %c0_i32 = arith.constant 0 : i32
    %c0_i32_0 = arith.constant 0 : i32
    return %arg0, %c0_i32, %arg1 : i32, i32, i32
  }
  func.func @transform_6(%arg0: i32, %arg1: i32) -> (i32, i32, i32) {
    %c0_i32 = arith.constant 0 : i32
    %c0_i32_0 = arith.constant 0 : i32
    return %arg0, %c0_i32, %arg1 : i32, i32, i32
  }
}

module attributes {stable_mosaic.version = 11 : i64} {
  func.func @_conv_kxk_kernel(%arg0: i32, %arg1: i32, %arg2: memref<2x16x512xbf16, #tpu.memory_space<any>>, %arg3: memref<1x256xi32, #tpu.memory_space<vmem>>, %arg4: memref<1x256xi32, #tpu.memory_space<vmem>>, %arg5: memref<4x144xbf16, #tpu.memory_space<vmem>>, %arg6: memref<4x1xf32, #tpu.memory_space<vmem>>, %arg7: memref<1x4x256xbf16, #tpu.memory_space<vmem>>, %arg8: memref<16x512xbf16, #tpu.memory_space<vmem>>, %arg9: memref<!tpu.dma_semaphore, #tpu.memory_space<semaphore_mem>>) attributes {dimension_semantics = [#tpu.dimension_semantics<parallel>, #tpu.dimension_semantics<parallel>], iteration_bounds = array<i64: 2, 1>, scalar_prefetch = 0 : i64, scratch_operands = 2 : i64, tpu.core_type = #tpu.core_type<tc>, window_params = [{}, {transform_indices = @transform_1, window_bounds = array<i64: 1, 256>}, {transform_indices = @transform_2, window_bounds = array<i64: 1, 256>}, {pipeline_mode = #tpu.pipeline_mode<synchronous>, transform_indices = @transform_3, window_bounds = array<i64: 4, 144>}, {pipeline_mode = #tpu.pipeline_mode<synchronous>, transform_indices = @transform_4, window_bounds = array<i64: 4, 1>}, {transform_indices = @transform_5, window_bounds = array<i64: 1, 4, 256>}]} {
    %c256_i32 = arith.constant 256 : i32
    %0 = arith.muli %arg1, %c256_i32 : i32
    %1 = tpu.assume_multiple %0, 128 : i32
    %c0_i32 = arith.constant 0 : i32
    %2 = tpu.memref_slice %arg2[%arg0, %c0_i32, %1] : memref<2x16x512xbf16, #tpu.memory_space<any>> -> memref<1x16x512xbf16, #tpu.memory_space<any>>
    %3 = tpu.memref_squeeze %2 : memref<1x16x512xbf16, #tpu.memory_space<any>> -> memref<16x512xbf16, #tpu.memory_space<any>>
    tpu.enqueue_dma source(%3 : memref<16x512xbf16, #tpu.memory_space<any>>) target(%arg8 : memref<16x512xbf16, #tpu.memory_space<vmem>>) target_semaphore(%arg9 : memref<!tpu.dma_semaphore, #tpu.memory_space<semaphore_mem>>)
    %c0 = arith.constant 0 : index
    %c0_0 = arith.constant 0 : index
    %4 = vector.load %arg3[%c0, %c0_0] : memref<1x256xi32, #tpu.memory_space<vmem>>, vector<1x256xi32>
    %c0_1 = arith.constant 0 : index
    %c0_2 = arith.constant 0 : index
    %5 = vector.load %arg4[%c0_1, %c0_2] : memref<1x256xi32, #tpu.memory_space<vmem>>, vector<1x256xi32>
    %c-1_i32 = arith.constant -1 : i32
    %6 = vector.broadcast %c-1_i32 : i32 to vector<1x256xi32>
    %7 = arith.addi %4, %6 : vector<1x256xi32>
    %c0_i32_3 = arith.constant 0 : i32
    %8 = vector.broadcast %c0_i32_3 : i32 to vector<1x256xi32>
    %9 = arith.cmpi sge, %7, %8 : vector<1x256xi32>
    %c-1_i32_4 = arith.constant -1 : i32
    %10 = vector.broadcast %c-1_i32_4 : i32 to vector<1x256xi32>
    %11 = arith.addi %4, %10 : vector<1x256xi32>
    %c16_i32 = arith.constant 16 : i32
    %12 = vector.broadcast %c16_i32 : i32 to vector<1x256xi32>
    %13 = arith.cmpi slt, %11, %12 : vector<1x256xi32>
    %14 = arith.andi %9, %13 : vector<1x256xi1>
    %c-1_i32_5 = arith.constant -1 : i32
    %15 = vector.broadcast %c-1_i32_5 : i32 to vector<1x256xi32>
    %16 = arith.addi %5, %15 : vector<1x256xi32>
    %c0_i32_6 = arith.constant 0 : i32
    %17 = vector.broadcast %c0_i32_6 : i32 to vector<1x256xi32>
    %18 = arith.cmpi sge, %16, %17 : vector<1x256xi32>
    %19 = arith.andi %14, %18 : vector<1x256xi1>
    %c-1_i32_7 = arith.constant -1 : i32
    %20 = vector.broadcast %c-1_i32_7 : i32 to vector<1x256xi32>
    %21 = arith.addi %5, %20 : vector<1x256xi32>
    %c16_i32_8 = arith.constant 16 : i32
    %22 = vector.broadcast %c16_i32_8 : i32 to vector<1x256xi32>
    %23 = arith.cmpi slt, %21, %22 : vector<1x256xi32>
    %24 = arith.andi %19, %23 : vector<1x256xi1>
    %c-1_i32_9 = arith.constant -1 : i32
    %25 = vector.broadcast %c-1_i32_9 : i32 to vector<1x256xi32>
    %26 = arith.addi %4, %25 : vector<1x256xi32>
    %c0_i32_10 = arith.constant 0 : i32
    %27 = vector.broadcast %c0_i32_10 : i32 to vector<1x256xi32>
    %28 = arith.cmpi sge, %26, %27 : vector<1x256xi32>
    %c-1_i32_11 = arith.constant -1 : i32
    %29 = vector.broadcast %c-1_i32_11 : i32 to vector<1x256xi32>
    %30 = arith.addi %4, %29 : vector<1x256xi32>
    %c16_i32_12 = arith.constant 16 : i32
    %31 = vector.broadcast %c16_i32_12 : i32 to vector<1x256xi32>
    %32 = arith.cmpi slt, %30, %31 : vector<1x256xi32>
    %33 = arith.andi %28, %32 : vector<1x256xi1>
    %c0_i32_13 = arith.constant 0 : i32
    %34 = vector.broadcast %c0_i32_13 : i32 to vector<1x256xi32>
    %35 = arith.addi %5, %34 : vector<1x256xi32>
    %c0_i32_14 = arith.constant 0 : i32
    %36 = vector.broadcast %c0_i32_14 : i32 to vector<1x256xi32>
    %37 = arith.cmpi sge, %35, %36 : vector<1x256xi32>
    %38 = arith.andi %33, %37 : vector<1x256xi1>
    %c0_i32_15 = arith.constant 0 : i32
    %39 = vector.broadcast %c0_i32_15 : i32 to vector<1x256xi32>
    %40 = arith.addi %5, %39 : vector<1x256xi32>
    %c16_i32_16 = arith.constant 16 : i32
    %41 = vector.broadcast %c16_i32_16 : i32 to vector<1x256xi32>
    %42 = arith.cmpi slt, %40, %41 : vector<1x256xi32>
    %43 = arith.andi %38, %42 : vector<1x256xi1>
    %c-1_i32_17 = arith.constant -1 : i32
    %44 = vector.broadcast %c-1_i32_17 : i32 to vector<1x256xi32>
    %45 = arith.addi %4, %44 : vector<1x256xi32>
    %c0_i32_18 = arith.constant 0 : i32
    %46 = vector.broadcast %c0_i32_18 : i32 to vector<1x256xi32>
    %47 = arith.cmpi sge, %45, %46 : vector<1x256xi32>
    %c-1_i32_19 = arith.constant -1 : i32
    %48 = vector.broadcast %c-1_i32_19 : i32 to vector<1x256xi32>
    %49 = arith.addi %4, %48 : vector<1x256xi32>
    %c16_i32_20 = arith.constant 16 : i32
    %50 = vector.broadcast %c16_i32_20 : i32 to vector<1x256xi32>
    %51 = arith.cmpi slt, %49, %50 : vector<1x256xi32>
    %52 = arith.andi %47, %51 : vector<1x256xi1>
    %c1_i32 = arith.constant 1 : i32
    %53 = vector.broadcast %c1_i32 : i32 to vector<1x256xi32>
    %54 = arith.addi %5, %53 : vector<1x256xi32>
    %c0_i32_21 = arith.constant 0 : i32
    %55 = vector.broadcast %c0_i32_21 : i32 to vector<1x256xi32>
    %56 = arith.cmpi sge, %54, %55 : vector<1x256xi32>
    %57 = arith.andi %52, %56 : vector<1x256xi1>
    %c1_i32_22 = arith.constant 1 : i32
    %58 = vector.broadcast %c1_i32_22 : i32 to vector<1x256xi32>
    %59 = arith.addi %5, %58 : vector<1x256xi32>
    %c16_i32_23 = arith.constant 16 : i32
    %60 = vector.broadcast %c16_i32_23 : i32 to vector<1x256xi32>
    %61 = arith.cmpi slt, %59, %60 : vector<1x256xi32>
    %62 = arith.andi %57, %61 : vector<1x256xi1>
    %c0_i32_24 = arith.constant 0 : i32
    %63 = vector.broadcast %c0_i32_24 : i32 to vector<1x256xi32>
    %64 = arith.addi %4, %63 : vector<1x256xi32>
    %c0_i32_25 = arith.constant 0 : i32
    %65 = vector.broadcast %c0_i32_25 : i32 to vector<1x256xi32>
    %66 = arith.cmpi sge, %64, %65 : vector<1x256xi32>
    %c0_i32_26 = arith.constant 0 : i32
    %67 = vector.broadcast %c0_i32_26 : i32 to vector<1x256xi32>
    %68 = arith.addi %4, %67 : vector<1x256xi32>
    %c16_i32_27 = arith.constant 16 : i32
    %69 = vector.broadcast %c16_i32_27 : i32 to vector<1x256xi32>
    %70 = arith.cmpi slt, %68, %69 : vector<1x256xi32>
    %71 = arith.andi %66, %70 : vector<1x256xi1>
    %c-1_i32_28 = arith.constant -1 : i32
    %72 = vector.broadcast %c-1_i32_28 : i32 to vector<1x256xi32>
    %73 = arith.addi %5, %72 : vector<1x256xi32>
    %c0_i32_29 = arith.constant 0 : i32
    %74 = vector.broadcast %c0_i32_29 : i32 to vector<1x256xi32>
    %75 = arith.cmpi sge, %73, %74 : vector<1x256xi32>
    %76 = arith.andi %71, %75 : vector<1x256xi1>
    %c-1_i32_30 = arith.constant -1 : i32
    %77 = vector.broadcast %c-1_i32_30 : i32 to vector<1x256xi32>
    %78 = arith.addi %5, %77 : vector<1x256xi32>
    %c16_i32_31 = arith.constant 16 : i32
    %79 = vector.broadcast %c16_i32_31 : i32 to vector<1x256xi32>
    %80 = arith.cmpi slt, %78, %79 : vector<1x256xi32>
    %81 = arith.andi %76, %80 : vector<1x256xi1>
    %c0_i32_32 = arith.constant 0 : i32
    %82 = vector.broadcast %c0_i32_32 : i32 to vector<1x256xi32>
    %83 = arith.addi %4, %82 : vector<1x256xi32>
    %c0_i32_33 = arith.constant 0 : i32
    %84 = vector.broadcast %c0_i32_33 : i32 to vector<1x256xi32>
    %85 = arith.cmpi sge, %83, %84 : vector<1x256xi32>
    %c0_i32_34 = arith.constant 0 : i32
    %86 = vector.broadcast %c0_i32_34 : i32 to vector<1x256xi32>
    %87 = arith.addi %4, %86 : vector<1x256xi32>
    %c16_i32_35 = arith.constant 16 : i32
    %88 = vector.broadcast %c16_i32_35 : i32 to vector<1x256xi32>
    %89 = arith.cmpi slt, %87, %88 : vector<1x256xi32>
    %90 = arith.andi %85, %89 : vector<1x256xi1>
    %c0_i32_36 = arith.constant 0 : i32
    %91 = vector.broadcast %c0_i32_36 : i32 to vector<1x256xi32>
    %92 = arith.addi %5, %91 : vector<1x256xi32>
    %c0_i32_37 = arith.constant 0 : i32
    %93 = vector.broadcast %c0_i32_37 : i32 to vector<1x256xi32>
    %94 = arith.cmpi sge, %92, %93 : vector<1x256xi32>
    %95 = arith.andi %90, %94 : vector<1x256xi1>
    %c0_i32_38 = arith.constant 0 : i32
    %96 = vector.broadcast %c0_i32_38 : i32 to vector<1x256xi32>
    %97 = arith.addi %5, %96 : vector<1x256xi32>
    %c16_i32_39 = arith.constant 16 : i32
    %98 = vector.broadcast %c16_i32_39 : i32 to vector<1x256xi32>
    %99 = arith.cmpi slt, %97, %98 : vector<1x256xi32>
    %100 = arith.andi %95, %99 : vector<1x256xi1>
    %c0_i32_40 = arith.constant 0 : i32
    %101 = vector.broadcast %c0_i32_40 : i32 to vector<1x256xi32>
    %102 = arith.addi %4, %101 : vector<1x256xi32>
    %c0_i32_41 = arith.constant 0 : i32
    %103 = vector.broadcast %c0_i32_41 : i32 to vector<1x256xi32>
    %104 = arith.cmpi sge, %102, %103 : vector<1x256xi32>
    %c0_i32_42 = arith.constant 0 : i32
    %105 = vector.broadcast %c0_i32_42 : i32 to vector<1x256xi32>
    %106 = arith.addi %4, %105 : vector<1x256xi32>
    %c16_i32_43 = arith.constant 16 : i32
    %107 = vector.broadcast %c16_i32_43 : i32 to vector<1x256xi32>
    %108 = arith.cmpi slt, %106, %107 : vector<1x256xi32>
    %109 = arith.andi %104, %108 : vector<1x256xi1>
    %c1_i32_44 = arith.constant 1 : i32
    %110 = vector.broadcast %c1_i32_44 : i32 to vector<1x256xi32>
    %111 = arith.addi %5, %110 : vector<1x256xi32>
    %c0_i32_45 = arith.constant 0 : i32
    %112 = vector.broadcast %c0_i32_45 : i32 to vector<1x256xi32>
    %113 = arith.cmpi sge, %111, %112 : vector<1x256xi32>
    %114 = arith.andi %109, %113 : vector<1x256xi1>
    %c1_i32_46 = arith.constant 1 : i32
    %115 = vector.broadcast %c1_i32_46 : i32 to vector<1x256xi32>
    %116 = arith.addi %5, %115 : vector<1x256xi32>
    %c16_i32_47 = arith.constant 16 : i32
    %117 = vector.broadcast %c16_i32_47 : i32 to vector<1x256xi32>
    %118 = arith.cmpi slt, %116, %117 : vector<1x256xi32>
    %119 = arith.andi %114, %118 : vector<1x256xi1>
    %c1_i32_48 = arith.constant 1 : i32
    %120 = vector.broadcast %c1_i32_48 : i32 to vector<1x256xi32>
    %121 = arith.addi %4, %120 : vector<1x256xi32>
    %c0_i32_49 = arith.constant 0 : i32
    %122 = vector.broadcast %c0_i32_49 : i32 to vector<1x256xi32>
    %123 = arith.cmpi sge, %121, %122 : vector<1x256xi32>
    %c1_i32_50 = arith.constant 1 : i32
    %124 = vector.broadcast %c1_i32_50 : i32 to vector<1x256xi32>
    %125 = arith.addi %4, %124 : vector<1x256xi32>
    %c16_i32_51 = arith.constant 16 : i32
    %126 = vector.broadcast %c16_i32_51 : i32 to vector<1x256xi32>
    %127 = arith.cmpi slt, %125, %126 : vector<1x256xi32>
    %128 = arith.andi %123, %127 : vector<1x256xi1>
    %c-1_i32_52 = arith.constant -1 : i32
    %129 = vector.broadcast %c-1_i32_52 : i32 to vector<1x256xi32>
    %130 = arith.addi %5, %129 : vector<1x256xi32>
    %c0_i32_53 = arith.constant 0 : i32
    %131 = vector.broadcast %c0_i32_53 : i32 to vector<1x256xi32>
    %132 = arith.cmpi sge, %130, %131 : vector<1x256xi32>
    %133 = arith.andi %128, %132 : vector<1x256xi1>
    %c-1_i32_54 = arith.constant -1 : i32
    %134 = vector.broadcast %c-1_i32_54 : i32 to vector<1x256xi32>
    %135 = arith.addi %5, %134 : vector<1x256xi32>
    %c16_i32_55 = arith.constant 16 : i32
    %136 = vector.broadcast %c16_i32_55 : i32 to vector<1x256xi32>
    %137 = arith.cmpi slt, %135, %136 : vector<1x256xi32>
    %138 = arith.andi %133, %137 : vector<1x256xi1>
    %c1_i32_56 = arith.constant 1 : i32
    %139 = vector.broadcast %c1_i32_56 : i32 to vector<1x256xi32>
    %140 = arith.addi %4, %139 : vector<1x256xi32>
    %c0_i32_57 = arith.constant 0 : i32
    %141 = vector.broadcast %c0_i32_57 : i32 to vector<1x256xi32>
    %142 = arith.cmpi sge, %140, %141 : vector<1x256xi32>
    %c1_i32_58 = arith.constant 1 : i32
    %143 = vector.broadcast %c1_i32_58 : i32 to vector<1x256xi32>
    %144 = arith.addi %4, %143 : vector<1x256xi32>
    %c16_i32_59 = arith.constant 16 : i32
    %145 = vector.broadcast %c16_i32_59 : i32 to vector<1x256xi32>
    %146 = arith.cmpi slt, %144, %145 : vector<1x256xi32>
    %147 = arith.andi %142, %146 : vector<1x256xi1>
    %c0_i32_60 = arith.constant 0 : i32
    %148 = vector.broadcast %c0_i32_60 : i32 to vector<1x256xi32>
    %149 = arith.addi %5, %148 : vector<1x256xi32>
    %c0_i32_61 = arith.constant 0 : i32
    %150 = vector.broadcast %c0_i32_61 : i32 to vector<1x256xi32>
    %151 = arith.cmpi sge, %149, %150 : vector<1x256xi32>
    %152 = arith.andi %147, %151 : vector<1x256xi1>
    %c0_i32_62 = arith.constant 0 : i32
    %153 = vector.broadcast %c0_i32_62 : i32 to vector<1x256xi32>
    %154 = arith.addi %5, %153 : vector<1x256xi32>
    %c16_i32_63 = arith.constant 16 : i32
    %155 = vector.broadcast %c16_i32_63 : i32 to vector<1x256xi32>
    %156 = arith.cmpi slt, %154, %155 : vector<1x256xi32>
    %157 = arith.andi %152, %156 : vector<1x256xi1>
    %c1_i32_64 = arith.constant 1 : i32
    %158 = vector.broadcast %c1_i32_64 : i32 to vector<1x256xi32>
    %159 = arith.addi %4, %158 : vector<1x256xi32>
    %c0_i32_65 = arith.constant 0 : i32
    %160 = vector.broadcast %c0_i32_65 : i32 to vector<1x256xi32>
    %161 = arith.cmpi sge, %159, %160 : vector<1x256xi32>
    %c1_i32_66 = arith.constant 1 : i32
    %162 = vector.broadcast %c1_i32_66 : i32 to vector<1x256xi32>
    %163 = arith.addi %4, %162 : vector<1x256xi32>
    %c16_i32_67 = arith.constant 16 : i32
    %164 = vector.broadcast %c16_i32_67 : i32 to vector<1x256xi32>
    %165 = arith.cmpi slt, %163, %164 : vector<1x256xi32>
    %166 = arith.andi %161, %165 : vector<1x256xi1>
    %c1_i32_68 = arith.constant 1 : i32
    %167 = vector.broadcast %c1_i32_68 : i32 to vector<1x256xi32>
    %168 = arith.addi %5, %167 : vector<1x256xi32>
    %c0_i32_69 = arith.constant 0 : i32
    %169 = vector.broadcast %c0_i32_69 : i32 to vector<1x256xi32>
    %170 = arith.cmpi sge, %168, %169 : vector<1x256xi32>
    %171 = arith.andi %166, %170 : vector<1x256xi1>
    %c1_i32_70 = arith.constant 1 : i32
    %172 = vector.broadcast %c1_i32_70 : i32 to vector<1x256xi32>
    %173 = arith.addi %5, %172 : vector<1x256xi32>
    %c16_i32_71 = arith.constant 16 : i32
    %174 = vector.broadcast %c16_i32_71 : i32 to vector<1x256xi32>
    %175 = arith.cmpi slt, %173, %174 : vector<1x256xi32>
    %176 = arith.andi %171, %175 : vector<1x256xi1>
    %c0_i32_72 = arith.constant 0 : i32
    %177 = tpu.memref_slice %arg2[%arg0, %c0_i32_72, %1] : memref<2x16x512xbf16, #tpu.memory_space<any>> -> memref<1x16x512xbf16, #tpu.memory_space<any>>
    %178 = tpu.memref_squeeze %177 : memref<1x16x512xbf16, #tpu.memory_space<any>> -> memref<16x512xbf16, #tpu.memory_space<any>>
    tpu.wait_dma2 semaphore(%arg9 : memref<!tpu.dma_semaphore, #tpu.memory_space<semaphore_mem>>) src(%178 : memref<16x512xbf16, #tpu.memory_space<any>>) dst(%arg8 : memref<16x512xbf16, #tpu.memory_space<vmem>>)
    %c0_73 = arith.constant 0 : index
    %c0_74 = arith.constant 0 : index
    %179 = vector.load %arg8[%c0_73, %c0_74] : memref<16x512xbf16, #tpu.memory_space<vmem>>, vector<16x512xbf16>
    %180 = vector.extract_strided_slice %179 {offsets = [0, 111], sizes = [16, 256], strides = [1, 1]} : vector<16x512xbf16> to vector<16x256xbf16>
    %c0_i32_75 = arith.constant 0 : i32
    %181 = arith.sitofp %c0_i32_75 : i32 to bf16
    %182 = vector.shape_cast %24 : vector<1x256xi1> to vector<1x256xi1>
    %183 = vector.broadcast %182 : vector<1x256xi1> to vector<16x256xi1>
    %184 = vector.broadcast %181 : bf16 to vector<16x256xbf16>
    %185 = arith.select %183, %180, %184 : vector<16x256xi1>, vector<16x256xbf16>
    %186 = vector.extract_strided_slice %179 {offsets = [0, 112], sizes = [16, 256], strides = [1, 1]} : vector<16x512xbf16> to vector<16x256xbf16>
    %c0_i32_76 = arith.constant 0 : i32
    %187 = arith.sitofp %c0_i32_76 : i32 to bf16
    %188 = vector.shape_cast %43 : vector<1x256xi1> to vector<1x256xi1>
    %189 = vector.broadcast %188 : vector<1x256xi1> to vector<16x256xi1>
    %190 = vector.broadcast %187 : bf16 to vector<16x256xbf16>
    %191 = arith.select %189, %186, %190 : vector<16x256xi1>, vector<16x256xbf16>
    %192 = vector.extract_strided_slice %179 {offsets = [0, 113], sizes = [16, 256], strides = [1, 1]} : vector<16x512xbf16> to vector<16x256xbf16>
    %c0_i32_77 = arith.constant 0 : i32
    %193 = arith.sitofp %c0_i32_77 : i32 to bf16
    %194 = vector.shape_cast %62 : vector<1x256xi1> to vector<1x256xi1>
    %195 = vector.broadcast %194 : vector<1x256xi1> to vector<16x256xi1>
    %196 = vector.broadcast %193 : bf16 to vector<16x256xbf16>
    %197 = arith.select %195, %192, %196 : vector<16x256xi1>, vector<16x256xbf16>
    %198 = vector.extract_strided_slice %179 {offsets = [0, 127], sizes = [16, 256], strides = [1, 1]} : vector<16x512xbf16> to vector<16x256xbf16>
    %c0_i32_78 = arith.constant 0 : i32
    %199 = arith.sitofp %c0_i32_78 : i32 to bf16
    %200 = vector.shape_cast %81 : vector<1x256xi1> to vector<1x256xi1>
    %201 = vector.broadcast %200 : vector<1x256xi1> to vector<16x256xi1>
    %202 = vector.broadcast %199 : bf16 to vector<16x256xbf16>
    %203 = arith.select %201, %198, %202 : vector<16x256xi1>, vector<16x256xbf16>
    %204 = vector.extract_strided_slice %179 {offsets = [0, 128], sizes = [16, 256], strides = [1, 1]} : vector<16x512xbf16> to vector<16x256xbf16>
    %c0_i32_79 = arith.constant 0 : i32
    %205 = arith.sitofp %c0_i32_79 : i32 to bf16
    %206 = vector.shape_cast %100 : vector<1x256xi1> to vector<1x256xi1>
    %207 = vector.broadcast %206 : vector<1x256xi1> to vector<16x256xi1>
    %208 = vector.broadcast %205 : bf16 to vector<16x256xbf16>
    %209 = arith.select %207, %204, %208 : vector<16x256xi1>, vector<16x256xbf16>
    %210 = vector.extract_strided_slice %179 {offsets = [0, 129], sizes = [16, 256], strides = [1, 1]} : vector<16x512xbf16> to vector<16x256xbf16>
    %c0_i32_80 = arith.constant 0 : i32
    %211 = arith.sitofp %c0_i32_80 : i32 to bf16
    %212 = vector.shape_cast %119 : vector<1x256xi1> to vector<1x256xi1>
    %213 = vector.broadcast %212 : vector<1x256xi1> to vector<16x256xi1>
    %214 = vector.broadcast %211 : bf16 to vector<16x256xbf16>
    %215 = arith.select %213, %210, %214 : vector<16x256xi1>, vector<16x256xbf16>
    %216 = vector.extract_strided_slice %179 {offsets = [0, 143], sizes = [16, 256], strides = [1, 1]} : vector<16x512xbf16> to vector<16x256xbf16>
    %c0_i32_81 = arith.constant 0 : i32
    %217 = arith.sitofp %c0_i32_81 : i32 to bf16
    %218 = vector.shape_cast %138 : vector<1x256xi1> to vector<1x256xi1>
    %219 = vector.broadcast %218 : vector<1x256xi1> to vector<16x256xi1>
    %220 = vector.broadcast %217 : bf16 to vector<16x256xbf16>
    %221 = arith.select %219, %216, %220 : vector<16x256xi1>, vector<16x256xbf16>
    %222 = vector.extract_strided_slice %179 {offsets = [0, 144], sizes = [16, 256], strides = [1, 1]} : vector<16x512xbf16> to vector<16x256xbf16>
    %c0_i32_82 = arith.constant 0 : i32
    %223 = arith.sitofp %c0_i32_82 : i32 to bf16
    %224 = vector.shape_cast %157 : vector<1x256xi1> to vector<1x256xi1>
    %225 = vector.broadcast %224 : vector<1x256xi1> to vector<16x256xi1>
    %226 = vector.broadcast %223 : bf16 to vector<16x256xbf16>
    %227 = arith.select %225, %222, %226 : vector<16x256xi1>, vector<16x256xbf16>
    %228 = vector.extract_strided_slice %179 {offsets = [0, 145], sizes = [16, 256], strides = [1, 1]} : vector<16x512xbf16> to vector<16x256xbf16>
    %c0_i32_83 = arith.constant 0 : i32
    %229 = arith.sitofp %c0_i32_83 : i32 to bf16
    %230 = vector.shape_cast %176 : vector<1x256xi1> to vector<1x256xi1>
    %231 = vector.broadcast %230 : vector<1x256xi1> to vector<16x256xi1>
    %232 = vector.broadcast %229 : bf16 to vector<16x256xbf16>
    %233 = arith.select %231, %228, %232 : vector<16x256xi1>, vector<16x256xbf16>
    %234 = tpu.concatenate %185, %191, %197, %203, %209, %215, %221, %227, %233 in 0 : vector<16x256xbf16>, vector<16x256xbf16>, vector<16x256xbf16>, vector<16x256xbf16>, vector<16x256xbf16>, vector<16x256xbf16>, vector<16x256xbf16>, vector<16x256xbf16>, vector<16x256xbf16> -> vector<144x256xbf16>
    %c0_84 = arith.constant 0 : index
    %c0_85 = arith.constant 0 : index
    %235 = vector.load %arg5[%c0_84, %c0_85] : memref<4x144xbf16, #tpu.memory_space<vmem>>, vector<4x144xbf16>
    %cst = arith.constant dense<0.000000e+00> : vector<4x256xf32>
    %236 = tpu.matmul %235, %234, %cst {dimension_numbers = #tpu.dot_dimension_numbers<[1], [0], [0], [1], [0, 0, 1, 1], [], []>} : vector<4x144xbf16>, vector<144x256xbf16>, vector<4x256xf32> -> vector<4x256xf32>
    %c0_86 = arith.constant 0 : index
    %c0_87 = arith.constant 0 : index
    %237 = vector.load %arg6[%c0_86, %c0_87] : memref<4x1xf32, #tpu.memory_space<vmem>>, vector<4x1xf32>
    %238 = vector.broadcast %237 : vector<4x1xf32> to vector<4x256xf32>
    %239 = arith.addf %236, %238 : vector<4x256xf32>
    %240 = arith.negf %239 : vector<4x256xf32>
    %241 = math.exp %240 : vector<4x256xf32>
    %cst_88 = arith.constant 1.000000e+00 : f32
    %242 = vector.broadcast %cst_88 : f32 to vector<4x256xf32>
    %243 = arith.addf %242, %241 : vector<4x256xf32>
    %244 = arith.divf %242, %243 : vector<4x256xf32>
    %245 = arith.mulf %239, %244 : vector<4x256xf32>
    %246 = arith.truncf %245 : vector<4x256xf32> to vector<4x256xbf16>
    %c0_89 = arith.constant 0 : index
    %c0_90 = arith.constant 0 : index
    %c0_91 = arith.constant 0 : index
    %247 = vector.load %arg7[%c0_89, %c0_90, %c0_91] : memref<1x4x256xbf16, #tpu.memory_space<vmem>>, vector<1x4x256xbf16>
    %248 = vector.shape_cast %247 : vector<1x4x256xbf16> to vector<4x256xbf16>
    %249 = vector.shape_cast %246 : vector<4x256xbf16> to vector<1x4x256xbf16>
    tpu.vector_store %arg7[%c0_89, %c0_90, %c0_91], %249 {strides = array<i32>} : memref<1x4x256xbf16, #tpu.memory_space<vmem>>, vector<1x4x256xbf16>,
    return
  }
  func.func @transform_1(%arg0: i32, %arg1: i32) -> (i32, i32) {
    %c0_i32 = arith.constant 0 : i32
    %c0_i32_0 = arith.constant 0 : i32
    return %c0_i32, %arg1 : i32, i32
  }
  func.func @transform_2(%arg0: i32, %arg1: i32) -> (i32, i32) {
    %c0_i32 = arith.constant 0 : i32
    %c0_i32_0 = arith.constant 0 : i32
    return %c0_i32, %arg1 : i32, i32
  }
  func.func @transform_3(%arg0: i32, %arg1: i32) -> (i32, i32) {
    %c0_i32 = arith.constant 0 : i32
    %c0_i32_0 = arith.constant 0 : i32
    %c0_i32_1 = arith.constant 0 : i32
    return %c0_i32, %c0_i32_0 : i32, i32
  }
  func.func @transform_4(%arg0: i32, %arg1: i32) -> (i32, i32) {
    %c0_i32 = arith.constant 0 : i32
    %c0_i32_0 = arith.constant 0 : i32
    %c0_i32_1 = arith.constant 0 : i32
    return %c0_i32, %c0_i32_0 : i32, i32
  }
  func.func @transform_5(%arg0: i32, %arg1: i32) -> (i32, i32, i32) {
    %c0_i32 = arith.constant 0 : i32
    %c0_i32_0 = arith.constant 0 : i32
    return %arg0, %c0_i32, %arg1 : i32, i32, i32
  }
}

</mosaic_0001>

<llo_original>
// kernel: csp_forward.4
$region0: #{csp_forward.4}
  #allocation0 [shape = 'u32[]', space=smem, size = 0x4, offset = 0x4, fixed_abs, tag = 'smem constant byte address 0x4 - core index']
  #allocation1 [shape = 'u32[144,128]{1,0:T(1,128)}', space=vmem, size = 0x12000, scoped, tag = 'internal scratch']
  %s0 = inlined_call_operand.vmem [shape: bf16[2,4,256], index: 0, kind: input, shape index: {}]
  %s1 = inlined_call_operand.vmem [shape: bf16[4,4], index: 1, kind: input, shape index: {}]
  %s2 = inlined_call_operand.vmem [shape: f32[4,1], index: 2, kind: input, shape index: {}]
  %s3 = inlined_call_operand.vmem [shape: bf16[4,4], index: 3, kind: input, shape index: {}]
  %s4 = inlined_call_operand.vmem [shape: f32[4,1], index: 4, kind: input, shape index: {}]
  %s5 = inlined_call_operand.vmem [shape: bf16[2,4,256], index: 5, kind: output, shape index: {0}]
  %s6 = inlined_call_operand.vmem [shape: bf16[2,4,256], index: 6, kind: output, shape index: {1}]
  %7 = xla_tuple %s5, %s6
  %s8 = sld [smem:[#allocation0]]
  $region61: #{csp_forward.4} parent=0
    _
  %s10 = ssub.s32 1, %s8
  %s11 = scalar_select 0, %s10, %s8
  loop: start=0, step=1, limit=4
  $region2: #{csp_forward.4} parent=0 // loop_pre_header
    _
  $region3: #{csp_forward.4} parent=0 // loop_header
    %s13 = sphi 0, %s17
    %p14 = scmp.ge.s32.totalorder %s13, 4
    %s20 = sphi 0, %s32
    %s21 = sphi 0, %s28
    %s22 = sphi 0, %s20
    %s23 = sphi 0, %s21
    %s24 = sphi 0, %s22
    %s25 = sphi 0, %s23
    %s37 = sphi 0, %s39
    %s40 = sphi 0, %s37
    %s41 = sphi 0, %s40
    %s57 = sphi 0, %s41
    %s61 = sphi 0, %s61
    %s63 = sphi 0, %s61
    %s64 = sphi 0, %s63
    %s78 = sphi 0, %s64
    %s82 = sphi 0, %s82
    %s84 = sphi 0, %s82
    %s85 = sphi 0, %s84
    %s99 = sphi 0, %s85
    %s103 = sphi 0, %s103
    %s105 = sphi 0, %s103
    %s106 = sphi 0, %s105
    %s120 = sphi 0, %s106
    %s124 = sphi 0, %s124
    %s126 = sphi 0, %s124
    %s127 = sphi 0, %s126
    %s141 = sphi 0, %s127
    %s149 = sphi 0, %s151
    %s152 = sphi 0, %s149
    %s153 = sphi 0, %s152
    %s169 = sphi 0, %s153
    %s177 = sphi 0, %s179
    %s180 = sphi 0, %s177
    %s181 = sphi 0, %s180
    %s197 = sphi 0, %s181
  $region4: #{csp_forward.4} parent=0 // loop_header_branch
    %16 = sbr.rel (%p14) target = $region8
  $region5: #{csp_forward.4} parent=0 // loop_body
    %s18 = ssub.s32 %s13, 1
    %s19 = ssub.s32 %s13, 2
    %s26 = sadd.s32 1, %s21
    %p27 = scmp.ge.s32.totalorder %s26, 1
    %s28 = scalar_select %p27, 0, %s26
    %s29 = sadd.s32 1, %s20
    %s30 = scalar_select %p27, %s29, %s20
    %p31 = scmp.ge.s32.totalorder %s30, 2
    %s32 = scalar_select %p31, 0, %s30
    %s33 = ssub.s32 %s20, %s32
    %s34 = ssub.s32 %s21, %s28
    %s35 = sor.u32 %s33, %s34
    %p36 = scmp.eq.s32.totalorder %s35, 0
    %s38 = sadd.s32 %s37, 1
    %s39 = scalar_select %p36, %s37, %s38
    %p42 = pneg %p36
    %p43 = scmp.eq.s32.totalorder %s13, 1
    %p44 = por %p42, %p43
    %p45 = scmp.ne.s32.totalorder %s37, %s40
    %p46 = scmp.eq.s32.totalorder %s13, 0
    %p47 = por %p45, %p46
    %p48 = scmp.ne.s32.totalorder %s37, %s40
    %p49 = scmp.eq.s32.totalorder %s18, 1
    %p50 = por %p48, %p49
    %p51 = scmp.ne.s32.totalorder %s40, %s41
    %p52 = scmp.eq.s32.totalorder %s18, 0
    %p53 = por %p51, %p52
    %p54 = scmp.ne.s32.totalorder %s40, %s41
    %p55 = scmp.eq.s32.totalorder %s19, 1
    %p56 = por %p54, %p55
    %p58 = scmp.ne.s32.totalorder %s41, %s57
    %p59 = scmp.eq.s32.totalorder %s19, 0
    %p60 = por %p58, %p59
    %s62 = sadd.s32 %s61, 1
    %p65 = scmp.eq.s32.totalorder %s13, 1
    %p66 = scmp.ne.s32.totalorder %s61, %s63
    %p67 = scmp.eq.s32.totalorder %s13, 0
    %p68 = por %p66, %p67
    %p69 = scmp.ne.s32.totalorder %s61, %s63
    %p70 = scmp.eq.s32.totalorder %s18, 1
    %p71 = por %p69, %p70
    %p72 = scmp.ne.s32.totalorder %s63, %s64
    %p73 = scmp.eq.s32.totalorder %s18, 0
    %p74 = por %p72, %p73
    %p75 = scmp.ne.s32.totalorder %s63, %s64
    %p76 = scmp.eq.s32.totalorder %s19, 1
    %p77 = por %p75, %p76
    %p79 = scmp.ne.s32.totalorder %s64, %s78
    %p80 = scmp.eq.s32.totalorder %s19, 0
    %p81 = por %p79, %p80
    %s83 = sadd.s32 %s82, 1
    %p86 = scmp.eq.s32.totalorder %s13, 1
    %p87 = scmp.ne.s32.totalorder %s82, %s84
    %p88 = scmp.eq.s32.totalorder %s13, 0
    %p89 = por %p87, %p88
    %p90 = scmp.ne.s32.totalorder %s82, %s84
    %p91 = scmp.eq.s32.totalorder %s18, 1
    %p92 = por %p90, %p91
    %p93 = scmp.ne.s32.totalorder %s84, %s85
    %p94 = scmp.eq.s32.totalorder %s18, 0
    %p95 = por %p93, %p94
    %p96 = scmp.ne.s32.totalorder %s84, %s85
    %p97 = scmp.eq.s32.totalorder %s19, 1
    %p98 = por %p96, %p97
    %p100 = scmp.ne.s32.totalorder %s85, %s99
    %p101 = scmp.eq.s32.totalorder %s19, 0
    %p102 = por %p100, %p101
    %s104 = sadd.s32 %s103, 1
    %p107 = scmp.eq.s32.totalorder %s13, 1
    %p108 = scmp.ne.s32.totalorder %s103, %s105
    %p109 = scmp.eq.s32.totalorder %s13, 0
    %p110 = por %p108, %p109
    %p111 = scmp.ne.s32.totalorder %s103, %s105
    %p112 = scmp.eq.s32.totalorder %s18, 1
    %p113 = por %p111, %p112
    %p114 = scmp.ne.s32.totalorder %s105, %s106
    %p115 = scmp.eq.s32.totalorder %s18, 0
    %p116 = por %p114, %p115
    %p117 = scmp.ne.s32.totalorder %s105, %s106
    %p118 = scmp.eq.s32.totalorder %s19, 1
    %p119 = por %p117, %p118
    %p121 = scmp.ne.s32.totalorder %s106, %s120
    %p122 = scmp.eq.s32.totalorder %s19, 0
    %p123 = por %p121, %p122
    %s125 = sadd.s32 %s124, 1
    %p128 = scmp.eq.s32.totalorder %s13, 1
    %p129 = scmp.ne.s32.totalorder %s124, %s126
    %p130 = scmp.eq.s32.totalorder %s13, 0
    %p131 = por %p129, %p130
    %p132 = scmp.ne.s32.totalorder %s124, %s126
    %p133 = scmp.eq.s32.totalorder %s18, 1
    %p134 = por %p132, %p133
    %p135 = scmp.ne.s32.totalorder %s126, %s127
    %p136 = scmp.eq.s32.totalorder %s18, 0
    %p137 = por %p135, %p136
    %p138 = scmp.ne.s32.totalorder %s126, %s127
    %p139 = scmp.eq.s32.totalorder %s19, 1
    %p140 = por %p138, %p139
    %p142 = scmp.ne.s32.totalorder %s127, %s141
    %p143 = scmp.eq.s32.totalorder %s19, 0
    %p144 = por %p142, %p143
    %s145 = ssub.s32 %s20, %s32
    %s146 = ssub.s32 %s21, %s28
    %s147 = sor.u32 %s145, %s146
    %p148 = scmp.eq.s32.totalorder %s147, 0
    %s150 = sadd.s32 %s149, 1
    %s151 = scalar_select %p148, %s149, %s150
    %p154 = pneg %p148
    %p155 = scmp.eq.s32.totalorder %s13, 1
    %p156 = por %p154, %p155
    %p157 = scmp.ne.s32.totalorder %s149, %s152
    %p158 = scmp.eq.s32.totalorder %s13, 0
    %p159 = por %p157, %p158
    %p160 = scmp.ne.s32.totalorder %s149, %s152
    %p161 = scmp.eq.s32.totalorder %s18, 1
    %p162 = por %p160, %p161
    %p163 = scmp.ne.s32.totalorder %s152, %s153
    %p164 = scmp.eq.s32.totalorder %s18, 0
    %p165 = por %p163, %p164
    %p166 = scmp.ne.s32.totalorder %s152, %s153
    %p167 = scmp.eq.s32.totalorder %s19, 1
    %p168 = por %p166, %p167
    %p170 = scmp.ne.s32.totalorder %s153, %s169
    %p171 = scmp.eq.s32.totalorder %s19, 0
    %p172 = por %p170, %p171
    %s173 = ssub.s32 %s20, %s32
    %s174 = ssub.s32 %s21, %s28
    %s175 = sor.u32 %s173, %s174
    %p176 = scmp.eq.s32.totalorder %s175, 0
    %s178 = sadd.s32 %s177, 1
    %s179 = scalar_select %p176, %s177, %s178
    %p182 = pneg %p176
    %p183 = scmp.eq.s32.totalorder %s13, 1
    %p184 = por %p182, %p183
    %p185 = scmp.ne.s32.totalorder %s177, %s180
    %p186 = scmp.eq.s32.totalorder %s13, 0
    %p187 = por %p185, %p186
    %p188 = scmp.ne.s32.totalorder %s177, %s180
    %p189 = scmp.eq.s32.totalorder %s18, 1
    %p190 = por %p188, %p189
    %p191 = scmp.ne.s32.totalorder %s180, %s181
    %p192 = scmp.eq.s32.totalorder %s18, 0
    %p193 = por %p191, %p192
    %p194 = scmp.ne.s32.totalorder %s180, %s181
    %p195 = scmp.eq.s32.totalorder %s19, 1
    %p196 = por %p194, %p195
    %p198 = scmp.ne.s32.totalorder %s181, %s197
    %p199 = scmp.eq.s32.totalorder %s19, 0
    %p200 = por %p198, %p199
    %p201 = scmp.le.s32.totalorder 1, %s13
    %p202 = scmp.lt.s32.totalorder %s13, 3
    %p203 = pnand %p201, %p202
    %p204 = pneg %p203
    // Predicated region
    $region9: #{csp_forward.4} parent=5 // pred_check
      _
    $region10: #{csp_forward.4} parent=5 // pred_check_branch
      %206 = sbr.rel (%p203) target = $region12
    $region11: #{csp_forward.4} parent=5 // pred_region
      %s207 = ssub.s32 %s13, 1
      // Predicated region
      $region13: #{csp_forward.4} parent=11 // pred_check
        %p208 = pneg %p74
      $region14: #{csp_forward.4} parent=11 // pred_check_branch
        %210 = sbr.rel (%p208) target = $region16
      $region15: #{csp_forward.4} parent=11 // pred_region
        _
      $region16: #{csp_forward.4} parent=11 // pred_fallthru
        _
      // Predicated region
      $region17: #{csp_forward.4} parent=11 // pred_check
        %p211 = pneg %p95
      $region18: #{csp_forward.4} parent=11 // pred_check_branch
        %213 = sbr.rel (%p211) target = $region20
      $region19: #{csp_forward.4} parent=11 // pred_region
        _
      $region20: #{csp_forward.4} parent=11 // pred_fallthru
        _
      // Predicated region
      $region21: #{csp_forward.4} parent=11 // pred_check
        %p214 = pneg %p116
      $region22: #{csp_forward.4} parent=11 // pred_check_branch
        %216 = sbr.rel (%p214) target = $region24
      $region23: #{csp_forward.4} parent=11 // pred_region
        _
      $region24: #{csp_forward.4} parent=11 // pred_fallthru
        _
      // Predicated region
      $region25: #{csp_forward.4} parent=11 // pred_check
        %p217 = pneg %p137
      $region26: #{csp_forward.4} parent=11 // pred_check_branch
        %219 = sbr.rel (%p217) target = $region28
      $region27: #{csp_forward.4} parent=11 // pred_region
        _
      $region28: #{csp_forward.4} parent=11 // pred_fallthru
        _
    $region12: #{csp_forward.4} parent=5 // pred_fallthru
      _
    %p220 = scmp.lt.s32.totalorder %s13, 2
    // Predicated region
    $region29: #{csp_forward.4} parent=5 // pred_check
      %p221 = pneg %p220
    $region30: #{csp_forward.4} parent=5 // pred_check_branch
      %223 = sbr.rel (%p221) target = $region32
    $region31: #{csp_forward.4} parent=5 // pred_region
      // Predicated region
      $region33: #{csp_forward.4} parent=31 // pred_check
        %p224 = pneg %p47
      $region34: #{csp_forward.4} parent=31 // pred_check_branch
        %226 = sbr.rel (%p224) target = $region36
      $region35: #{csp_forward.4} parent=31 // pred_region
        %s227 = smul.u32 2, %s21
        %p228 = scmp.lt.s32.totalorder %s20, 1
        %s229 = scalar_select %p228, %s20, 1
        %p230 = scmp.lt.s32.totalorder %s227, 1
        %s231 = scalar_select %p230, %s227, 1
        %s232 = smul.addr %s229, 2
        %s233 = sadd.s32 %s231, %s232
        %s234 = smul.addr %s233, 2
        %s235 = scalar_lea.vmem %s0, %s234
        %s236 = smul.u32 2, %s21
      $region36: #{csp_forward.4} parent=31 // pred_fallthru
        _
    $region32: #{csp_forward.4} parent=5 // pred_fallthru
      _
    %p237 = scmp.le.s32.totalorder 1, %s13
    %p238 = scmp.lt.s32.totalorder %s13, 3
    %p239 = pnand %p237, %p238
    %p240 = pneg %p239
    // Predicated region
    $region37: #{csp_forward.4} parent=5 // pred_check
      _
    $region38: #{csp_forward.4} parent=5 // pred_check_branch
      %242 = sbr.rel (%p239) target = $region40
    $region39: #{csp_forward.4} parent=5 // pred_region
      %s243 = ssub.s32 %s13, 1
      %s244 = smul.u32 2, %s23
      %p245 = scmp.lt.s32.totalorder %s22, 1
      %s246 = scalar_select %p245, %s22, 1
      %p247 = scmp.lt.s32.totalorder %s244, 1
      %s248 = scalar_select %p247, %s244, 1
      %s249 = smul.addr %s246, 2
      %s250 = sadd.s32 %s248, %s249
      %s251 = smul.addr %s250, 2
      %s252 = scalar_lea.vmem %s0, %s251
      %p253 = pneg %p53
      %p254 = pneg %p50
      %p255 = pneg %p74
      %p256 = pneg %p71
      %p257 = pneg %p95
      %p258 = pneg %p92
      %p259 = pneg %p116
      %p260 = pneg %p113
      %p261 = pneg %p137
      %p262 = pneg %p134
      %p263 = pneg %p165
      %p264 = pneg %p162
      %s265 = smul.u32 2, %s23
      %p266 = scmp.lt.s32.totalorder %s22, 1
      %s267 = scalar_select %p266, %s22, 1
      %p268 = scmp.lt.s32.totalorder %s265, 1
      %s269 = scalar_select %p268, %s265, 1
      %s270 = smul.addr %s267, 2
      %s271 = sadd.s32 %s269, %s270
      %s272 = smul.addr %s271, 2
      %s273 = scalar_lea.vmem %s5, %s272
      %p274 = pneg %p193
      %p275 = pneg %p190
      %s276 = smul.u32 2, %s23
      %p277 = scmp.lt.s32.totalorder %s22, 1
      %s278 = scalar_select %p277, %s22, 1
      %p279 = scmp.lt.s32.totalorder %s276, 1
      %s280 = scalar_select %p279, %s276, 1
      %s281 = smul.addr %s278, 2
      %s282 = sadd.s32 %s280, %s281
      %s283 = smul.addr %s282, 2
      %s284 = scalar_lea.vmem %s6, %s283
      %s285 = smul.u32 2, %s23
      %p286 = scmp.lt.s32.totalorder %s22, 1
      %s287 = scalar_select %p286, %s22, 1
      %p288 = scmp.lt.s32.totalorder %s285, 1
      %s289 = scalar_select %p288, %s285, 1
      %s290 = smul.addr %s287, 2
      %s291 = sadd.s32 %s289, %s290
      %s292 = smul.addr %s291, 2
      %s293 = scalar_lea.vmem %s0, %s292
      %s294 = smul.u32 2, %s23
      %s295 = smul.u32 2, %s23
      %p296 = scmp.lt.s32.totalorder %s22, 1
      %s297 = scalar_select %p296, %s22, 1
      %p298 = scmp.lt.s32.totalorder %s295, 1
      %s299 = scalar_select %p298, %s295, 1
      %s300 = smul.addr %s297, 2
      %s301 = sadd.s32 %s299, %s300
      %s302 = smul.addr %s301, 2
      %s303 = scalar_lea.vmem %s5, %s302
      %s304 = smul.u32 2, %s23
      %s305 = smul.u32 2, %s23
      %p306 = scmp.lt.s32.totalorder %s22, 1
      %s307 = scalar_select %p306, %s22, 1
      %p308 = scmp.lt.s32.totalorder %s305, 1
      %s309 = scalar_select %p308, %s305, 1
      %s310 = smul.addr %s307, 2
      %s311 = sadd.s32 %s309, %s310
      %s312 = smul.addr %s311, 2
      %s313 = scalar_lea.vmem %s6, %s312
      %s314 = smul.u32 2, %s23
      %v316 = vld [vmem:[%s293] sm:$0xf]
      %v317 = vld [vmem:[%s1] sm:$0x3]
      %v318 = vld [vmem:[%s2] sm:$0xf]
      %320 = vset.pattern.permute.xlu0 0
      %321 = vperm.xlu0 %320, %v318
      %v322 = vpop.permute.xlu0 %321
      %v326 = vunpack.c.l.s4 1983009808
      %v327 = vunpack.c.0.s8 %v326
      %v328 = vlaneseq
      %v329 = vshrl.u32 %v328, 7
      %v330 = vsub.s32 %v327, %v329
      %v331 = vrot.slane %v316, %v330
      %v332 = vcombine.high %v331, %v331
      %vm333 = vcmask 31744
      %v335 = vsel %vm333, %v317, 0
      %vm337 = vcmask 1041408
      %v339 = vsel %vm337, %v331, 0
      %v342 = vsel %vm337, %v332, 0
      %344 = vmatprep.subr.bf16.mxu0 0
      %345 = vmatpush1.bf16.msra.mxu0 0
      %346 = vmatprep.subr.bf16.mxu0 0
      %347 = vmatpush1.bf16.msra.mxu0 0
      %348 = vmatprep.subr.bf16.mxu0 0
      %349 = vmatpush1.bf16.msra.mxu0 0
      %350 = vmatprep.subr.bf16.mxu0 0
      %351 = vmatpush1.bf16.msra.mxu0 0
      %352 = vmatprep.subr.bf16.mxu0 0
      %353 = vmatpush1.bf16.msra.mxu0 0
      %354 = vmatprep.subr.bf16.mxu0 0
      %355 = vmatpush1.bf16.msra.mxu0 0
      %356 = vmatprep.subr.bf16.mxu0 0
      %357 = vmatpush1.bf16.msra.mxu0 0
      %358 = vmatprep.subr.bf16.mxu0 %v342
      %359 = vmatpush1.bf16.msra.mxu0 %v339
      %360 = vmatprep.subr.bf16.mxu0 0
      %361 = vmatpush2.bf16.msra.mxu0 0
      %362 = vmatprep.subr.bf16.mxu0 0
      %363 = vmatpush2.bf16.msra.mxu0 0
      %364 = vmatprep.subr.bf16.mxu0 0
      %365 = vmatpush2.bf16.msra.mxu0 0
      %366 = vmatprep.subr.bf16.mxu0 0
      %367 = vmatpush2.bf16.msra.mxu0 0
      %368 = vmatprep.subr.bf16.mxu0 0
      %369 = vmatpush2.bf16.msra.mxu0 0
      %370 = vmatprep.subr.bf16.mxu0 0
      %371 = vmatpush2.bf16.msra.mxu0 0
      %372 = vmatprep.subr.bf16.mxu0 0
      %373 = vmatpush2.bf16.msra.mxu0 0
      %374 = vmatprep.subr.bf16.mxu0 0
      %375 = vmatpush2.bf16.msra.mxu0 0
      %376 = vmatprep.mubr.bf16.mxu0 0
      %377 = vmatmul.mubr.bf16.gmra.mxu0 %v335
      %v378 = vpop.f32.mrf.mxu0
      %v379 = vadd.f32 %v322, %v378
      %v380 = vpop.f32.mrf.mxu0
      %v381 = vadd.f32 %v322, %v380
      %v382 = vpop.f32.mrf.mxu0
      %v383 = vpop.f32.mrf.mxu0
      %384 = vdwg.mxu0
      %v385 = vxor.u32 %v379, 2147483648
      %v386 = vxor.u32 %v381, 2147483648
      %v387 = vmul.f32 %v385, 1.442695
      %v388 = vpow.pop %v387
      %v389 = vmul.f32 %v386, 1.442695
      %v390 = vpow.pop %v389
      %v391 = vadd.f32 %v388, 1.0
      %v392 = vadd.f32 %v390, 1.0
      %v393 = vrcp.pop %v391
      %v394 = vmul.f32 1.0, %v393
      %v395 = vrcp.pop %v392
      %v396 = vmul.f32 1.0, %v395
      %v397 = vmul.f32 %v379, %v394
      %v398 = vmul.f32 %v381, %v396
      %v399 = vpack.c.bf16 %v397, %v397
      %v400 = vpack.c.bf16 %v398, %v398
      %v403 = vcombine.low %v399, %v400
      %v405 = vunpack.c.l.s4 1983009808
      %v406 = vunpack.c.0.s8 %v405
      %v407 = vlaneseq
      %v408 = vshrl.u32 %v407, 7
      %v409 = vsub.s32 %v406, %v408
      %v410 = vrot.slane %v403, %v409
      %412 = vst [vmem:[%s303] sm:$0xf] %v410
      %v413 = vld [vmem:[%s3] sm:$0x3]
      %v414 = vld [vmem:[%s4] sm:$0xf]
      %416 = vset.pattern.permute.xlu0 0
      %417 = vperm.xlu0 %416, %v414
      %v418 = vpop.permute.xlu0 %417
      %v421 = vsel %vm333, %v413, 0
      %423 = vmatprep.subr.bf16.mxu0 0
      %424 = vmatpush1.bf16.msra.mxu0 0
      %425 = vmatprep.subr.bf16.mxu0 0
      %426 = vmatpush1.bf16.msra.mxu0 0
      %427 = vmatprep.subr.bf16.mxu0 0
      %428 = vmatpush1.bf16.msra.mxu0 0
      %429 = vmatprep.subr.bf16.mxu0 0
      %430 = vmatpush1.bf16.msra.mxu0 0
      %431 = vmatprep.subr.bf16.mxu0 0
      %432 = vmatpush1.bf16.msra.mxu0 0
      %433 = vmatprep.subr.bf16.mxu0 0
      %434 = vmatpush1.bf16.msra.mxu0 0
      %435 = vmatprep.subr.bf16.mxu0 0
      %436 = vmatpush1.bf16.msra.mxu0 0
      %437 = vmatprep.subr.bf16.mxu0 %v342
      %438 = vmatpush1.bf16.msra.mxu0 %v339
      %439 = vmatprep.subr.bf16.mxu0 0
      %440 = vmatpush2.bf16.msra.mxu0 0
      %441 = vmatprep.subr.bf16.mxu0 0
      %442 = vmatpush2.bf16.msra.mxu0 0
      %443 = vmatprep.subr.bf16.mxu0 0
      %444 = vmatpush2.bf16.msra.mxu0 0
      %445 = vmatprep.subr.bf16.mxu0 0
      %446 = vmatpush2.bf16.msra.mxu0 0
      %447 = vmatprep.subr.bf16.mxu0 0
      %448 = vmatpush2.bf16.msra.mxu0 0
      %449 = vmatprep.subr.bf16.mxu0 0
      %450 = vmatpush2.bf16.msra.mxu0 0
      %451 = vmatprep.subr.bf16.mxu0 0
      %452 = vmatpush2.bf16.msra.mxu0 0
      %453 = vmatprep.subr.bf16.mxu0 0
      %454 = vmatpush2.bf16.msra.mxu0 0
      %455 = vmatprep.mubr.bf16.mxu0 0
      %456 = vmatmul.mubr.bf16.gmra.mxu0 %v421
      %v457 = vpop.f32.mrf.mxu0
      %v458 = vadd.f32 %v418, %v457
      %v459 = vpop.f32.mrf.mxu0
      %v460 = vadd.f32 %v418, %v459
      %v461 = vpop.f32.mrf.mxu0
      %v462 = vpop.f32.mrf.mxu0
      %463 = vdwg.mxu0
      %v464 = vxor.u32 %v458, 2147483648
      %v465 = vxor.u32 %v460, 2147483648
      %v466 = vmul.f32 %v464, 1.442695
      %v467 = vpow.pop %v466
      %v468 = vmul.f32 %v465, 1.442695
      %v469 = vpow.pop %v468
      %v470 = vadd.f32 %v467, 1.0
      %v471 = vadd.f32 %v469, 1.0
      %v472 = vrcp.pop %v470
      %v473 = vmul.f32 1.0, %v472
      %v474 = vrcp.pop %v471
      %v475 = vmul.f32 1.0, %v474
      %v476 = vmul.f32 %v458, %v473
      %v477 = vmul.f32 %v460, %v475
      %v478 = vpack.c.bf16 %v476, %v476
      %v479 = vpack.c.bf16 %v477, %v477
      %v482 = vcombine.low %v478, %v479
      %v484 = vunpack.c.l.s4 1983009808
      %v485 = vunpack.c.0.s8 %v484
      %v486 = vlaneseq
      %v487 = vshrl.u32 %v486, 7
      %v488 = vsub.s32 %v485, %v487
      %v489 = vrot.slane %v482, %v488
      %491 = vst [vmem:[%s313] sm:$0xf] %v489
      %s492 = smul.u32 2, %s23
      %p493 = scmp.lt.s32.totalorder %s22, 1
      %s494 = scalar_select %p493, %s22, 1
      %p495 = scmp.lt.s32.totalorder %s492, 1
      %s496 = scalar_select %p495, %s492, 1
      %s497 = smul.addr %s494, 2
      %s498 = sadd.s32 %s496, %s497
      %s499 = smul.addr %s498, 2
      %s500 = scalar_lea.vmem %s5, %s499
      %s501 = smul.u32 2, %s23
      %p502 = scmp.lt.s32.totalorder %s22, 1
      %s503 = scalar_select %p502, %s22, 1
      %p504 = scmp.lt.s32.totalorder %s501, 1
      %s505 = scalar_select %p504, %s501, 1
      %s506 = smul.addr %s503, 2
      %s507 = sadd.s32 %s505, %s506
      %s508 = smul.addr %s507, 2
      %s509 = scalar_lea.vmem %s6, %s508
      // Predicated region
      $region41: #{csp_forward.4} parent=39 // pred_check
        %p510 = pneg %p162
      $region42: #{csp_forward.4} parent=39 // pred_check_branch
        %512 = sbr.rel (%p510) target = $region44
      $region43: #{csp_forward.4} parent=39 // pred_region
        %s513 = smul.u32 2, %s23
      $region44: #{csp_forward.4} parent=39 // pred_fallthru
        _
      // Predicated region
      $region45: #{csp_forward.4} parent=39 // pred_check
        %p514 = pneg %p190
      $region46: #{csp_forward.4} parent=39 // pred_check_branch
        %516 = sbr.rel (%p514) target = $region48
      $region47: #{csp_forward.4} parent=39 // pred_region
        %s517 = smul.u32 2, %s23
      $region48: #{csp_forward.4} parent=39 // pred_fallthru
        _
    $region40: #{csp_forward.4} parent=5 // pred_fallthru
      _
    %p518 = scmp.le.s32.totalorder 2, %s13
    // Predicated region
    $region49: #{csp_forward.4} parent=5 // pred_check
      %p519 = pneg %p518
    $region50: #{csp_forward.4} parent=5 // pred_check_branch
      %521 = sbr.rel (%p519) target = $region52
    $region51: #{csp_forward.4} parent=5 // pred_region
      %s522 = ssub.s32 %s13, 2
      // Predicated region
      $region53: #{csp_forward.4} parent=51 // pred_check
        %p523 = pneg %p168
      $region54: #{csp_forward.4} parent=51 // pred_check_branch
        %525 = sbr.rel (%p523) target = $region56
      $region55: #{csp_forward.4} parent=51 // pred_region
        %s526 = smul.u32 2, %s25
        %p527 = scmp.lt.s32.totalorder %s24, 1
        %s528 = scalar_select %p527, %s24, 1
        %p529 = scmp.lt.s32.totalorder %s526, 1
        %s530 = scalar_select %p529, %s526, 1
        %s531 = smul.addr %s528, 2
        %s532 = sadd.s32 %s530, %s531
        %s533 = smul.addr %s532, 2
        %s534 = scalar_lea.vmem %s5, %s533
      $region56: #{csp_forward.4} parent=51 // pred_fallthru
        _
      // Predicated region
      $region57: #{csp_forward.4} parent=51 // pred_check
        %p535 = pneg %p196
      $region58: #{csp_forward.4} parent=51 // pred_check_branch
        %537 = sbr.rel (%p535) target = $region60
      $region59: #{csp_forward.4} parent=51 // pred_region
        %s538 = smul.u32 2, %s25
        %p539 = scmp.lt.s32.totalorder %s24, 1
        %s540 = scalar_select %p539, %s24, 1
        %p541 = scmp.lt.s32.totalorder %s538, 1
        %s542 = scalar_select %p541, %s538, 1
        %s543 = smul.addr %s540, 2
        %s544 = sadd.s32 %s542, %s543
        %s545 = smul.addr %s544, 2
        %s546 = scalar_lea.vmem %s6, %s545
      $region60: #{csp_forward.4} parent=51 // pred_fallthru
        _
    $region52: #{csp_forward.4} parent=5 // pred_fallthru
      _
  $region6: #{csp_forward.4} parent=0 // loop_footer
    %s17 = sadd.s32 1, %s13
  $region7: #{csp_forward.4} parent=0 // loop_footer_branch
    %12 = sbr.rel target = $region3
  $region8: #{csp_forward.4} parent=0 // loop_exit
    _

// kernel: csp_forward.7
$region0: #{csp_forward.7}
  #allocation0 [shape = 'u32[]', space=smem, size = 0x4, offset = 0x4, fixed_abs, tag = 'smem constant byte address 0x4 - core index']
  #allocation1 [shape = 'u32[144,128]{1,0:T(1,128)}', space=vmem, size = 0x12000, scoped, tag = 'internal scratch']
  %s0 = inlined_call_operand.vmem [shape: bf16[2,4,256], index: 0, kind: input, shape index: {}]
  %s1 = inlined_call_operand.vmem [shape: bf16[2,4,256], index: 1, kind: input, shape index: {}]
  %s2 = inlined_call_operand.vmem [shape: bf16[2,4,256], index: 2, kind: input, shape index: {}]
  %s3 = inlined_call_operand.vmem [shape: bf16[8,4], index: 3, kind: input, shape index: {}]
  %s4 = inlined_call_operand.vmem [shape: bf16[8,4], index: 4, kind: input, shape index: {}]
  %s5 = inlined_call_operand.vmem [shape: bf16[8,4], index: 5, kind: input, shape index: {}]
  %s6 = inlined_call_operand.vmem [shape: f32[8,1], index: 6, kind: input, shape index: {}]
  %s7 = inlined_call_operand.vmem [shape: f32[2,8,256], index: 7, kind: output, shape index: {}]
  %s8 = sld [smem:[#allocation0]]
  $region61: #{csp_forward.7} parent=0
    _
  %s10 = ssub.s32 1, %s8
  %s11 = scalar_select 0, %s10, %s8
  loop: start=0, step=1, limit=4
  $region2: #{csp_forward.7} parent=0 // loop_pre_header
    _
  $region3: #{csp_forward.7} parent=0 // loop_header
    %s13 = sphi 0, %s17
    %p14 = scmp.ge.s32.totalorder %s13, 4
    %s20 = sphi 0, %s32
    %s21 = sphi 0, %s28
    %s22 = sphi 0, %s20
    %s23 = sphi 0, %s21
    %s24 = sphi 0, %s22
    %s25 = sphi 0, %s23
    %s37 = sphi 0, %s39
    %s40 = sphi 0, %s37
    %s41 = sphi 0, %s40
    %s57 = sphi 0, %s41
    %s65 = sphi 0, %s67
    %s68 = sphi 0, %s65
    %s69 = sphi 0, %s68
    %s85 = sphi 0, %s69
    %s93 = sphi 0, %s95
    %s96 = sphi 0, %s93
    %s97 = sphi 0, %s96
    %s113 = sphi 0, %s97
    %s117 = sphi 0, %s117
    %s119 = sphi 0, %s117
    %s120 = sphi 0, %s119
    %s134 = sphi 0, %s120
    %s138 = sphi 0, %s138
    %s140 = sphi 0, %s138
    %s141 = sphi 0, %s140
    %s155 = sphi 0, %s141
    %s159 = sphi 0, %s159
    %s161 = sphi 0, %s159
    %s162 = sphi 0, %s161
    %s176 = sphi 0, %s162
    %s180 = sphi 0, %s180
    %s182 = sphi 0, %s180
    %s183 = sphi 0, %s182
    %s197 = sphi 0, %s183
    %s205 = sphi 0, %s207
    %s208 = sphi 0, %s205
    %s209 = sphi 0, %s208
    %s225 = sphi 0, %s209
  $region4: #{csp_forward.7} parent=0 // loop_header_branch
    %16 = sbr.rel (%p14) target = $region8
  $region5: #{csp_forward.7} parent=0 // loop_body
    %s18 = ssub.s32 %s13, 1
    %s19 = ssub.s32 %s13, 2
    %s26 = sadd.s32 1, %s21
    %p27 = scmp.ge.s32.totalorder %s26, 1
    %s28 = scalar_select %p27, 0, %s26
    %s29 = sadd.s32 1, %s20
    %s30 = scalar_select %p27, %s29, %s20
    %p31 = scmp.ge.s32.totalorder %s30, 2
    %s32 = scalar_select %p31, 0, %s30
    %s33 = ssub.s32 %s20, %s32
    %s34 = ssub.s32 %s21, %s28
    %s35 = sor.u32 %s33, %s34
    %p36 = scmp.eq.s32.totalorder %s35, 0
    %s38 = sadd.s32 %s37, 1
    %s39 = scalar_select %p36, %s37, %s38
    %p42 = pneg %p36
    %p43 = scmp.eq.s32.totalorder %s13, 1
    %p44 = por %p42, %p43
    %p45 = scmp.ne.s32.totalorder %s37, %s40
    %p46 = scmp.eq.s32.totalorder %s13, 0
    %p47 = por %p45, %p46
    %p48 = scmp.ne.s32.totalorder %s37, %s40
    %p49 = scmp.eq.s32.totalorder %s18, 1
    %p50 = por %p48, %p49
    %p51 = scmp.ne.s32.totalorder %s40, %s41
    %p52 = scmp.eq.s32.totalorder %s18, 0
    %p53 = por %p51, %p52
    %p54 = scmp.ne.s32.totalorder %s40, %s41
    %p55 = scmp.eq.s32.totalorder %s19, 1
    %p56 = por %p54, %p55
    %p58 = scmp.ne.s32.totalorder %s41, %s57
    %p59 = scmp.eq.s32.totalorder %s19, 0
    %p60 = por %p58, %p59
    %s61 = ssub.s32 %s20, %s32
    %s62 = ssub.s32 %s21, %s28
    %s63 = sor.u32 %s61, %s62
    %p64 = scmp.eq.s32.totalorder %s63, 0
    %s66 = sadd.s32 %s65, 1
    %s67 = scalar_select %p64, %s65, %s66
    %p70 = pneg %p64
    %p71 = scmp.eq.s32.totalorder %s13, 1
    %p72 = por %p70, %p71
    %p73 = scmp.ne.s32.totalorder %s65, %s68
    %p74 = scmp.eq.s32.totalorder %s13, 0
    %p75 = por %p73, %p74
    %p76 = scmp.ne.s32.totalorder %s65, %s68
    %p77 = scmp.eq.s32.totalorder %s18, 1
    %p78 = por %p76, %p77
    %p79 = scmp.ne.s32.totalorder %s68, %s69
    %p80 = scmp.eq.s32.totalorder %s18, 0
    %p81 = por %p79, %p80
    %p82 = scmp.ne.s32.totalorder %s68, %s69
    %p83 = scmp.eq.s32.totalorder %s19, 1
    %p84 = por %p82, %p83
    %p86 = scmp.ne.s32.totalorder %s69, %s85
    %p87 = scmp.eq.s32.totalorder %s19, 0
    %p88 = por %p86, %p87
    %s89 = ssub.s32 %s20, %s32
    %s90 = ssub.s32 %s21, %s28
    %s91 = sor.u32 %s89, %s90
    %p92 = scmp.eq.s32.totalorder %s91, 0
    %s94 = sadd.s32 %s93, 1
    %s95 = scalar_select %p92, %s93, %s94
    %p98 = pneg %p92
    %p99 = scmp.eq.s32.totalorder %s13, 1
    %p100 = por %p98, %p99
    %p101 = scmp.ne.s32.totalorder %s93, %s96
    %p102 = scmp.eq.s32.totalorder %s13, 0
    %p103 = por %p101, %p102
    %p104 = scmp.ne.s32.totalorder %s93, %s96
    %p105 = scmp.eq.s32.totalorder %s18, 1
    %p106 = por %p104, %p105
    %p107 = scmp.ne.s32.totalorder %s96, %s97
    %p108 = scmp.eq.s32.totalorder %s18, 0
    %p109 = por %p107, %p108
    %p110 = scmp.ne.s32.totalorder %s96, %s97
    %p111 = scmp.eq.s32.totalorder %s19, 1
    %p112 = por %p110, %p111
    %p114 = scmp.ne.s32.totalorder %s97, %s113
    %p115 = scmp.eq.s32.totalorder %s19, 0
    %p116 = por %p114, %p115
    %s118 = sadd.s32 %s117, 1
    %p121 = scmp.eq.s32.totalorder %s13, 1
    %p122 = scmp.ne.s32.totalorder %s117, %s119
    %p123 = scmp.eq.s32.totalorder %s13, 0
    %p124 = por %p122, %p123
    %p125 = scmp.ne.s32.totalorder %s117, %s119
    %p126 = scmp.eq.s32.totalorder %s18, 1
    %p127 = por %p125, %p126
    %p128 = scmp.ne.s32.totalorder %s119, %s120
    %p129 = scmp.eq.s32.totalorder %s18, 0
    %p130 = por %p128, %p129
    %p131 = scmp.ne.s32.totalorder %s119, %s120
    %p132 = scmp.eq.s32.totalorder %s19, 1
    %p133 = por %p131, %p132
    %p135 = scmp.ne.s32.totalorder %s120, %s134
    %p136 = scmp.eq.s32.totalorder %s19, 0
    %p137 = por %p135, %p136
    %s139 = sadd.s32 %s138, 1
    %p142 = scmp.eq.s32.totalorder %s13, 1
    %p143 = scmp.ne.s32.totalorder %s138, %s140
    %p144 = scmp.eq.s32.totalorder %s13, 0
    %p145 = por %p143, %p144
    %p146 = scmp.ne.s32.totalorder %s138, %s140
    %p147 = scmp.eq.s32.totalorder %s18, 1
    %p148 = por %p146, %p147
    %p149 = scmp.ne.s32.totalorder %s140, %s141
    %p150 = scmp.eq.s32.totalorder %s18, 0
    %p151 = por %p149, %p150
    %p152 = scmp.ne.s32.totalorder %s140, %s141
    %p153 = scmp.eq.s32.totalorder %s19, 1
    %p154 = por %p152, %p153
    %p156 = scmp.ne.s32.totalorder %s141, %s155
    %p157 = scmp.eq.s32.totalorder %s19, 0
    %p158 = por %p156, %p157
    %s160 = sadd.s32 %s159, 1
    %p163 = scmp.eq.s32.totalorder %s13, 1
    %p164 = scmp.ne.s32.totalorder %s159, %s161
    %p165 = scmp.eq.s32.totalorder %s13, 0
    %p166 = por %p164, %p165
    %p167 = scmp.ne.s32.totalorder %s159, %s161
    %p168 = scmp.eq.s32.totalorder %s18, 1
    %p169 = por %p167, %p168
    %p170 = scmp.ne.s32.totalorder %s161, %s162
    %p171 = scmp.eq.s32.totalorder %s18, 0
    %p172 = por %p170, %p171
    %p173 = scmp.ne.s32.totalorder %s161, %s162
    %p174 = scmp.eq.s32.totalorder %s19, 1
    %p175 = por %p173, %p174
    %p177 = scmp.ne.s32.totalorder %s162, %s176
    %p178 = scmp.eq.s32.totalorder %s19, 0
    %p179 = por %p177, %p178
    %s181 = sadd.s32 %s180, 1
    %p184 = scmp.eq.s32.totalorder %s13, 1
    %p185 = scmp.ne.s32.totalorder %s180, %s182
    %p186 = scmp.eq.s32.totalorder %s13, 0
    %p187 = por %p185, %p186
    %p188 = scmp.ne.s32.totalorder %s180, %s182
    %p189 = scmp.eq.s32.totalorder %s18, 1
    %p190 = por %p188, %p189
    %p191 = scmp.ne.s32.totalorder %s182, %s183
    %p192 = scmp.eq.s32.totalorder %s18, 0
    %p193 = por %p191, %p192
    %p194 = scmp.ne.s32.totalorder %s182, %s183
    %p195 = scmp.eq.s32.totalorder %s19, 1
    %p196 = por %p194, %p195
    %p198 = scmp.ne.s32.totalorder %s183, %s197
    %p199 = scmp.eq.s32.totalorder %s19, 0
    %p200 = por %p198, %p199
    %s201 = ssub.s32 %s20, %s32
    %s202 = ssub.s32 %s21, %s28
    %s203 = sor.u32 %s201, %s202
    %p204 = scmp.eq.s32.totalorder %s203, 0
    %s206 = sadd.s32 %s205, 1
    %s207 = scalar_select %p204, %s205, %s206
    %p210 = pneg %p204
    %p211 = scmp.eq.s32.totalorder %s13, 1
    %p212 = por %p210, %p211
    %p213 = scmp.ne.s32.totalorder %s205, %s208
    %p214 = scmp.eq.s32.totalorder %s13, 0
    %p215 = por %p213, %p214
    %p216 = scmp.ne.s32.totalorder %s205, %s208
    %p217 = scmp.eq.s32.totalorder %s18, 1
    %p218 = por %p216, %p217
    %p219 = scmp.ne.s32.totalorder %s208, %s209
    %p220 = scmp.eq.s32.totalorder %s18, 0
    %p221 = por %p219, %p220
    %p222 = scmp.ne.s32.totalorder %s208, %s209
    %p223 = scmp.eq.s32.totalorder %s19, 1
    %p224 = por %p222, %p223
    %p226 = scmp.ne.s32.totalorder %s209, %s225
    %p227 = scmp.eq.s32.totalorder %s19, 0
    %p228 = por %p226, %p227
    %p229 = scmp.le.s32.totalorder 1, %s13
    %p230 = scmp.lt.s32.totalorder %s13, 3
    %p231 = pnand %p229, %p230
    %p232 = pneg %p231
    // Predicated region
    $region9: #{csp_forward.7} parent=5 // pred_check
      _
    $region10: #{csp_forward.7} parent=5 // pred_check_branch
      %234 = sbr.rel (%p231) target = $region12
    $region11: #{csp_forward.7} parent=5 // pred_region
      %s235 = ssub.s32 %s13, 1
      // Predicated region
      $region13: #{csp_forward.7} parent=11 // pred_check
        %p236 = pneg %p130
      $region14: #{csp_forward.7} parent=11 // pred_check_branch
        %238 = sbr.rel (%p236) target = $region16
      $region15: #{csp_forward.7} parent=11 // pred_region
        _
      $region16: #{csp_forward.7} parent=11 // pred_fallthru
        _
      // Predicated region
      $region17: #{csp_forward.7} parent=11 // pred_check
        %p239 = pneg %p151
      $region18: #{csp_forward.7} parent=11 // pred_check_branch
        %241 = sbr.rel (%p239) target = $region20
      $region19: #{csp_forward.7} parent=11 // pred_region
        _
      $region20: #{csp_forward.7} parent=11 // pred_fallthru
        _
      // Predicated region
      $region21: #{csp_forward.7} parent=11 // pred_check
        %p242 = pneg %p172
      $region22: #{csp_forward.7} parent=11 // pred_check_branch
        %244 = sbr.rel (%p242) target = $region24
      $region23: #{csp_forward.7} parent=11 // pred_region
        _
      $region24: #{csp_forward.7} parent=11 // pred_fallthru
        _
      // Predicated region
      $region25: #{csp_forward.7} parent=11 // pred_check
        %p245 = pneg %p193
      $region26: #{csp_forward.7} parent=11 // pred_check_branch
        %247 = sbr.rel (%p245) target = $region28
      $region27: #{csp_forward.7} parent=11 // pred_region
        _
      $region28: #{csp_forward.7} parent=11 // pred_fallthru
        _
    $region12: #{csp_forward.7} parent=5 // pred_fallthru
      _
    %p248 = scmp.lt.s32.totalorder %s13, 2
    // Predicated region
    $region29: #{csp_forward.7} parent=5 // pred_check
      %p249 = pneg %p248
    $region30: #{csp_forward.7} parent=5 // pred_check_branch
      %251 = sbr.rel (%p249) target = $region32
    $region31: #{csp_forward.7} parent=5 // pred_region
      // Predicated region
      $region33: #{csp_forward.7} parent=31 // pred_check
        %p252 = pneg %p47
      $region34: #{csp_forward.7} parent=31 // pred_check_branch
        %254 = sbr.rel (%p252) target = $region36
      $region35: #{csp_forward.7} parent=31 // pred_region
        %s255 = smul.u32 2, %s21
        %p256 = scmp.lt.s32.totalorder %s20, 1
        %s257 = scalar_select %p256, %s20, 1
        %p258 = scmp.lt.s32.totalorder %s255, 1
        %s259 = scalar_select %p258, %s255, 1
        %s260 = smul.addr %s257, 2
        %s261 = sadd.s32 %s259, %s260
        %s262 = smul.addr %s261, 2
        %s263 = scalar_lea.vmem %s0, %s262
        %s264 = smul.u32 2, %s21
      $region36: #{csp_forward.7} parent=31 // pred_fallthru
        _
      // Predicated region
      $region37: #{csp_forward.7} parent=31 // pred_check
        %p265 = pneg %p75
      $region38: #{csp_forward.7} parent=31 // pred_check_branch
        %267 = sbr.rel (%p265) target = $region40
      $region39: #{csp_forward.7} parent=31 // pred_region
        %s268 = smul.u32 2, %s21
        %p269 = scmp.lt.s32.totalorder %s20, 1
        %s270 = scalar_select %p269, %s20, 1
        %p271 = scmp.lt.s32.totalorder %s268, 1
        %s272 = scalar_select %p271, %s268, 1
        %s273 = smul.addr %s270, 2
        %s274 = sadd.s32 %s272, %s273
        %s275 = smul.addr %s274, 2
        %s276 = scalar_lea.vmem %s1, %s275
        %s277 = smul.u32 2, %s21
      $region40: #{csp_forward.7} parent=31 // pred_fallthru
        _
      // Predicated region
      $region41: #{csp_forward.7} parent=31 // pred_check
        %p278 = pneg %p103
      $region42: #{csp_forward.7} parent=31 // pred_check_branch
        %280 = sbr.rel (%p278) target = $region44
      $region43: #{csp_forward.7} parent=31 // pred_region
        %s281 = smul.u32 2, %s21
        %p282 = scmp.lt.s32.totalorder %s20, 1
        %s283 = scalar_select %p282, %s20, 1
        %p284 = scmp.lt.s32.totalorder %s281, 1
        %s285 = scalar_select %p284, %s281, 1
        %s286 = smul.addr %s283, 2
        %s287 = sadd.s32 %s285, %s286
        %s288 = smul.addr %s287, 2
        %s289 = scalar_lea.vmem %s2, %s288
        %s290 = smul.u32 2, %s21
      $region44: #{csp_forward.7} parent=31 // pred_fallthru
        _
    $region32: #{csp_forward.7} parent=5 // pred_fallthru
      _
    %p291 = scmp.le.s32.totalorder 1, %s13
    %p292 = scmp.lt.s32.totalorder %s13, 3
    %p293 = pnand %p291, %p292
    %p294 = pneg %p293
    // Predicated region
    $region45: #{csp_forward.7} parent=5 // pred_check
      _
    $region46: #{csp_forward.7} parent=5 // pred_check_branch
      %296 = sbr.rel (%p293) target = $region48
    $region47: #{csp_forward.7} parent=5 // pred_region
      %s297 = ssub.s32 %s13, 1
      %s298 = smul.u32 2, %s23
      %p299 = scmp.lt.s32.totalorder %s22, 1
      %s300 = scalar_select %p299, %s22, 1
      %p301 = scmp.lt.s32.totalorder %s298, 1
      %s302 = scalar_select %p301, %s298, 1
      %s303 = smul.addr %s300, 2
      %s304 = sadd.s32 %s302, %s303
      %s305 = smul.addr %s304, 2
      %s306 = scalar_lea.vmem %s0, %s305
      %p307 = pneg %p53
      %p308 = pneg %p50
      %s309 = smul.u32 2, %s23
      %p310 = scmp.lt.s32.totalorder %s22, 1
      %s311 = scalar_select %p310, %s22, 1
      %p312 = scmp.lt.s32.totalorder %s309, 1
      %s313 = scalar_select %p312, %s309, 1
      %s314 = smul.addr %s311, 2
      %s315 = sadd.s32 %s313, %s314
      %s316 = smul.addr %s315, 2
      %s317 = scalar_lea.vmem %s1, %s316
      %p318 = pneg %p81
      %p319 = pneg %p78
      %s320 = smul.u32 2, %s23
      %p321 = scmp.lt.s32.totalorder %s22, 1
      %s322 = scalar_select %p321, %s22, 1
      %p323 = scmp.lt.s32.totalorder %s320, 1
      %s324 = scalar_select %p323, %s320, 1
      %s325 = smul.addr %s322, 2
      %s326 = sadd.s32 %s324, %s325
      %s327 = smul.addr %s326, 2
      %s328 = scalar_lea.vmem %s2, %s327
      %p329 = pneg %p109
      %p330 = pneg %p106
      %p331 = pneg %p130
      %p332 = pneg %p127
      %p333 = pneg %p151
      %p334 = pneg %p148
      %p335 = pneg %p172
      %p336 = pneg %p169
      %p337 = pneg %p193
      %p338 = pneg %p190
      %p339 = pneg %p221
      %p340 = pneg %p218
      %s341 = smul.u32 2, %s23
      %p342 = scmp.lt.s32.totalorder %s22, 1
      %s343 = scalar_select %p342, %s22, 1
      %p344 = scmp.lt.s32.totalorder %s341, 1
      %s345 = scalar_select %p344, %s341, 1
      %s346 = smul.addr %s343, 2
      %s347 = sadd.s32 %s345, %s346
      %s348 = smul.addr %s347, 8
      %s349 = scalar_lea.vmem %s7, %s348
      %s350 = smul.u32 2, %s23
      %p351 = scmp.lt.s32.totalorder %s22, 1
      %s352 = scalar_select %p351, %s22, 1
      %p353 = scmp.lt.s32.totalorder %s350, 1
      %s354 = scalar_select %p353, %s350, 1
      %s355 = smul.addr %s352, 2
      %s356 = sadd.s32 %s354, %s355
      %s357 = smul.addr %s356, 2
      %s358 = scalar_lea.vmem %s0, %s357
      %s359 = smul.u32 2, %s23
      %s360 = smul.u32 2, %s23
      %p361 = scmp.lt.s32.totalorder %s22, 1
      %s362 = scalar_select %p361, %s22, 1
      %p363 = scmp.lt.s32.totalorder %s360, 1
      %s364 = scalar_select %p363, %s360, 1
      %s365 = smul.addr %s362, 2
      %s366 = sadd.s32 %s364, %s365
      %s367 = smul.addr %s366, 2
      %s368 = scalar_lea.vmem %s1, %s367
      %s369 = smul.u32 2, %s23
      %s370 = smul.u32 2, %s23
      %p371 = scmp.lt.s32.totalorder %s22, 1
      %s372 = scalar_select %p371, %s22, 1
      %p373 = scmp.lt.s32.totalorder %s370, 1
      %s374 = scalar_select %p373, %s370, 1
      %s375 = smul.addr %s372, 2
      %s376 = sadd.s32 %s374, %s375
      %s377 = smul.addr %s376, 2
      %s378 = scalar_lea.vmem %s2, %s377
      %s379 = smul.u32 2, %s23
      %s380 = smul.u32 2, %s23
      %p381 = scmp.lt.s32.totalorder %s22, 1
      %s382 = scalar_select %p381, %s22, 1
      %p383 = scmp.lt.s32.totalorder %s380, 1
      %s384 = scalar_select %p383, %s380, 1
      %s385 = smul.addr %s382, 2
      %s386 = sadd.s32 %s384, %s385
      %s387 = smul.addr %s386, 8
      %s388 = scalar_lea.vmem %s7, %s387
      %s389 = smul.u32 2, %s23
      %v391 = vld [vmem:[%s3] sm:$0xf]
      %v392 = vld [vmem:[%s358] sm:$0xf]
      %v393 = vld [vmem:[%s4] sm:$0xf]
      %v394 = vld [vmem:[%s368] sm:$0xf]
      %v397 = vunpack.c.l.s4 1983009808
      %v398 = vunpack.c.0.s8 %v397
      %v399 = vlaneseq
      %v400 = vshrl.u32 %v399, 7
      %v401 = vsub.s32 %v398, %v400
      %v402 = vrot.slane %v394, %v401
      %v403 = vcombine.high %v402, %v402
      %vm404 = vcmask 31744
      %v406 = vsel %vm404, %v393, 0
      %vm408 = vcmask 1041408
      %v410 = vsel %vm408, %v402, 0
      %v413 = vsel %vm408, %v403, 0
      %415 = vmatprep.subr.bf16.mxu0 0
      %416 = vmatpush1.bf16.msra.mxu0 0
      %417 = vmatprep.subr.bf16.mxu0 0
      %418 = vmatpush1.bf16.msra.mxu0 0
      %419 = vmatprep.subr.bf16.mxu0 0
      %420 = vmatpush1.bf16.msra.mxu0 0
      %421 = vmatprep.subr.bf16.mxu0 0
      %422 = vmatpush1.bf16.msra.mxu0 0
      %423 = vmatprep.subr.bf16.mxu0 0
      %424 = vmatpush1.bf16.msra.mxu0 0
      %425 = vmatprep.subr.bf16.mxu0 0
      %426 = vmatpush1.bf16.msra.mxu0 0
      %427 = vmatprep.subr.bf16.mxu0 0
      %428 = vmatpush1.bf16.msra.mxu0 0
      %429 = vmatprep.subr.bf16.mxu0 %v413
      %430 = vmatpush1.bf16.msra.mxu0 %v410
      %431 = vmatprep.subr.bf16.mxu0 0
      %432 = vmatpush2.bf16.msra.mxu0 0
      %433 = vmatprep.subr.bf16.mxu0 0
      %434 = vmatpush2.bf16.msra.mxu0 0
      %435 = vmatprep.subr.bf16.mxu0 0
      %436 = vmatpush2.bf16.msra.mxu0 0
      %437 = vmatprep.subr.bf16.mxu0 0
      %438 = vmatpush2.bf16.msra.mxu0 0
      %439 = vmatprep.subr.bf16.mxu0 0
      %440 = vmatpush2.bf16.msra.mxu0 0
      %441 = vmatprep.subr.bf16.mxu0 0
      %442 = vmatpush2.bf16.msra.mxu0 0
      %443 = vmatprep.subr.bf16.mxu0 0
      %444 = vmatpush2.bf16.msra.mxu0 0
      %445 = vmatprep.subr.bf16.mxu0 0
      %446 = vmatpush2.bf16.msra.mxu0 0
      %447 = vmatprep.mubr.bf16.mxu0 0
      %448 = vmatmul.mubr.bf16.gmra.mxu0 %v406
      %v449 = vpop.f32.mrf.mxu0
      %v450 = vadd.f32 0.0, %v449
      %v451 = vpop.f32.mrf.mxu0
      %v452 = vadd.f32 0.0, %v451
      %v453 = vpop.f32.mrf.mxu0
      %v454 = vpop.f32.mrf.mxu0
      %455 = vdwg.mxu0
      %v458 = vunpack.c.l.s4 1983009808
      %v459 = vunpack.c.0.s8 %v458
      %v460 = vlaneseq
      %v461 = vshrl.u32 %v460, 7
      %v462 = vsub.s32 %v459, %v461
      %v463 = vrot.slane %v392, %v462
      %v464 = vcombine.high %v463, %v463
      %v466 = vsel %vm404, %v391, 0
      %v469 = vsel %vm408, %v463, 0
      %v472 = vsel %vm408, %v464, 0
      %474 = vmatprep.subr.bf16.mxu0 0
      %475 = vmatpush1.bf16.msra.mxu0 0
      %476 = vmatprep.subr.bf16.mxu0 0
      %477 = vmatpush1.bf16.msra.mxu0 0
      %478 = vmatprep.subr.bf16.mxu0 0
      %479 = vmatpush1.bf16.msra.mxu0 0
      %480 = vmatprep.subr.bf16.mxu0 0
      %481 = vmatpush1.bf16.msra.mxu0 0
      %482 = vmatprep.subr.bf16.mxu0 0
      %483 = vmatpush1.bf16.msra.mxu0 0
      %484 = vmatprep.subr.bf16.mxu0 0
      %485 = vmatpush1.bf16.msra.mxu0 0
      %486 = vmatprep.subr.bf16.mxu0 0
      %487 = vmatpush1.bf16.msra.mxu0 0
      %488 = vmatprep.subr.bf16.mxu0 %v472
      %489 = vmatpush1.bf16.msra.mxu0 %v469
      %490 = vmatprep.subr.bf16.mxu0 0
      %491 = vmatpush2.bf16.msra.mxu0 0
      %492 = vmatprep.subr.bf16.mxu0 0
      %493 = vmatpush2.bf16.msra.mxu0 0
      %494 = vmatprep.subr.bf16.mxu0 0
      %495 = vmatpush2.bf16.msra.mxu0 0
      %496 = vmatprep.subr.bf16.mxu0 0
      %497 = vmatpush2.bf16.msra.mxu0 0
      %498 = vmatprep.subr.bf16.mxu0 0
      %499 = vmatpush2.bf16.msra.mxu0 0
      %500 = vmatprep.subr.bf16.mxu0 0
      %501 = vmatpush2.bf16.msra.mxu0 0
      %502 = vmatprep.subr.bf16.mxu0 0
      %503 = vmatpush2.bf16.msra.mxu0 0
      %504 = vmatprep.subr.bf16.mxu0 0
      %505 = vmatpush2.bf16.msra.mxu0 0
      %506 = vmatprep.mubr.bf16.mxu0 0
      %507 = vmatmul.mubr.bf16.gmra.mxu0 %v466
      %v508 = vpop.f32.mrf.mxu0
      %v509 = vadd.f32 %v450, %v508
      %v510 = vpop.f32.mrf.mxu0
      %v511 = vadd.f32 %v452, %v510
      %v512 = vpop.f32.mrf.mxu0
      %v513 = vpop.f32.mrf.mxu0
      %514 = vdwg.mxu0
      %v515 = vld [vmem:[%s5] sm:$0xf]
      %v516 = vld [vmem:[%s378] sm:$0xf]
      %v519 = vunpack.c.l.s4 1983009808
      %v520 = vunpack.c.0.s8 %v519
      %v521 = vlaneseq
      %v522 = vshrl.u32 %v521, 7
      %v523 = vsub.s32 %v520, %v522
      %v524 = vrot.slane %v516, %v523
      %v525 = vcombine.high %v524, %v524
      %v527 = vsel %vm404, %v515, 0
      %v530 = vsel %vm408, %v524, 0
      %v533 = vsel %vm408, %v525, 0
      %535 = vmatprep.subr.bf16.mxu0 0
      %536 = vmatpush1.bf16.msra.mxu0 0
      %537 = vmatprep.subr.bf16.mxu0 0
      %538 = vmatpush1.bf16.msra.mxu0 0
      %539 = vmatprep.subr.bf16.mxu0 0
      %540 = vmatpush1.bf16.msra.mxu0 0
      %541 = vmatprep.subr.bf16.mxu0 0
      %542 = vmatpush1.bf16.msra.mxu0 0
      %543 = vmatprep.subr.bf16.mxu0 0
      %544 = vmatpush1.bf16.msra.mxu0 0
      %545 = vmatprep.subr.bf16.mxu0 0
      %546 = vmatpush1.bf16.msra.mxu0 0
      %547 = vmatprep.subr.bf16.mxu0 0
      %548 = vmatpush1.bf16.msra.mxu0 0
      %549 = vmatprep.subr.bf16.mxu0 %v533
      %550 = vmatpush1.bf16.msra.mxu0 %v530
      %551 = vmatprep.subr.bf16.mxu0 0
      %552 = vmatpush2.bf16.msra.mxu0 0
      %553 = vmatprep.subr.bf16.mxu0 0
      %554 = vmatpush2.bf16.msra.mxu0 0
      %555 = vmatprep.subr.bf16.mxu0 0
      %556 = vmatpush2.bf16.msra.mxu0 0
      %557 = vmatprep.subr.bf16.mxu0 0
      %558 = vmatpush2.bf16.msra.mxu0 0
      %559 = vmatprep.subr.bf16.mxu0 0
      %560 = vmatpush2.bf16.msra.mxu0 0
      %561 = vmatprep.subr.bf16.mxu0 0
      %562 = vmatpush2.bf16.msra.mxu0 0
      %563 = vmatprep.subr.bf16.mxu0 0
      %564 = vmatpush2.bf16.msra.mxu0 0
      %565 = vmatprep.subr.bf16.mxu0 0
      %566 = vmatpush2.bf16.msra.mxu0 0
      %567 = vmatprep.mubr.bf16.mxu0 0
      %568 = vmatmul.mubr.bf16.gmra.mxu0 %v527
      %v569 = vpop.f32.mrf.mxu0
      %v570 = vadd.f32 0.0, %v569
      %v571 = vpop.f32.mrf.mxu0
      %v572 = vadd.f32 0.0, %v571
      %v573 = vpop.f32.mrf.mxu0
      %v574 = vpop.f32.mrf.mxu0
      %575 = vdwg.mxu0
      %v576 = vadd.f32 %v509, %v570
      %v577 = vadd.f32 %v511, %v572
      %v578 = vld [vmem:[%s6] sm:$0xff]
      %580 = vset.pattern.permute.xlu0 0
      %581 = vperm.xlu0 %580, %v578
      %v582 = vpop.permute.xlu0 %581
      %v584 = vadd.f32 %v576, %v582
      %v585 = vadd.f32 %v577, %v582
      %v586 = vxor.u32 %v584, 2147483648
      %v587 = vxor.u32 %v585, 2147483648
      %v588 = vmul.f32 %v586, 1.442695
      %v589 = vpow.pop %v588
      %v590 = vmul.f32 %v587, 1.442695
      %v591 = vpow.pop %v590
      %v592 = vadd.f32 %v589, 1.0
      %v593 = vadd.f32 %v591, 1.0
      %v594 = vrcp.pop %v592
      %v595 = vmul.f32 1.0, %v594
      %v596 = vrcp.pop %v593
      %v597 = vmul.f32 1.0, %v596
      %v598 = vmul.f32 %v584, %v595
      %v599 = vmul.f32 %v585, %v597
      %600 = vst [vmem:[%s388] sm:$0xff] %v598
      %601 = vst [vmem:[%s388 + $0x8] sm:$0xff] %v599
      %s602 = smul.u32 2, %s23
      %p603 = scmp.lt.s32.totalorder %s22, 1
      %s604 = scalar_select %p603, %s22, 1
      %p605 = scmp.lt.s32.totalorder %s602, 1
      %s606 = scalar_select %p605, %s602, 1
      %s607 = smul.addr %s604, 2
      %s608 = sadd.s32 %s606, %s607
      %s609 = smul.addr %s608, 8
      %s610 = scalar_lea.vmem %s7, %s609
      // Predicated region
      $region49: #{csp_forward.7} parent=47 // pred_check
        %p611 = pneg %p218
      $region50: #{csp_forward.7} parent=47 // pred_check_branch
        %613 = sbr.rel (%p611) target = $region52
      $region51: #{csp_forward.7} parent=47 // pred_region
        %s614 = smul.u32 2, %s23
      $region52: #{csp_forward.7} parent=47 // pred_fallthru
        _
    $region48: #{csp_forward.7} parent=5 // pred_fallthru
      _
    %p615 = scmp.le.s32.totalorder 2, %s13
    // Predicated region
    $region53: #{csp_forward.7} parent=5 // pred_check
      %p616 = pneg %p615
    $region54: #{csp_forward.7} parent=5 // pred_check_branch
      %618 = sbr.rel (%p616) target = $region56
    $region55: #{csp_forward.7} parent=5 // pred_region
      %s619 = ssub.s32 %s13, 2
      // Predicated region
      $region57: #{csp_forward.7} parent=55 // pred_check
        %p620 = pneg %p224
      $region58: #{csp_forward.7} parent=55 // pred_check_branch
        %622 = sbr.rel (%p620) target = $region60
      $region59: #{csp_forward.7} parent=55 // pred_region
        %s623 = smul.u32 2, %s25
        %p624 = scmp.lt.s32.totalorder %s24, 1
        %s625 = scalar_select %p624, %s24, 1
        %p626 = scmp.lt.s32.totalorder %s623, 1
        %s627 = scalar_select %p626, %s623, 1
        %s628 = smul.addr %s625, 2
        %s629 = sadd.s32 %s627, %s628
        %s630 = smul.addr %s629, 8
        %s631 = scalar_lea.vmem %s7, %s630
      $region60: #{csp_forward.7} parent=55 // pred_fallthru
        _
    $region56: #{csp_forward.7} parent=5 // pred_fallthru
      _
  $region6: #{csp_forward.7} parent=0 // loop_footer
    %s17 = sadd.s32 1, %s13
  $region7: #{csp_forward.7} parent=0 // loop_footer_branch
    %12 = sbr.rel target = $region3
  $region8: #{csp_forward.7} parent=0 // loop_exit
    _

// kernel: csp_forward.6
$region0: #{csp_forward.6}
  #allocation0 [shape = 'u32[]', space=smem, size = 0x4, offset = 0x4, fixed_abs, tag = 'smem constant byte address 0x4 - core index']
  #allocation1 [shape = 'u32[144,128]{1,0:T(1,128)}', space=vmem, size = 0x12000, scoped, tag = 'internal scratch']
  #allocation2 [shape = 'bf16[16,512]{1,0:T(8,128)(2,1)}', space=vmem, size = 0x4000, scoped, tag = 'scratch operand']
  #allocation3 [shape = 's32[1]{0}', space=sflag, size = 0x4, scoped, tag = 'scratch operand']
  #allocation4 [shape = 's32[]', space=sflag, size = 0x4, offset = 0, fixed_abs, tag = 'sflag constant byte address 0x0 - dummy sync flag']
  %s0 = inlined_call_operand.vmem [shape: bf16[2,16,512], index: 0, kind: input, shape index: {}]
  %s1 = inlined_call_operand.vmem [shape: s32[1,256], index: 1, kind: input, shape index: {}]
  %s2 = inlined_call_operand.vmem [shape: s32[1,256], index: 2, kind: input, shape index: {}]
  %s3 = inlined_call_operand.vmem [shape: bf16[4,144], index: 3, kind: input, shape index: {}]
  %s4 = inlined_call_operand.vmem [shape: f32[4,1], index: 4, kind: input, shape index: {}]
  %s5 = inlined_call_operand.vmem [shape: bf16[2,4,256], index: 5, kind: input, shape index: {}]
  %s6 = inlined_call_operand.vmem [shape: bf16[2,4,256], index: 6, kind: output, shape index: {}]
  %s7 = sld [smem:[#allocation0]]
  $region87: #{csp_forward.6} parent=0
    _
  %s9 = ssub.s32 1, %s7
  %s10 = scalar_select 0, %s9, %s7
  loop: start=0, step=1, limit=4
  $region2: #{csp_forward.6} parent=0 // loop_pre_header
    _
  $region3: #{csp_forward.6} parent=0 // loop_header
    %s12 = sphi 0, %s16
    %p13 = scmp.ge.s32.totalorder %s12, 4
    %s19 = sphi 0, %s31
    %s20 = sphi 0, %s27
    %s21 = sphi 0, %s19
    %s22 = sphi 0, %s20
    %s23 = sphi 0, %s21
    %s24 = sphi 0, %s22
    %s34 = sphi 0, %s36
    %s37 = sphi 0, %s34
    %s38 = sphi 0, %s37
    %s54 = sphi 0, %s38
    %s60 = sphi 0, %s62
    %s63 = sphi 0, %s60
    %s64 = sphi 0, %s63
    %s80 = sphi 0, %s64
    %s84 = sphi 0, %s84
    %s86 = sphi 0, %s84
    %s87 = sphi 0, %s86
    %s101 = sphi 0, %s87
    %s105 = sphi 0, %s105
    %s107 = sphi 0, %s105
    %s108 = sphi 0, %s107
    %s122 = sphi 0, %s108
    %s130 = sphi 0, %s132
    %s133 = sphi 0, %s130
    %s134 = sphi 0, %s133
    %s150 = sphi 0, %s134
    %s158 = sphi 0, %s160
    %s161 = sphi 0, %s158
    %s162 = sphi 0, %s161
    %s178 = sphi 0, %s162
  $region4: #{csp_forward.6} parent=0 // loop_header_branch
    %15 = sbr.rel (%p13) target = $region8
  $region5: #{csp_forward.6} parent=0 // loop_body
    %s17 = ssub.s32 %s12, 1
    %s18 = ssub.s32 %s12, 2
    %s25 = sadd.s32 1, %s20
    %p26 = scmp.ge.s32.totalorder %s25, 1
    %s27 = scalar_select %p26, 0, %s25
    %s28 = sadd.s32 1, %s19
    %s29 = scalar_select %p26, %s28, %s19
    %p30 = scmp.ge.s32.totalorder %s29, 2
    %s31 = scalar_select %p30, 0, %s29
    %s32 = ssub.s32 %s20, %s27
    %p33 = scmp.eq.s32.totalorder %s32, 0
    %s35 = sadd.s32 %s34, 1
    %s36 = scalar_select %p33, %s34, %s35
    %p39 = pneg %p33
    %p40 = scmp.eq.s32.totalorder %s12, 1
    %p41 = por %p39, %p40
    %p42 = scmp.ne.s32.totalorder %s34, %s37
    %p43 = scmp.eq.s32.totalorder %s12, 0
    %p44 = por %p42, %p43
    %p45 = scmp.ne.s32.totalorder %s34, %s37
    %p46 = scmp.eq.s32.totalorder %s17, 1
    %p47 = por %p45, %p46
    %p48 = scmp.ne.s32.totalorder %s37, %s38
    %p49 = scmp.eq.s32.totalorder %s17, 0
    %p50 = por %p48, %p49
    %p51 = scmp.ne.s32.totalorder %s37, %s38
    %p52 = scmp.eq.s32.totalorder %s18, 1
    %p53 = por %p51, %p52
    %p55 = scmp.ne.s32.totalorder %s38, %s54
    %p56 = scmp.eq.s32.totalorder %s18, 0
    %p57 = por %p55, %p56
    %s58 = ssub.s32 %s20, %s27
    %p59 = scmp.eq.s32.totalorder %s58, 0
    %s61 = sadd.s32 %s60, 1
    %s62 = scalar_select %p59, %s60, %s61
    %p65 = pneg %p59
    %p66 = scmp.eq.s32.totalorder %s12, 1
    %p67 = por %p65, %p66
    %p68 = scmp.ne.s32.totalorder %s60, %s63
    %p69 = scmp.eq.s32.totalorder %s12, 0
    %p70 = por %p68, %p69
    %p71 = scmp.ne.s32.totalorder %s60, %s63
    %p72 = scmp.eq.s32.totalorder %s17, 1
    %p73 = por %p71, %p72
    %p74 = scmp.ne.s32.totalorder %s63, %s64
    %p75 = scmp.eq.s32.totalorder %s17, 0
    %p76 = por %p74, %p75
    %p77 = scmp.ne.s32.totalorder %s63, %s64
    %p78 = scmp.eq.s32.totalorder %s18, 1
    %p79 = por %p77, %p78
    %p81 = scmp.ne.s32.totalorder %s64, %s80
    %p82 = scmp.eq.s32.totalorder %s18, 0
    %p83 = por %p81, %p82
    %s85 = sadd.s32 %s84, 1
    %p88 = scmp.eq.s32.totalorder %s12, 1
    %p89 = scmp.ne.s32.totalorder %s84, %s86
    %p90 = scmp.eq.s32.totalorder %s12, 0
    %p91 = por %p89, %p90
    %p92 = scmp.ne.s32.totalorder %s84, %s86
    %p93 = scmp.eq.s32.totalorder %s17, 1
    %p94 = por %p92, %p93
    %p95 = scmp.ne.s32.totalorder %s86, %s87
    %p96 = scmp.eq.s32.totalorder %s17, 0
    %p97 = por %p95, %p96
    %p98 = scmp.ne.s32.totalorder %s86, %s87
    %p99 = scmp.eq.s32.totalorder %s18, 1
    %p100 = por %p98, %p99
    %p102 = scmp.ne.s32.totalorder %s87, %s101
    %p103 = scmp.eq.s32.totalorder %s18, 0
    %p104 = por %p102, %p103
    %s106 = sadd.s32 %s105, 1
    %p109 = scmp.eq.s32.totalorder %s12, 1
    %p110 = scmp.ne.s32.totalorder %s105, %s107
    %p111 = scmp.eq.s32.totalorder %s12, 0
    %p112 = por %p110, %p111
    %p113 = scmp.ne.s32.totalorder %s105, %s107
    %p114 = scmp.eq.s32.totalorder %s17, 1
    %p115 = por %p113, %p114
    %p116 = scmp.ne.s32.totalorder %s107, %s108
    %p117 = scmp.eq.s32.totalorder %s17, 0
    %p118 = por %p116, %p117
    %p119 = scmp.ne.s32.totalorder %s107, %s108
    %p120 = scmp.eq.s32.totalorder %s18, 1
    %p121 = por %p119, %p120
    %p123 = scmp.ne.s32.totalorder %s108, %s122
    %p124 = scmp.eq.s32.totalorder %s18, 0
    %p125 = por %p123, %p124
    %s126 = ssub.s32 %s19, %s31
    %s127 = ssub.s32 %s20, %s27
    %s128 = sor.u32 %s126, %s127
    %p129 = scmp.eq.s32.totalorder %s128, 0
    %s131 = sadd.s32 %s130, 1
    %s132 = scalar_select %p129, %s130, %s131
    %p135 = pneg %p129
    %p136 = scmp.eq.s32.totalorder %s12, 1
    %p137 = por %p135, %p136
    %p138 = scmp.ne.s32.totalorder %s130, %s133
    %p139 = scmp.eq.s32.totalorder %s12, 0
    %p140 = por %p138, %p139
    %p141 = scmp.ne.s32.totalorder %s130, %s133
    %p142 = scmp.eq.s32.totalorder %s17, 1
    %p143 = por %p141, %p142
    %p144 = scmp.ne.s32.totalorder %s133, %s134
    %p145 = scmp.eq.s32.totalorder %s17, 0
    %p146 = por %p144, %p145
    %p147 = scmp.ne.s32.totalorder %s133, %s134
    %p148 = scmp.eq.s32.totalorder %s18, 1
    %p149 = por %p147, %p148
    %p151 = scmp.ne.s32.totalorder %s134, %s150
    %p152 = scmp.eq.s32.totalorder %s18, 0
    %p153 = por %p151, %p152
    %s154 = ssub.s32 %s19, %s31
    %s155 = ssub.s32 %s20, %s27
    %s156 = sor.u32 %s154, %s155
    %p157 = scmp.eq.s32.totalorder %s156, 0
    %s159 = sadd.s32 %s158, 1
    %s160 = scalar_select %p157, %s158, %s159
    %p163 = pneg %p157
    %p164 = scmp.eq.s32.totalorder %s12, 1
    %p165 = por %p163, %p164
    %p166 = scmp.ne.s32.totalorder %s158, %s161
    %p167 = scmp.eq.s32.totalorder %s12, 0
    %p168 = por %p166, %p167
    %p169 = scmp.ne.s32.totalorder %s158, %s161
    %p170 = scmp.eq.s32.totalorder %s17, 1
    %p171 = por %p169, %p170
    %p172 = scmp.ne.s32.totalorder %s161, %s162
    %p173 = scmp.eq.s32.totalorder %s17, 0
    %p174 = por %p172, %p173
    %p175 = scmp.ne.s32.totalorder %s161, %s162
    %p176 = scmp.eq.s32.totalorder %s18, 1
    %p177 = por %p175, %p176
    %p179 = scmp.ne.s32.totalorder %s162, %s178
    %p180 = scmp.eq.s32.totalorder %s18, 0
    %p181 = por %p179, %p180
    %p182 = scmp.le.s32.totalorder 1, %s12
    %p183 = scmp.lt.s32.totalorder %s12, 3
    %p184 = pnand %p182, %p183
    %p185 = pneg %p184
    // Predicated region
    $region9: #{csp_forward.6} parent=5 // pred_check
      _
    $region10: #{csp_forward.6} parent=5 // pred_check_branch
      %187 = sbr.rel (%p184) target = $region12
    $region11: #{csp_forward.6} parent=5 // pred_region
      %s188 = ssub.s32 %s12, 1
      // Predicated region
      $region13: #{csp_forward.6} parent=11 // pred_check
        %p189 = pneg %p50
      $region14: #{csp_forward.6} parent=11 // pred_check_branch
        %191 = sbr.rel (%p189) target = $region16
      $region15: #{csp_forward.6} parent=11 // pred_region
        %s192 = smul.u32 2, %s22
        %p193 = scmp.lt.s32.totalorder %s192, 1
        %s194 = scalar_select %p193, %s192, 1
        %s195 = scalar_lea.vmem %s1, %s194
        %s196 = smul.u32 2, %s22
      $region16: #{csp_forward.6} parent=11 // pred_fallthru
        _
      // Predicated region
      $region17: #{csp_forward.6} parent=11 // pred_check
        %p197 = pneg %p76
      $region18: #{csp_forward.6} parent=11 // pred_check_branch
        %199 = sbr.rel (%p197) target = $region20
      $region19: #{csp_forward.6} parent=11 // pred_region
        %s200 = smul.u32 2, %s22
        %p201 = scmp.lt.s32.totalorder %s200, 1
        %s202 = scalar_select %p201, %s200, 1
        %s203 = scalar_lea.vmem %s2, %s202
        %s204 = smul.u32 2, %s22
      $region20: #{csp_forward.6} parent=11 // pred_fallthru
        _
      // Predicated region
      $region21: #{csp_forward.6} parent=11 // pred_check
        %p205 = pneg %p97
      $region22: #{csp_forward.6} parent=11 // pred_check_branch
        %207 = sbr.rel (%p205) target = $region24
      $region23: #{csp_forward.6} parent=11 // pred_region
        _
      $region24: #{csp_forward.6} parent=11 // pred_fallthru
        _
      // Predicated region
      $region25: #{csp_forward.6} parent=11 // pred_check
        %p208 = pneg %p118
      $region26: #{csp_forward.6} parent=11 // pred_check_branch
        %210 = sbr.rel (%p208) target = $region28
      $region27: #{csp_forward.6} parent=11 // pred_region
        _
      $region28: #{csp_forward.6} parent=11 // pred_fallthru
        _
    $region12: #{csp_forward.6} parent=5 // pred_fallthru
      _
    %p211 = scmp.lt.s32.totalorder %s12, 2
    // Predicated region
    $region29: #{csp_forward.6} parent=5 // pred_check
      %p212 = pneg %p211
    $region30: #{csp_forward.6} parent=5 // pred_check_branch
      %214 = sbr.rel (%p212) target = $region32
    $region31: #{csp_forward.6} parent=5 // pred_region
      // Predicated region
      $region33: #{csp_forward.6} parent=31 // pred_check
        %p215 = pneg %p140
      $region34: #{csp_forward.6} parent=31 // pred_check_branch
        %217 = sbr.rel (%p215) target = $region36
      $region35: #{csp_forward.6} parent=31 // pred_region
        %s218 = smul.u32 2, %s20
        %p219 = scmp.lt.s32.totalorder %s19, 1
        %s220 = scalar_select %p219, %s19, 1
        %p221 = scmp.lt.s32.totalorder %s218, 1
        %s222 = scalar_select %p221, %s218, 1
        %s223 = smul.addr %s220, 2
        %s224 = sadd.s32 %s222, %s223
        %s225 = smul.addr %s224, 2
        %s226 = scalar_lea.vmem %s5, %s225
        %s227 = smul.u32 2, %s20
      $region36: #{csp_forward.6} parent=31 // pred_fallthru
        _
    $region32: #{csp_forward.6} parent=5 // pred_fallthru
      _
    %p228 = scmp.le.s32.totalorder 1, %s12
    %p229 = scmp.lt.s32.totalorder %s12, 3
    %p230 = pnand %p228, %p229
    %p231 = pneg %p230
    // Predicated region
    $region37: #{csp_forward.6} parent=5 // pred_check
      _
    $region38: #{csp_forward.6} parent=5 // pred_check_branch
      %233 = sbr.rel (%p230) target = $region40
    $region39: #{csp_forward.6} parent=5 // pred_region
      %s234 = ssub.s32 %s12, 1
      %s235 = smul.u32 2, %s22
      %p236 = scmp.lt.s32.totalorder %s235, 1
      %s237 = scalar_select %p236, %s235, 1
      %s238 = scalar_lea.vmem %s1, %s237
      %p239 = pneg %p50
      %p240 = pneg %p47
      %s241 = smul.u32 2, %s22
      %p242 = scmp.lt.s32.totalorder %s241, 1
      %s243 = scalar_select %p242, %s241, 1
      %s244 = scalar_lea.vmem %s2, %s243
      %p245 = pneg %p76
      %p246 = pneg %p73
      %p247 = pneg %p97
      %p248 = pneg %p94
      %p249 = pneg %p118
      %p250 = pneg %p115
      %s251 = smul.u32 2, %s22
      %p252 = scmp.lt.s32.totalorder %s21, 1
      %s253 = scalar_select %p252, %s21, 1
      %p254 = scmp.lt.s32.totalorder %s251, 1
      %s255 = scalar_select %p254, %s251, 1
      %s256 = smul.addr %s253, 2
      %s257 = sadd.s32 %s255, %s256
      %s258 = smul.addr %s257, 2
      %s259 = scalar_lea.vmem %s5, %s258
      %p260 = pneg %p146
      %p261 = pneg %p143
      %p262 = pneg %p174
      %p263 = pneg %p171
      %s264 = smul.u32 2, %s22
      %p265 = scmp.lt.s32.totalorder %s21, 1
      %s266 = scalar_select %p265, %s21, 1
      %p267 = scmp.lt.s32.totalorder %s264, 1
      %s268 = scalar_select %p267, %s264, 1
      %s269 = smul.addr %s266, 2
      %s270 = sadd.s32 %s268, %s269
      %s271 = smul.addr %s270, 2
      %s272 = scalar_lea.vmem %s6, %s271
      %s273 = smul.u32 2, %s22
      %p274 = scmp.lt.s32.totalorder %s273, 1
      %s275 = scalar_select %p274, %s273, 1
      %s276 = scalar_lea.vmem %s1, %s275
      %s277 = smul.u32 2, %s22
      %s278 = smul.u32 2, %s22
      %p279 = scmp.lt.s32.totalorder %s278, 1
      %s280 = scalar_select %p279, %s278, 1
      %s281 = scalar_lea.vmem %s2, %s280
      %s282 = smul.u32 2, %s22
      %s283 = smul.u32 2, %s22
      %p284 = scmp.lt.s32.totalorder %s21, 1
      %s285 = scalar_select %p284, %s21, 1
      %p286 = scmp.lt.s32.totalorder %s283, 1
      %s287 = scalar_select %p286, %s283, 1
      %s288 = smul.addr %s285, 2
      %s289 = sadd.s32 %s287, %s288
      %s290 = smul.addr %s289, 2
      %s291 = scalar_lea.vmem %s5, %s290
      %s292 = smul.u32 2, %s22
      %s293 = smul.u32 2, %s22
      %p294 = scmp.lt.s32.totalorder %s21, 1
      %s295 = scalar_select %p294, %s21, 1
      %p296 = scmp.lt.s32.totalorder %s293, 1
      %s297 = scalar_select %p296, %s293, 1
      %s298 = smul.addr %s295, 2
      %s299 = sadd.s32 %s297, %s298
      %s300 = smul.addr %s299, 2
      %s301 = scalar_lea.vmem %s6, %s300
      %s302 = smul.u32 2, %s22
      %s306 = smul.u32 %s22, 256
      %s307 = sshra.s32 %s306, 7
      %s308 = sand.u32 %s306, 127
      %s309 = smul.u32 %s21, 8
      %s310 = sadd.s32 %s307, %s309
      %s311 = smul.addr %s310, 4
      %s312 = scalar_lea.vmem %s0, %s311
      %p314 = scmp.lt.u32.totalorder 32, 8
      %p315 = pneg %p314
      // Predicated region
      $region41: #{csp_forward.6} parent=39 // pred_check
        _
      $region42: #{csp_forward.6} parent=39 // pred_check_branch
        %317 = sbr.rel (%p314) target = $region44
      $region43: #{csp_forward.6} parent=39 // pred_region
        %s333 = sand.u32 32, 7
        %p334 = scmp.eq.s32.totalorder %s333, 0
        // Predicated region
        $region56: #{csp_forward.6} parent=43 // pred_check
          %p335 = pneg %p334
        $region57: #{csp_forward.6} parent=43 // pred_check_branch
          %337 = sbr.rel (%p335) target = $region59
        $region58: #{csp_forward.6} parent=43 // pred_region
          loop: start=0, step=1, limit=1
          $region60: #{csp_forward.6} parent=58 // loop_pre_header
            _
          $region61: #{csp_forward.6} parent=58 // loop_header
            %s339 = sphi 0, %s343
            %p340 = scmp.ge.s32.totalorder %s339, 1
            %s344 = sphi %s312, %s312
            %s345 = sphi [#allocation2], [#allocation2]
          $region62: #{csp_forward.6} parent=58 // loop_header_branch
            %342 = sbr.rel (%p340) target = $region66
          $region63: #{csp_forward.6} parent=58 // loop_body
            %v346 = vld [vmem:[%s344] sm:$0xff]
            %347 = vst [vmem:[%s345] sm:$0xff] %v346
            %v348 = vld [vmem:[%s344 + $0x8] sm:$0xff]
            %349 = vst [vmem:[%s345 + $0x8] sm:$0xff] %v348
            %v350 = vld [vmem:[%s344 + $0x10] sm:$0xff]
            %351 = vst [vmem:[%s345 + $0x10] sm:$0xff] %v350
            %v352 = vld [vmem:[%s344 + $0x18] sm:$0xff]
            %353 = vst [vmem:[%s345 + $0x18] sm:$0xff] %v352
          $region64: #{csp_forward.6} parent=58 // loop_footer
            %s343 = sadd.s32 1, %s339
          $region65: #{csp_forward.6} parent=58 // loop_footer_branch
            %338 = sbr.rel target = $region61
          $region66: #{csp_forward.6} parent=58 // loop_exit
            _
        $region59: #{csp_forward.6} parent=43 // pred_fallthru
          _
        %p354 = pneg %p334
        // Predicated region
        $region67: #{csp_forward.6} parent=43 // pred_check
          _
        $region68: #{csp_forward.6} parent=43 // pred_check_branch
          %356 = sbr.rel (%p334) target = $region70
        $region69: #{csp_forward.6} parent=43 // pred_region
          %s357 = sand.u32 32, 7
        $region70: #{csp_forward.6} parent=43 // pred_fallthru
          _
      $region44: #{csp_forward.6} parent=39 // pred_fallthru
        _
      // Predicated region
      $region45: #{csp_forward.6} parent=39 // pred_check
        %p318 = pneg %p314
      $region46: #{csp_forward.6} parent=39 // pred_check_branch
        %320 = sbr.rel (%p318) target = $region48
      $region47: #{csp_forward.6} parent=39 // pred_region
        %s321 = sshll.u32 1, 32
        %s322 = ssub.s32 %s321, 1
        loop: start=0, step=1, limit=1
        $region49: #{csp_forward.6} parent=47 // loop_pre_header
          _
        $region50: #{csp_forward.6} parent=47 // loop_header
          %s324 = sphi 0, %s328
          %p325 = scmp.ge.s32.totalorder %s324, 1
          %s329 = sphi %s312, %s312
          %s330 = sphi [#allocation2], [#allocation2]
        $region51: #{csp_forward.6} parent=47 // loop_header_branch
          %327 = sbr.rel (%p325) target = $region55
        $region52: #{csp_forward.6} parent=47 // loop_body
          %v331 = vld [vmem:[%s329] sm:%s322]
          %332 = vst [vmem:[%s330] sm:%s322] %v331
        $region53: #{csp_forward.6} parent=47 // loop_footer
          %s328 = sadd.s32 1, %s324
        $region54: #{csp_forward.6} parent=47 // loop_footer_branch
          %323 = sbr.rel target = $region50
        $region55: #{csp_forward.6} parent=47 // loop_exit
          _
      $region48: #{csp_forward.6} parent=39 // pred_fallthru
        _
      // Predicated region
      $region71: #{csp_forward.6} parent=39 // pred_check
        _
      $region72: #{csp_forward.6} parent=39 // pred_check_branch
        %360 = sbr.rel (0) target = $region74
      $region73: #{csp_forward.6} parent=39 // pred_region
        %361 = vsyncadd [#allocation3], 512
      $region74: #{csp_forward.6} parent=39 // pred_fallthru
        _
      %v362 = vld [vmem:[%s276] sm:$0x3]
      %v363 = vld [vmem:[%s281] sm:$0x3]
      %v364 = vadd.s32 %v362, 4294967295
      %vm365 = vcmp.ge.s32.totalorder %v364, 0
      %vm366 = vcmp.lt.s32.totalorder %v364, 16
      %vm367 = vmand %vm365, %vm366
      %v368 = vadd.s32 %v363, 4294967295
      %vm369 = vcmp.ge.s32.totalorder %v368, 0
      %vm370 = vmand %vm367, %vm369
      %vm371 = vcmp.lt.s32.totalorder %v368, 16
      %vm372 = vmand %vm370, %vm371
      %vm373 = vcmp.ge.s32.totalorder %v363, 0
      %vm374 = vmand %vm367, %vm373
      %vm375 = vcmp.lt.s32.totalorder %v363, 16
      %vm376 = vmand %vm374, %vm375
      %v377 = vadd.s32 %v363, 1
      %vm378 = vcmp.ge.s32.totalorder %v377, 0
      %vm379 = vmand %vm367, %vm378
      %vm380 = vcmp.lt.s32.totalorder %v377, 16
      %vm381 = vmand %vm379, %vm380
      %vm382 = vcmp.ge.s32.totalorder %v362, 0
      %vm383 = vcmp.lt.s32.totalorder %v362, 16
      %vm384 = vmand %vm382, %vm383
      %vm385 = vmand %vm384, %vm369
      %vm386 = vmand %vm385, %vm371
      %vm387 = vmand %vm384, %vm373
      %vm388 = vmand %vm387, %vm375
      %vm389 = vmand %vm384, %vm378
      %vm390 = vmand %vm389, %vm380
      %v391 = vadd.s32 %v362, 1
      %vm392 = vcmp.ge.s32.totalorder %v391, 0
      %vm393 = vcmp.lt.s32.totalorder %v391, 16
      %vm394 = vmand %vm392, %vm393
      %vm395 = vmand %vm394, %vm369
      %vm396 = vmand %vm395, %vm371
      %vm397 = vmand %vm394, %vm373
      %vm398 = vmand %vm397, %vm375
      %vm399 = vmand %vm394, %vm378
      %vm400 = vmand %vm399, %vm380
      %s401 = smul.u32 4, 2
      %s402 = smul.u32 %s401, 4
      %s403 = sshll.u32 %s402, 4
      %404 = dma.done [#allocation3], %s403
      %v405 = vld [vmem:[#allocation2] sm:$0xff]
      %v406 = vld [vmem:[#allocation2 + $0x8] sm:$0xff]
      %v407 = vld [vmem:[#allocation2 + $0x10] sm:$0xff]
      %v408 = vld [vmem:[#allocation2 + $0x18] sm:$0xff]
      %v409 = vsel %vm372, 1, 0
      %v410 = vlaneseq
      %v411 = vshrl.u32 %v410, 7
      %v412 = vsub.s32 0, %v411
      %v413 = vrot.slane %v409, %v412
      %v414 = vlaneseq
      %v415 = vshrl.u32 %v414, 7
      %v416 = vsub.s32 1, %v415
      %v417 = vrot.slane %v409, %v416
      %vm418 = vcmp.eq.s32.totalorder %v413, 1
      %vm419 = vcmp.eq.s32.totalorder %v417, 1
      %vm420 = vmpackc.low %vm419, %vm418
      %v421 = vsel %vm420, 65537, 0
      %422 = vrot.lane.b32.xlu0 %v421, 111
      %v423 = vpop.permute.xlu0 %422
      %v424 = vrot.slane %v423, 4
      %vm425 = vcmask 908288
      %v426 = vsel %vm425, %v424, %v423
      %vm427 = vcmp.ne.s16.totalorder %v426, 0
      %vm428 = vcmp.ne.s16.totalorder %v424, 0
      %v429 = vsel %vm427, %v405, 0
      %v430 = vsel %vm428, %v406, 0
      %v431 = vsel %vm427, %v407, 0
      %v432 = vsel %vm428, %v408, 0
      %v433 = vsel %vm376, 1, 0
      %v434 = vlaneseq
      %v435 = vshrl.u32 %v434, 7
      %v436 = vsub.s32 0, %v435
      %v437 = vrot.slane %v433, %v436
      %v438 = vlaneseq
      %v439 = vshrl.u32 %v438, 7
      %v440 = vsub.s32 1, %v439
      %v441 = vrot.slane %v433, %v440
      %vm442 = vcmp.eq.s32.totalorder %v437, 1
      %vm443 = vcmp.eq.s32.totalorder %v441, 1
      %vm444 = vmpackc.low %vm443, %vm442
      %v445 = vsel %vm444, 65537, 0
      %446 = vrot.lane.b32.xlu0 %v445, 112
      %v447 = vpop.permute.xlu0 %446
      %v448 = vrot.slane %v447, 4
      %vm449 = vcmask 916480
      %v450 = vsel %vm449, %v448, %v447
      %vm451 = vcmp.ne.s16.totalorder %v450, 0
      %vm452 = vcmp.ne.s16.totalorder %v448, 0
      %v453 = vsel %vm451, %v405, 0
      %v454 = vsel %vm452, %v406, 0
      %v455 = vsel %vm451, %v407, 0
      %v456 = vsel %vm452, %v408, 0
      %v457 = vsel %vm381, 1, 0
      %v458 = vlaneseq
      %v459 = vshrl.u32 %v458, 7
      %v460 = vsub.s32 0, %v459
      %v461 = vrot.slane %v457, %v460
      %v462 = vlaneseq
      %v463 = vshrl.u32 %v462, 7
      %v464 = vsub.s32 1, %v463
      %v465 = vrot.slane %v457, %v464
      %vm466 = vcmp.eq.s32.totalorder %v461, 1
      %vm467 = vcmp.eq.s32.totalorder %v465, 1
      %vm468 = vmpackc.low %vm467, %vm466
      %v469 = vsel %vm468, 65537, 0
      %470 = vrot.lane.b32.xlu0 %v469, 113
      %v471 = vpop.permute.xlu0 %470
      %v472 = vrot.slane %v471, 4
      %vm473 = vcmask 924672
      %v474 = vsel %vm473, %v472, %v471
      %vm475 = vcmp.ne.s16.totalorder %v474, 0
      %vm476 = vcmp.ne.s16.totalorder %v472, 0
      %v477 = vsel %vm475, %v405, 0
      %v478 = vsel %vm476, %v406, 0
      %v479 = vsel %vm475, %v407, 0
      %v480 = vsel %vm476, %v408, 0
      %v481 = vsel %vm386, 1, 0
      %v482 = vlaneseq
      %v483 = vshrl.u32 %v482, 7
      %v484 = vsub.s32 0, %v483
      %v485 = vrot.slane %v481, %v484
      %v486 = vlaneseq
      %v487 = vshrl.u32 %v486, 7
      %v488 = vsub.s32 1, %v487
      %v489 = vrot.slane %v481, %v488
      %vm490 = vcmp.eq.s32.totalorder %v485, 1
      %vm491 = vcmp.eq.s32.totalorder %v489, 1
      %vm492 = vmpackc.low %vm491, %vm490
      %v493 = vsel %vm492, 65537, 0
      %494 = vrot.lane.b32.xlu0 %v493, 127
      %v495 = vpop.permute.xlu0 %494
      %v496 = vrot.slane %v495, 4
      %vm497 = vcmask 1039360
      %v498 = vsel %vm497, %v496, %v495
      %vm499 = vcmp.ne.s16.totalorder %v498, 0
      %vm500 = vcmp.ne.s16.totalorder %v496, 0
      %v501 = vsel %vm499, %v405, 0
      %v502 = vsel %vm500, %v406, 0
      %v503 = vsel %vm499, %v407, 0
      %v504 = vsel %vm500, %v408, 0
      %v505 = vsel %vm388, 1, 0
      %v506 = vlaneseq
      %v507 = vshrl.u32 %v506, 7
      %v508 = vsub.s32 0, %v507
      %v509 = vrot.slane %v505, %v508
      %v510 = vlaneseq
      %v511 = vshrl.u32 %v510, 7
      %v512 = vsub.s32 1, %v511
      %v513 = vrot.slane %v505, %v512
      %vm514 = vcmp.eq.s32.totalorder %v509, 1
      %vm515 = vcmp.eq.s32.totalorder %v513, 1
      %vm516 = vmpackc.low %vm515, %vm514
      %v521 = vrot.slane %v405, 4
      %v522 = vrot.slane %v406, 4
      %v523 = vrot.slane %v407, 4
      %v524 = vrot.slane %v408, 4
      %vm525 = vcmask 1043456
      %v526 = vsel %vm525, %v521, %v522
      %v527 = vsel %vm525, %v523, %v524
      %v530 = vsel %vm516, %v526, 0
      %v531 = vsel %vm516, %v527, 0
      %v532 = vsel %vm390, 1, 0
      %v533 = vlaneseq
      %v534 = vshrl.u32 %v533, 7
      %v535 = vsub.s32 0, %v534
      %v536 = vrot.slane %v532, %v535
      %v537 = vlaneseq
      %v538 = vshrl.u32 %v537, 7
      %v539 = vsub.s32 1, %v538
      %v540 = vrot.slane %v532, %v539
      %vm541 = vcmp.eq.s32.totalorder %v536, 1
      %vm542 = vcmp.eq.s32.totalorder %v540, 1
      %vm543 = vmpackc.low %vm542, %vm541
      %544 = vrot.lane.b32.xlu0 %v405, 127
      %v545 = vpop.permute.xlu0 %544
      %546 = vrot.lane.b32.xlu0 %v406, 127
      %v547 = vpop.permute.xlu0 %546
      %548 = vrot.lane.b32.xlu0 %v407, 127
      %v549 = vpop.permute.xlu0 %548
      %550 = vrot.lane.b32.xlu0 %v408, 127
      %v551 = vpop.permute.xlu0 %550
      %v552 = vrot.slane %v545, 4
      %v553 = vrot.slane %v547, 4
      %v554 = vrot.slane %v549, 4
      %v555 = vrot.slane %v551, 4
      %v556 = vsel %vm525, %v552, %v553
      %v557 = vsel %vm497, %v556, %v547
      %v558 = vsel %vm525, %v554, %v555
      %v559 = vsel %vm497, %v558, %v551
      %v562 = vsel %vm543, %v557, 0
      %v563 = vsel %vm543, %v559, 0
      %v564 = vsel %vm396, 1, 0
      %v565 = vlaneseq
      %v566 = vshrl.u32 %v565, 7
      %v567 = vsub.s32 0, %v566
      %v568 = vrot.slane %v564, %v567
      %v569 = vlaneseq
      %v570 = vshrl.u32 %v569, 7
      %v571 = vsub.s32 1, %v570
      %v572 = vrot.slane %v564, %v571
      %vm573 = vcmp.eq.s32.totalorder %v568, 1
      %vm574 = vcmp.eq.s32.totalorder %v572, 1
      %vm575 = vmpackc.low %vm574, %vm573
      %576 = vrot.lane.b32.xlu0 %v405, 113
      %v577 = vpop.permute.xlu0 %576
      %578 = vrot.lane.b32.xlu0 %v406, 113
      %v579 = vpop.permute.xlu0 %578
      %580 = vrot.lane.b32.xlu0 %v407, 113
      %v581 = vpop.permute.xlu0 %580
      %582 = vrot.lane.b32.xlu0 %v408, 113
      %v583 = vpop.permute.xlu0 %582
      %v584 = vrot.slane %v577, 4
      %v585 = vrot.slane %v579, 4
      %v586 = vrot.slane %v581, 4
      %v587 = vrot.slane %v583, 4
      %v588 = vsel %vm525, %v584, %v585
      %v589 = vsel %vm473, %v588, %v579
      %v590 = vsel %vm525, %v586, %v587
      %v591 = vsel %vm473, %v590, %v583
      %v594 = vsel %vm575, %v589, 0
      %v595 = vsel %vm575, %v591, 0
      %v596 = vsel %vm398, 1, 0
      %v597 = vlaneseq
      %v598 = vshrl.u32 %v597, 7
      %v599 = vsub.s32 0, %v598
      %v600 = vrot.slane %v596, %v599
      %v601 = vlaneseq
      %v602 = vshrl.u32 %v601, 7
      %v603 = vsub.s32 1, %v602
      %v604 = vrot.slane %v596, %v603
      %vm605 = vcmp.eq.s32.totalorder %v600, 1
      %vm606 = vcmp.eq.s32.totalorder %v604, 1
      %vm607 = vmpackc.low %vm606, %vm605
      %608 = vrot.lane.b32.xlu0 %v405, 112
      %v609 = vpop.permute.xlu0 %608
      %610 = vrot.lane.b32.xlu0 %v406, 112
      %v611 = vpop.permute.xlu0 %610
      %612 = vrot.lane.b32.xlu0 %v407, 112
      %v613 = vpop.permute.xlu0 %612
      %614 = vrot.lane.b32.xlu0 %v408, 112
      %v615 = vpop.permute.xlu0 %614
      %v616 = vrot.slane %v609, 4
      %v617 = vrot.slane %v611, 4
      %v618 = vrot.slane %v613, 4
      %v619 = vrot.slane %v615, 4
      %v620 = vsel %vm525, %v616, %v617
      %v621 = vsel %vm449, %v620, %v611
      %v622 = vsel %vm525, %v618, %v619
      %v623 = vsel %vm449, %v622, %v615
      %v626 = vsel %vm607, %v621, 0
      %v627 = vsel %vm607, %v623, 0
      %v628 = vsel %vm400, 1, 0
      %v629 = vlaneseq
      %v630 = vshrl.u32 %v629, 7
      %v631 = vsub.s32 0, %v630
      %v632 = vrot.slane %v628, %v631
      %v633 = vlaneseq
      %v634 = vshrl.u32 %v633, 7
      %v635 = vsub.s32 1, %v634
      %v636 = vrot.slane %v628, %v635
      %vm637 = vcmp.eq.s32.totalorder %v632, 1
      %vm638 = vcmp.eq.s32.totalorder %v636, 1
      %vm639 = vmpackc.low %vm638, %vm637
      %640 = vrot.lane.b32.xlu0 %v405, 111
      %v641 = vpop.permute.xlu0 %640
      %642 = vrot.lane.b32.xlu0 %v406, 111
      %v643 = vpop.permute.xlu0 %642
      %644 = vrot.lane.b32.xlu0 %v407, 111
      %v645 = vpop.permute.xlu0 %644
      %646 = vrot.lane.b32.xlu0 %v408, 111
      %v647 = vpop.permute.xlu0 %646
      %v648 = vrot.slane %v641, 4
      %v649 = vrot.slane %v643, 4
      %v650 = vrot.slane %v645, 4
      %v651 = vrot.slane %v647, 4
      %v652 = vsel %vm525, %v648, %v649
      %v653 = vsel %vm425, %v652, %v643
      %v654 = vsel %vm525, %v650, %v651
      %v655 = vsel %vm425, %v654, %v647
      %v658 = vsel %vm639, %v653, 0
      %v659 = vsel %vm639, %v655, 0
      %v664 = vunpack.c.l.b16 %v429
      %v665 = vunpack.c.h.b16 %v429
      %v666 = vunpack.c.l.b16 %v430
      %v667 = vunpack.c.l.b16 %v431
      %v668 = vunpack.c.h.b16 %v431
      %v669 = vunpack.c.l.b16 %v432
      %v670 = vpack.c.b16 %v667, %v664
      %v671 = vpack.c.b16 %v668, %v665
      %v672 = vpack.c.b16 %v669, %v666
      %v677 = vunpack.c.l.b16 %v453
      %v678 = vunpack.c.h.b16 %v453
      %v679 = vunpack.c.l.b16 %v454
      %v680 = vunpack.c.l.b16 %v455
      %v681 = vunpack.c.h.b16 %v455
      %v682 = vunpack.c.l.b16 %v456
      %v683 = vpack.c.b16 %v680, %v677
      %v684 = vpack.c.b16 %v681, %v678
      %v685 = vpack.c.b16 %v682, %v679
      %686 = vrot.lane.b32.xlu0 %v683, 127
      %v687 = vpop.permute.xlu0 %686
      %688 = vrot.lane.b32.xlu0 %v684, 127
      %v689 = vpop.permute.xlu0 %688
      %690 = vrot.lane.b32.xlu0 %v685, 127
      %v691 = vpop.permute.xlu0 %690
      %v692 = vsel %vm497, %v687, %v689
      %v693 = vsel %vm497, %v689, %v691
      %v698 = vunpack.c.l.b16 %v477
      %v699 = vunpack.c.h.b16 %v477
      %v700 = vunpack.c.l.b16 %v478
      %v701 = vunpack.c.l.b16 %v479
      %v702 = vunpack.c.h.b16 %v479
      %v703 = vunpack.c.l.b16 %v480
      %v704 = vpack.c.b16 %v701, %v698
      %v705 = vpack.c.b16 %v702, %v699
      %v706 = vpack.c.b16 %v703, %v700
      %707 = vrot.lane.b32.xlu0 %v704, 126
      %v708 = vpop.permute.xlu0 %707
      %709 = vrot.lane.b32.xlu0 %v705, 126
      %v710 = vpop.permute.xlu0 %709
      %711 = vrot.lane.b32.xlu0 %v706, 126
      %v712 = vpop.permute.xlu0 %711
      %vm713 = vcmask 1031168
      %v714 = vsel %vm713, %v708, %v710
      %v715 = vsel %vm713, %v710, %v712
      %v720 = vunpack.c.l.b16 %v501
      %v721 = vunpack.c.h.b16 %v501
      %v722 = vunpack.c.l.b16 %v502
      %v723 = vunpack.c.l.b16 %v503
      %v724 = vunpack.c.h.b16 %v503
      %v725 = vunpack.c.l.b16 %v504
      %v726 = vpack.c.b16 %v723, %v720
      %v727 = vpack.c.b16 %v724, %v721
      %v728 = vpack.c.b16 %v725, %v722
      %729 = vrot.lane.b32.xlu0 %v726, 112
      %v730 = vpop.permute.xlu0 %729
      %731 = vrot.lane.b32.xlu0 %v727, 112
      %v732 = vpop.permute.xlu0 %731
      %733 = vrot.lane.b32.xlu0 %v728, 112
      %v734 = vpop.permute.xlu0 %733
      %v735 = vsel %vm449, %v730, %v732
      %v736 = vsel %vm449, %v732, %v734
      %v739 = vunpack.c.l.b16 %v530
      %v740 = vunpack.c.h.b16 %v530
      %v741 = vunpack.c.l.b16 %v531
      %v742 = vunpack.c.h.b16 %v531
      %v743 = vpack.c.b16 %v741, %v739
      %v744 = vpack.c.b16 %v742, %v740
      %745 = vrot.lane.b32.xlu0 %v743, 111
      %v746 = vpop.permute.xlu0 %745
      %747 = vrot.lane.b32.xlu0 %v744, 111
      %v748 = vpop.permute.xlu0 %747
      %v749 = vsel %vm425, %v746, %v748
      %v752 = vunpack.c.l.b16 %v562
      %v753 = vunpack.c.h.b16 %v562
      %v754 = vunpack.c.l.b16 %v563
      %v755 = vunpack.c.h.b16 %v563
      %v756 = vpack.c.b16 %v754, %v752
      %v757 = vpack.c.b16 %v755, %v753
      %758 = vrot.lane.b32.xlu0 %v756, 111
      %v759 = vpop.permute.xlu0 %758
      %760 = vrot.lane.b32.xlu0 %v757, 111
      %v761 = vpop.permute.xlu0 %760
      %v762 = vsel %vm425, %v759, %v761
      %v765 = vunpack.c.l.b16 %v594
      %v766 = vunpack.c.h.b16 %v594
      %v767 = vunpack.c.l.b16 %v595
      %v768 = vunpack.c.h.b16 %v595
      %v769 = vpack.c.b16 %v767, %v765
      %v770 = vpack.c.b16 %v768, %v766
      %771 = vrot.lane.b32.xlu0 %v769, 111
      %v772 = vpop.permute.xlu0 %771
      %773 = vrot.lane.b32.xlu0 %v770, 111
      %v774 = vpop.permute.xlu0 %773
      %v775 = vsel %vm425, %v772, %v774
      %v778 = vunpack.c.l.b16 %v626
      %v779 = vunpack.c.h.b16 %v626
      %v780 = vunpack.c.l.b16 %v627
      %v781 = vunpack.c.h.b16 %v627
      %v782 = vpack.c.b16 %v780, %v778
      %v783 = vpack.c.b16 %v781, %v779
      %784 = vrot.lane.b32.xlu0 %v782, 111
      %v785 = vpop.permute.xlu0 %784
      %786 = vrot.lane.b32.xlu0 %v783, 111
      %v787 = vpop.permute.xlu0 %786
      %v788 = vsel %vm425, %v785, %v787
      %v791 = vunpack.c.l.b16 %v658
      %v792 = vunpack.c.h.b16 %v658
      %v793 = vunpack.c.l.b16 %v659
      %v794 = vunpack.c.h.b16 %v659
      %v795 = vpack.c.b16 %v793, %v791
      %v796 = vpack.c.b16 %v794, %v792
      %797 = vrot.lane.b32.xlu0 %v795, 111
      %v798 = vpop.permute.xlu0 %797
      %799 = vrot.lane.b32.xlu0 %v796, 111
      %v800 = vpop.permute.xlu0 %799
      %v801 = vsel %vm425, %v798, %v800
      %v802 = vld [vmem:[%s3] sm:$0xf]
      %v803 = vld [vmem:[%s4] sm:$0xf]
      %805 = vset.pattern.permute.xlu0 0
      %806 = vperm.xlu0 %805, %v803
      %v807 = vpop.permute.xlu0 %806
      %v811 = vunpack.c.l.s4 1983009808
      %v812 = vunpack.c.0.s8 %v811
      %v813 = vlaneseq
      %v814 = vshrl.u32 %v813, 7
      %v815 = vsub.s32 %v812, %v814
      %v816 = vrot.slane %v802, %v815
      %v817 = vcombine.high %v816, %v816
      %819 = vrot.lane.b32.xlu0 %v670, 17
      %v820 = vpop.permute.xlu0 %819
      %821 = vrot.lane.b32.xlu0 %v671, 17
      %v822 = vpop.permute.xlu0 %821
      %823 = vrot.lane.b32.xlu0 %v672, 17
      %v824 = vpop.permute.xlu0 %823
      %825 = vrot.lane.b32.xlu0 %v692, 17
      %v826 = vpop.permute.xlu0 %825
      %827 = vrot.lane.b32.xlu0 %v693, 17
      %v828 = vpop.permute.xlu0 %827
      %829 = vrot.lane.b32.xlu0 %v691, 17
      %v830 = vpop.permute.xlu0 %829
      %831 = vrot.lane.b32.xlu0 %v714, 17
      %v832 = vpop.permute.xlu0 %831
      %833 = vrot.lane.b32.xlu0 %v715, 17
      %v834 = vpop.permute.xlu0 %833
      %835 = vrot.lane.b32.xlu0 %v712, 17
      %v836 = vpop.permute.xlu0 %835
      %837 = vrot.lane.b32.xlu0 %v735, 17
      %v838 = vpop.permute.xlu0 %837
      %839 = vrot.lane.b32.xlu0 %v736, 17
      %v840 = vpop.permute.xlu0 %839
      %841 = vrot.lane.b32.xlu0 %v734, 17
      %v842 = vpop.permute.xlu0 %841
      %843 = vrot.lane.b32.xlu0 %v746, 17
      %v844 = vpop.permute.xlu0 %843
      %845 = vrot.lane.b32.xlu0 %v749, 17
      %v846 = vpop.permute.xlu0 %845
      %847 = vrot.lane.b32.xlu0 %v748, 17
      %v848 = vpop.permute.xlu0 %847
      %849 = vrot.lane.b32.xlu0 %v759, 17
      %v850 = vpop.permute.xlu0 %849
      %851 = vrot.lane.b32.xlu0 %v762, 17
      %v852 = vpop.permute.xlu0 %851
      %853 = vrot.lane.b32.xlu0 %v761, 17
      %v854 = vpop.permute.xlu0 %853
      %855 = vrot.lane.b32.xlu0 %v772, 17
      %v856 = vpop.permute.xlu0 %855
      %857 = vrot.lane.b32.xlu0 %v775, 17
      %v858 = vpop.permute.xlu0 %857
      %859 = vrot.lane.b32.xlu0 %v774, 17
      %v860 = vpop.permute.xlu0 %859
      %861 = vrot.lane.b32.xlu0 %v785, 17
      %v862 = vpop.permute.xlu0 %861
      %863 = vrot.lane.b32.xlu0 %v788, 17
      %v864 = vpop.permute.xlu0 %863
      %865 = vrot.lane.b32.xlu0 %v787, 17
      %v866 = vpop.permute.xlu0 %865
      %867 = vrot.lane.b32.xlu0 %v798, 17
      %v868 = vpop.permute.xlu0 %867
      %869 = vrot.lane.b32.xlu0 %v801, 17
      %v870 = vpop.permute.xlu0 %869
      %871 = vrot.lane.b32.xlu0 %v800, 17
      %v872 = vpop.permute.xlu0 %871
      %vm873 = vcmask 138240
      %v874 = vsel %vm873, %v820, %v822
      %v875 = vsel %vm873, %v822, %v824
      %v876 = vsel %vm873, %v826, %v828
      %v877 = vsel %vm873, %v828, %v830
      %v878 = vsel %vm873, %v832, %v834
      %v879 = vsel %vm873, %v834, %v836
      %v880 = vsel %vm873, %v838, %v840
      %v881 = vsel %vm873, %v840, %v842
      %v882 = vsel %vm873, %v844, %v846
      %v883 = vsel %vm873, %v846, %v848
      %v884 = vsel %vm873, %v850, %v852
      %v885 = vsel %vm873, %v852, %v854
      %v886 = vsel %vm873, %v856, %v858
      %v887 = vsel %vm873, %v858, %v860
      %v888 = vsel %vm873, %v862, %v864
      %v889 = vsel %vm873, %v864, %v866
      %v890 = vsel %vm873, %v868, %v870
      %v891 = vsel %vm873, %v870, %v872
      %vm910 = vcmask 130048
      %v912 = vsel %vm910, %v817, 0
      %914 = vmatprep.subr.bf16.mxu0 %v889
      %915 = vmatpush1.bf16.msra.mxu0 %v888
      %916 = vmatprep.subr.bf16.mxu0 %v887
      %917 = vmatpush1.bf16.msra.mxu0 %v886
      %918 = vmatprep.subr.bf16.mxu0 %v885
      %919 = vmatpush1.bf16.msra.mxu0 %v884
      %920 = vmatprep.subr.bf16.mxu0 %v883
      %921 = vmatpush1.bf16.msra.mxu0 %v882
      %922 = vmatprep.subr.bf16.mxu0 %v881
      %923 = vmatpush1.bf16.msra.mxu0 %v880
      %924 = vmatprep.subr.bf16.mxu0 %v879
      %925 = vmatpush1.bf16.msra.mxu0 %v878
      %926 = vmatprep.subr.bf16.mxu0 %v877
      %927 = vmatpush1.bf16.msra.mxu0 %v876
      %928 = vmatprep.subr.bf16.mxu0 %v875
      %929 = vmatpush1.bf16.msra.mxu0 %v874
      %930 = vmatprep.subr.bf16.mxu0 0
      %931 = vmatpush2.bf16.msra.mxu0 0
      %932 = vmatprep.subr.bf16.mxu0 0
      %933 = vmatpush2.bf16.msra.mxu0 0
      %934 = vmatprep.subr.bf16.mxu0 0
      %935 = vmatpush2.bf16.msra.mxu0 0
      %936 = vmatprep.subr.bf16.mxu0 0
      %937 = vmatpush2.bf16.msra.mxu0 0
      %938 = vmatprep.subr.bf16.mxu0 0
      %939 = vmatpush2.bf16.msra.mxu0 0
      %940 = vmatprep.subr.bf16.mxu0 0
      %941 = vmatpush2.bf16.msra.mxu0 0
      %942 = vmatprep.subr.bf16.mxu0 0
      %943 = vmatpush2.bf16.msra.mxu0 0
      %944 = vmatprep.subr.bf16.mxu0 %v891
      %945 = vmatpush2.bf16.msra.mxu0 %v890
      %946 = vmatprep.mubr.bf16.mxu0 %v912
      %947 = vmatmul.mubr.bf16.gmra.mxu0 %v816
      %v948 = vpop.f32.mrf.mxu0
      %v949 = vadd.f32 %v807, %v948
      %v950 = vpop.f32.mrf.mxu0
      %v951 = vadd.f32 %v807, %v950
      %v952 = vpop.f32.mrf.mxu0
      %v953 = vpop.f32.mrf.mxu0
      %954 = vdwg.mxu0
      %v955 = vxor.u32 %v949, 2147483648
      %v956 = vxor.u32 %v951, 2147483648
      %v957 = vmul.f32 %v955, 1.442695
      %v958 = vpow.pop %v957
      %v959 = vmul.f32 %v956, 1.442695
      %v960 = vpow.pop %v959
      %v961 = vadd.f32 %v958, 1.0
      %v962 = vadd.f32 %v960, 1.0
      %v963 = vrcp.pop %v961
      %v964 = vmul.f32 1.0, %v963
      %v965 = vrcp.pop %v962
      %v966 = vmul.f32 1.0, %v965
      %v967 = vmul.f32 %v949, %v964
      %v968 = vmul.f32 %v951, %v966
      %v969 = vld [vmem:[%s291] sm:$0xf]
      %v970 = vunpack.c.l.bf16 %v969
      %v972 = vcombine.high %v970, %v970
      %v974 = vadd.f32 %v967, %v970
      %v975 = vadd.f32 %v968, %v972
      %v976 = vpack.c.bf16 %v974, %v974
      %v977 = vpack.c.bf16 %v975, %v975
      %v980 = vcombine.low %v976, %v977
      %v982 = vunpack.c.l.s4 1983009808
      %v983 = vunpack.c.0.s8 %v982
      %v984 = vlaneseq
      %v985 = vshrl.u32 %v984, 7
      %v986 = vsub.s32 %v983, %v985
      %v987 = vrot.slane %v980, %v986
      %989 = vst [vmem:[%s301] sm:$0xf] %v987
      %s990 = smul.u32 2, %s22
      %p991 = scmp.lt.s32.totalorder %s21, 1
      %s992 = scalar_select %p991, %s21, 1
      %p993 = scmp.lt.s32.totalorder %s990, 1
      %s994 = scalar_select %p993, %s990, 1
      %s995 = smul.addr %s992, 2
      %s996 = sadd.s32 %s994, %s995
      %s997 = smul.addr %s996, 2
      %s998 = scalar_lea.vmem %s6, %s997
      // Predicated region
      $region75: #{csp_forward.6} parent=39 // pred_check
        %p999 = pneg %p171
      $region76: #{csp_forward.6} parent=39 // pred_check_branch
        %1001 = sbr.rel (%p999) target = $region78
      $region77: #{csp_forward.6} parent=39 // pred_region
        %s1002 = smul.u32 2, %s22
      $region78: #{csp_forward.6} parent=39 // pred_fallthru
        _
    $region40: #{csp_forward.6} parent=5 // pred_fallthru
      _
    %p1003 = scmp.le.s32.totalorder 2, %s12
    // Predicated region
    $region79: #{csp_forward.6} parent=5 // pred_check
      %p1004 = pneg %p1003
    $region80: #{csp_forward.6} parent=5 // pred_check_branch
      %1006 = sbr.rel (%p1004) target = $region82
    $region81: #{csp_forward.6} parent=5 // pred_region
      %s1007 = ssub.s32 %s12, 2
      // Predicated region
      $region83: #{csp_forward.6} parent=81 // pred_check
        %p1008 = pneg %p177
      $region84: #{csp_forward.6} parent=81 // pred_check_branch
        %1010 = sbr.rel (%p1008) target = $region86
      $region85: #{csp_forward.6} parent=81 // pred_region
        %s1011 = smul.u32 2, %s24
        %p1012 = scmp.lt.s32.totalorder %s23, 1
        %s1013 = scalar_select %p1012, %s23, 1
        %p1014 = scmp.lt.s32.totalorder %s1011, 1
        %s1015 = scalar_select %p1014, %s1011, 1
        %s1016 = smul.addr %s1013, 2
        %s1017 = sadd.s32 %s1015, %s1016
        %s1018 = smul.addr %s1017, 2
        %s1019 = scalar_lea.vmem %s6, %s1018
      $region86: #{csp_forward.6} parent=81 // pred_fallthru
        _
    $region82: #{csp_forward.6} parent=5 // pred_fallthru
      _
  $region6: #{csp_forward.6} parent=0 // loop_footer
    %s16 = sadd.s32 1, %s12
  $region7: #{csp_forward.6} parent=0 // loop_footer_branch
    %11 = sbr.rel target = $region3
  $region8: #{csp_forward.6} parent=0 // loop_exit
    _
  %1020 = vsyncmov [#allocation3]
  %s1021 = vpop.sfrf %1020
  %p1022 = scmp.eq.s32.totalorder %s1021, 0
  %p1023 = pneg %p1022
  %1025 = shalt.err (%p1023)

// kernel: csp_forward.5
$region0: #{csp_forward.5}
  #allocation0 [shape = 'u32[]', space=smem, size = 0x4, offset = 0x4, fixed_abs, tag = 'smem constant byte address 0x4 - core index']
  #allocation1 [shape = 'u32[144,128]{1,0:T(1,128)}', space=vmem, size = 0x12000, scoped, tag = 'internal scratch']
  #allocation2 [shape = 'bf16[16,512]{1,0:T(8,128)(2,1)}', space=vmem, size = 0x4000, scoped, tag = 'scratch operand']
  #allocation3 [shape = 's32[1]{0}', space=sflag, size = 0x4, scoped, tag = 'scratch operand']
  #allocation4 [shape = 's32[]', space=sflag, size = 0x4, offset = 0, fixed_abs, tag = 'sflag constant byte address 0x0 - dummy sync flag']
  %s0 = inlined_call_operand.vmem [shape: bf16[2,16,512], index: 0, kind: input, shape index: {}]
  %s1 = inlined_call_operand.vmem [shape: s32[1,256], index: 1, kind: input, shape index: {}]
  %s2 = inlined_call_operand.vmem [shape: s32[1,256], index: 2, kind: input, shape index: {}]
  %s3 = inlined_call_operand.vmem [shape: bf16[4,144], index: 3, kind: input, shape index: {}]
  %s4 = inlined_call_operand.vmem [shape: f32[4,1], index: 4, kind: input, shape index: {}]
  %s5 = inlined_call_operand.vmem [shape: bf16[2,4,256], index: 5, kind: output, shape index: {}]
  %s6 = sld [smem:[#allocation0]]
  $region83: #{csp_forward.5} parent=0
    _
  %s8 = ssub.s32 1, %s6
  %s9 = scalar_select 0, %s8, %s6
  loop: start=0, step=1, limit=4
  $region2: #{csp_forward.5} parent=0 // loop_pre_header
    _
  $region3: #{csp_forward.5} parent=0 // loop_header
    %s11 = sphi 0, %s15
    %p12 = scmp.ge.s32.totalorder %s11, 4
    %s18 = sphi 0, %s30
    %s19 = sphi 0, %s26
    %s20 = sphi 0, %s18
    %s21 = sphi 0, %s19
    %s22 = sphi 0, %s20
    %s23 = sphi 0, %s21
    %s33 = sphi 0, %s35
    %s36 = sphi 0, %s33
    %s37 = sphi 0, %s36
    %s53 = sphi 0, %s37
    %s59 = sphi 0, %s61
    %s62 = sphi 0, %s59
    %s63 = sphi 0, %s62
    %s79 = sphi 0, %s63
    %s83 = sphi 0, %s83
    %s85 = sphi 0, %s83
    %s86 = sphi 0, %s85
    %s100 = sphi 0, %s86
    %s104 = sphi 0, %s104
    %s106 = sphi 0, %s104
    %s107 = sphi 0, %s106
    %s121 = sphi 0, %s107
    %s129 = sphi 0, %s131
    %s132 = sphi 0, %s129
    %s133 = sphi 0, %s132
    %s149 = sphi 0, %s133
  $region4: #{csp_forward.5} parent=0 // loop_header_branch
    %14 = sbr.rel (%p12) target = $region8
  $region5: #{csp_forward.5} parent=0 // loop_body
    %s16 = ssub.s32 %s11, 1
    %s17 = ssub.s32 %s11, 2
    %s24 = sadd.s32 1, %s19
    %p25 = scmp.ge.s32.totalorder %s24, 1
    %s26 = scalar_select %p25, 0, %s24
    %s27 = sadd.s32 1, %s18
    %s28 = scalar_select %p25, %s27, %s18
    %p29 = scmp.ge.s32.totalorder %s28, 2
    %s30 = scalar_select %p29, 0, %s28
    %s31 = ssub.s32 %s19, %s26
    %p32 = scmp.eq.s32.totalorder %s31, 0
    %s34 = sadd.s32 %s33, 1
    %s35 = scalar_select %p32, %s33, %s34
    %p38 = pneg %p32
    %p39 = scmp.eq.s32.totalorder %s11, 1
    %p40 = por %p38, %p39
    %p41 = scmp.ne.s32.totalorder %s33, %s36
    %p42 = scmp.eq.s32.totalorder %s11, 0
    %p43 = por %p41, %p42
    %p44 = scmp.ne.s32.totalorder %s33, %s36
    %p45 = scmp.eq.s32.totalorder %s16, 1
    %p46 = por %p44, %p45
    %p47 = scmp.ne.s32.totalorder %s36, %s37
    %p48 = scmp.eq.s32.totalorder %s16, 0
    %p49 = por %p47, %p48
    %p50 = scmp.ne.s32.totalorder %s36, %s37
    %p51 = scmp.eq.s32.totalorder %s17, 1
    %p52 = por %p50, %p51
    %p54 = scmp.ne.s32.totalorder %s37, %s53
    %p55 = scmp.eq.s32.totalorder %s17, 0
    %p56 = por %p54, %p55
    %s57 = ssub.s32 %s19, %s26
    %p58 = scmp.eq.s32.totalorder %s57, 0
    %s60 = sadd.s32 %s59, 1
    %s61 = scalar_select %p58, %s59, %s60
    %p64 = pneg %p58
    %p65 = scmp.eq.s32.totalorder %s11, 1
    %p66 = por %p64, %p65
    %p67 = scmp.ne.s32.totalorder %s59, %s62
    %p68 = scmp.eq.s32.totalorder %s11, 0
    %p69 = por %p67, %p68
    %p70 = scmp.ne.s32.totalorder %s59, %s62
    %p71 = scmp.eq.s32.totalorder %s16, 1
    %p72 = por %p70, %p71
    %p73 = scmp.ne.s32.totalorder %s62, %s63
    %p74 = scmp.eq.s32.totalorder %s16, 0
    %p75 = por %p73, %p74
    %p76 = scmp.ne.s32.totalorder %s62, %s63
    %p77 = scmp.eq.s32.totalorder %s17, 1
    %p78 = por %p76, %p77
    %p80 = scmp.ne.s32.totalorder %s63, %s79
    %p81 = scmp.eq.s32.totalorder %s17, 0
    %p82 = por %p80, %p81
    %s84 = sadd.s32 %s83, 1
    %p87 = scmp.eq.s32.totalorder %s11, 1
    %p88 = scmp.ne.s32.totalorder %s83, %s85
    %p89 = scmp.eq.s32.totalorder %s11, 0
    %p90 = por %p88, %p89
    %p91 = scmp.ne.s32.totalorder %s83, %s85
    %p92 = scmp.eq.s32.totalorder %s16, 1
    %p93 = por %p91, %p92
    %p94 = scmp.ne.s32.totalorder %s85, %s86
    %p95 = scmp.eq.s32.totalorder %s16, 0
    %p96 = por %p94, %p95
    %p97 = scmp.ne.s32.totalorder %s85, %s86
    %p98 = scmp.eq.s32.totalorder %s17, 1
    %p99 = por %p97, %p98
    %p101 = scmp.ne.s32.totalorder %s86, %s100
    %p102 = scmp.eq.s32.totalorder %s17, 0
    %p103 = por %p101, %p102
    %s105 = sadd.s32 %s104, 1
    %p108 = scmp.eq.s32.totalorder %s11, 1
    %p109 = scmp.ne.s32.totalorder %s104, %s106
    %p110 = scmp.eq.s32.totalorder %s11, 0
    %p111 = por %p109, %p110
    %p112 = scmp.ne.s32.totalorder %s104, %s106
    %p113 = scmp.eq.s32.totalorder %s16, 1
    %p114 = por %p112, %p113
    %p115 = scmp.ne.s32.totalorder %s106, %s107
    %p116 = scmp.eq.s32.totalorder %s16, 0
    %p117 = por %p115, %p116
    %p118 = scmp.ne.s32.totalorder %s106, %s107
    %p119 = scmp.eq.s32.totalorder %s17, 1
    %p120 = por %p118, %p119
    %p122 = scmp.ne.s32.totalorder %s107, %s121
    %p123 = scmp.eq.s32.totalorder %s17, 0
    %p124 = por %p122, %p123
    %s125 = ssub.s32 %s18, %s30
    %s126 = ssub.s32 %s19, %s26
    %s127 = sor.u32 %s125, %s126
    %p128 = scmp.eq.s32.totalorder %s127, 0
    %s130 = sadd.s32 %s129, 1
    %s131 = scalar_select %p128, %s129, %s130
    %p134 = pneg %p128
    %p135 = scmp.eq.s32.totalorder %s11, 1
    %p136 = por %p134, %p135
    %p137 = scmp.ne.s32.totalorder %s129, %s132
    %p138 = scmp.eq.s32.totalorder %s11, 0
    %p139 = por %p137, %p138
    %p140 = scmp.ne.s32.totalorder %s129, %s132
    %p141 = scmp.eq.s32.totalorder %s16, 1
    %p142 = por %p140, %p141
    %p143 = scmp.ne.s32.totalorder %s132, %s133
    %p144 = scmp.eq.s32.totalorder %s16, 0
    %p145 = por %p143, %p144
    %p146 = scmp.ne.s32.totalorder %s132, %s133
    %p147 = scmp.eq.s32.totalorder %s17, 1
    %p148 = por %p146, %p147
    %p150 = scmp.ne.s32.totalorder %s133, %s149
    %p151 = scmp.eq.s32.totalorder %s17, 0
    %p152 = por %p150, %p151
    %p153 = scmp.le.s32.totalorder 1, %s11
    %p154 = scmp.lt.s32.totalorder %s11, 3
    %p155 = pnand %p153, %p154
    %p156 = pneg %p155
    // Predicated region
    $region9: #{csp_forward.5} parent=5 // pred_check
      _
    $region10: #{csp_forward.5} parent=5 // pred_check_branch
      %158 = sbr.rel (%p155) target = $region12
    $region11: #{csp_forward.5} parent=5 // pred_region
      %s159 = ssub.s32 %s11, 1
      // Predicated region
      $region13: #{csp_forward.5} parent=11 // pred_check
        %p160 = pneg %p49
      $region14: #{csp_forward.5} parent=11 // pred_check_branch
        %162 = sbr.rel (%p160) target = $region16
      $region15: #{csp_forward.5} parent=11 // pred_region
        %s163 = smul.u32 2, %s21
        %p164 = scmp.lt.s32.totalorder %s163, 1
        %s165 = scalar_select %p164, %s163, 1
        %s166 = scalar_lea.vmem %s1, %s165
        %s167 = smul.u32 2, %s21
      $region16: #{csp_forward.5} parent=11 // pred_fallthru
        _
      // Predicated region
      $region17: #{csp_forward.5} parent=11 // pred_check
        %p168 = pneg %p75
      $region18: #{csp_forward.5} parent=11 // pred_check_branch
        %170 = sbr.rel (%p168) target = $region20
      $region19: #{csp_forward.5} parent=11 // pred_region
        %s171 = smul.u32 2, %s21
        %p172 = scmp.lt.s32.totalorder %s171, 1
        %s173 = scalar_select %p172, %s171, 1
        %s174 = scalar_lea.vmem %s2, %s173
        %s175 = smul.u32 2, %s21
      $region20: #{csp_forward.5} parent=11 // pred_fallthru
        _
      // Predicated region
      $region21: #{csp_forward.5} parent=11 // pred_check
        %p176 = pneg %p96
      $region22: #{csp_forward.5} parent=11 // pred_check_branch
        %178 = sbr.rel (%p176) target = $region24
      $region23: #{csp_forward.5} parent=11 // pred_region
        _
      $region24: #{csp_forward.5} parent=11 // pred_fallthru
        _
      // Predicated region
      $region25: #{csp_forward.5} parent=11 // pred_check
        %p179 = pneg %p117
      $region26: #{csp_forward.5} parent=11 // pred_check_branch
        %181 = sbr.rel (%p179) target = $region28
      $region27: #{csp_forward.5} parent=11 // pred_region
        _
      $region28: #{csp_forward.5} parent=11 // pred_fallthru
        _
    $region12: #{csp_forward.5} parent=5 // pred_fallthru
      _
    %p182 = scmp.lt.s32.totalorder %s11, 2
    // Predicated region
    $region29: #{csp_forward.5} parent=5 // pred_check
      %p183 = pneg %p182
    $region30: #{csp_forward.5} parent=5 // pred_check_branch
      %185 = sbr.rel (%p183) target = $region32
    $region31: #{csp_forward.5} parent=5 // pred_region
      _
    $region32: #{csp_forward.5} parent=5 // pred_fallthru
      _
    %p186 = scmp.le.s32.totalorder 1, %s11
    %p187 = scmp.lt.s32.totalorder %s11, 3
    %p188 = pnand %p186, %p187
    %p189 = pneg %p188
    // Predicated region
    $region33: #{csp_forward.5} parent=5 // pred_check
      _
    $region34: #{csp_forward.5} parent=5 // pred_check_branch
      %191 = sbr.rel (%p188) target = $region36
    $region35: #{csp_forward.5} parent=5 // pred_region
      %s192 = ssub.s32 %s11, 1
      %s193 = smul.u32 2, %s21
      %p194 = scmp.lt.s32.totalorder %s193, 1
      %s195 = scalar_select %p194, %s193, 1
      %s196 = scalar_lea.vmem %s1, %s195
      %p197 = pneg %p49
      %p198 = pneg %p46
      %s199 = smul.u32 2, %s21
      %p200 = scmp.lt.s32.totalorder %s199, 1
      %s201 = scalar_select %p200, %s199, 1
      %s202 = scalar_lea.vmem %s2, %s201
      %p203 = pneg %p75
      %p204 = pneg %p72
      %p205 = pneg %p96
      %p206 = pneg %p93
      %p207 = pneg %p117
      %p208 = pneg %p114
      %p209 = pneg %p145
      %p210 = pneg %p142
      %s211 = smul.u32 2, %s21
      %p212 = scmp.lt.s32.totalorder %s20, 1
      %s213 = scalar_select %p212, %s20, 1
      %p214 = scmp.lt.s32.totalorder %s211, 1
      %s215 = scalar_select %p214, %s211, 1
      %s216 = smul.addr %s213, 2
      %s217 = sadd.s32 %s215, %s216
      %s218 = smul.addr %s217, 2
      %s219 = scalar_lea.vmem %s5, %s218
      %s220 = smul.u32 2, %s21
      %p221 = scmp.lt.s32.totalorder %s220, 1
      %s222 = scalar_select %p221, %s220, 1
      %s223 = scalar_lea.vmem %s1, %s222
      %s224 = smul.u32 2, %s21
      %s225 = smul.u32 2, %s21
      %p226 = scmp.lt.s32.totalorder %s225, 1
      %s227 = scalar_select %p226, %s225, 1
      %s228 = scalar_lea.vmem %s2, %s227
      %s229 = smul.u32 2, %s21
      %s230 = smul.u32 2, %s21
      %p231 = scmp.lt.s32.totalorder %s20, 1
      %s232 = scalar_select %p231, %s20, 1
      %p233 = scmp.lt.s32.totalorder %s230, 1
      %s234 = scalar_select %p233, %s230, 1
      %s235 = smul.addr %s232, 2
      %s236 = sadd.s32 %s234, %s235
      %s237 = smul.addr %s236, 2
      %s238 = scalar_lea.vmem %s5, %s237
      %s239 = smul.u32 2, %s21
      %s243 = smul.u32 %s21, 256
      %s244 = sshra.s32 %s243, 7
      %s245 = sand.u32 %s243, 127
      %s246 = smul.u32 %s20, 8
      %s247 = sadd.s32 %s244, %s246
      %s248 = smul.addr %s247, 4
      %s249 = scalar_lea.vmem %s0, %s248
      %p251 = scmp.lt.u32.totalorder 32, 8
      %p252 = pneg %p251
      // Predicated region
      $region37: #{csp_forward.5} parent=35 // pred_check
        _
      $region38: #{csp_forward.5} parent=35 // pred_check_branch
        %254 = sbr.rel (%p251) target = $region40
      $region39: #{csp_forward.5} parent=35 // pred_region
        %s270 = sand.u32 32, 7
        %p271 = scmp.eq.s32.totalorder %s270, 0
        // Predicated region
        $region52: #{csp_forward.5} parent=39 // pred_check
          %p272 = pneg %p271
        $region53: #{csp_forward.5} parent=39 // pred_check_branch
          %274 = sbr.rel (%p272) target = $region55
        $region54: #{csp_forward.5} parent=39 // pred_region
          loop: start=0, step=1, limit=1
          $region56: #{csp_forward.5} parent=54 // loop_pre_header
            _
          $region57: #{csp_forward.5} parent=54 // loop_header
            %s276 = sphi 0, %s280
            %p277 = scmp.ge.s32.totalorder %s276, 1
            %s281 = sphi %s249, %s249
            %s282 = sphi [#allocation2], [#allocation2]
          $region58: #{csp_forward.5} parent=54 // loop_header_branch
            %279 = sbr.rel (%p277) target = $region62
          $region59: #{csp_forward.5} parent=54 // loop_body
            %v283 = vld [vmem:[%s281] sm:$0xff]
            %284 = vst [vmem:[%s282] sm:$0xff] %v283
            %v285 = vld [vmem:[%s281 + $0x8] sm:$0xff]
            %286 = vst [vmem:[%s282 + $0x8] sm:$0xff] %v285
            %v287 = vld [vmem:[%s281 + $0x10] sm:$0xff]
            %288 = vst [vmem:[%s282 + $0x10] sm:$0xff] %v287
            %v289 = vld [vmem:[%s281 + $0x18] sm:$0xff]
            %290 = vst [vmem:[%s282 + $0x18] sm:$0xff] %v289
          $region60: #{csp_forward.5} parent=54 // loop_footer
            %s280 = sadd.s32 1, %s276
          $region61: #{csp_forward.5} parent=54 // loop_footer_branch
            %275 = sbr.rel target = $region57
          $region62: #{csp_forward.5} parent=54 // loop_exit
            _
        $region55: #{csp_forward.5} parent=39 // pred_fallthru
          _
        %p291 = pneg %p271
        // Predicated region
        $region63: #{csp_forward.5} parent=39 // pred_check
          _
        $region64: #{csp_forward.5} parent=39 // pred_check_branch
          %293 = sbr.rel (%p271) target = $region66
        $region65: #{csp_forward.5} parent=39 // pred_region
          %s294 = sand.u32 32, 7
        $region66: #{csp_forward.5} parent=39 // pred_fallthru
          _
      $region40: #{csp_forward.5} parent=35 // pred_fallthru
        _
      // Predicated region
      $region41: #{csp_forward.5} parent=35 // pred_check
        %p255 = pneg %p251
      $region42: #{csp_forward.5} parent=35 // pred_check_branch
        %257 = sbr.rel (%p255) target = $region44
      $region43: #{csp_forward.5} parent=35 // pred_region
        %s258 = sshll.u32 1, 32
        %s259 = ssub.s32 %s258, 1
        loop: start=0, step=1, limit=1
        $region45: #{csp_forward.5} parent=43 // loop_pre_header
          _
        $region46: #{csp_forward.5} parent=43 // loop_header
          %s261 = sphi 0, %s265
          %p262 = scmp.ge.s32.totalorder %s261, 1
          %s266 = sphi %s249, %s249
          %s267 = sphi [#allocation2], [#allocation2]
        $region47: #{csp_forward.5} parent=43 // loop_header_branch
          %264 = sbr.rel (%p262) target = $region51
        $region48: #{csp_forward.5} parent=43 // loop_body
          %v268 = vld [vmem:[%s266] sm:%s259]
          %269 = vst [vmem:[%s267] sm:%s259] %v268
        $region49: #{csp_forward.5} parent=43 // loop_footer
          %s265 = sadd.s32 1, %s261
        $region50: #{csp_forward.5} parent=43 // loop_footer_branch
          %260 = sbr.rel target = $region46
        $region51: #{csp_forward.5} parent=43 // loop_exit
          _
      $region44: #{csp_forward.5} parent=35 // pred_fallthru
        _
      // Predicated region
      $region67: #{csp_forward.5} parent=35 // pred_check
        _
      $region68: #{csp_forward.5} parent=35 // pred_check_branch
        %297 = sbr.rel (0) target = $region70
      $region69: #{csp_forward.5} parent=35 // pred_region
        %298 = vsyncadd [#allocation3], 512
      $region70: #{csp_forward.5} parent=35 // pred_fallthru
        _
      %v299 = vld [vmem:[%s223] sm:$0x3]
      %v300 = vld [vmem:[%s228] sm:$0x3]
      %v301 = vadd.s32 %v299, 4294967295
      %vm302 = vcmp.ge.s32.totalorder %v301, 0
      %vm303 = vcmp.lt.s32.totalorder %v301, 16
      %vm304 = vmand %vm302, %vm303
      %v305 = vadd.s32 %v300, 4294967295
      %vm306 = vcmp.ge.s32.totalorder %v305, 0
      %vm307 = vmand %vm304, %vm306
      %vm308 = vcmp.lt.s32.totalorder %v305, 16
      %vm309 = vmand %vm307, %vm308
      %vm310 = vcmp.ge.s32.totalorder %v300, 0
      %vm311 = vmand %vm304, %vm310
      %vm312 = vcmp.lt.s32.totalorder %v300, 16
      %vm313 = vmand %vm311, %vm312
      %v314 = vadd.s32 %v300, 1
      %vm315 = vcmp.ge.s32.totalorder %v314, 0
      %vm316 = vmand %vm304, %vm315
      %vm317 = vcmp.lt.s32.totalorder %v314, 16
      %vm318 = vmand %vm316, %vm317
      %vm319 = vcmp.ge.s32.totalorder %v299, 0
      %vm320 = vcmp.lt.s32.totalorder %v299, 16
      %vm321 = vmand %vm319, %vm320
      %vm322 = vmand %vm321, %vm306
      %vm323 = vmand %vm322, %vm308
      %vm324 = vmand %vm321, %vm310
      %vm325 = vmand %vm324, %vm312
      %vm326 = vmand %vm321, %vm315
      %vm327 = vmand %vm326, %vm317
      %v328 = vadd.s32 %v299, 1
      %vm329 = vcmp.ge.s32.totalorder %v328, 0
      %vm330 = vcmp.lt.s32.totalorder %v328, 16
      %vm331 = vmand %vm329, %vm330
      %vm332 = vmand %vm331, %vm306
      %vm333 = vmand %vm332, %vm308
      %vm334 = vmand %vm331, %vm310
      %vm335 = vmand %vm334, %vm312
      %vm336 = vmand %vm331, %vm315
      %vm337 = vmand %vm336, %vm317
      %s338 = smul.u32 4, 2
      %s339 = smul.u32 %s338, 4
      %s340 = sshll.u32 %s339, 4
      %341 = dma.done [#allocation3], %s340
      %v342 = vld [vmem:[#allocation2] sm:$0xff]
      %v343 = vld [vmem:[#allocation2 + $0x8] sm:$0xff]
      %v344 = vld [vmem:[#allocation2 + $0x10] sm:$0xff]
      %v345 = vld [vmem:[#allocation2 + $0x18] sm:$0xff]
      %v346 = vsel %vm309, 1, 0
      %v347 = vlaneseq
      %v348 = vshrl.u32 %v347, 7
      %v349 = vsub.s32 0, %v348
      %v350 = vrot.slane %v346, %v349
      %v351 = vlaneseq
      %v352 = vshrl.u32 %v351, 7
      %v353 = vsub.s32 1, %v352
      %v354 = vrot.slane %v346, %v353
      %vm355 = vcmp.eq.s32.totalorder %v350, 1
      %vm356 = vcmp.eq.s32.totalorder %v354, 1
      %vm357 = vmpackc.low %vm356, %vm355
      %v358 = vsel %vm357, 65537, 0
      %359 = vrot.lane.b32.xlu0 %v358, 111
      %v360 = vpop.permute.xlu0 %359
      %v361 = vrot.slane %v360, 4
      %vm362 = vcmask 908288
      %v363 = vsel %vm362, %v361, %v360
      %vm364 = vcmp.ne.s16.totalorder %v363, 0
      %vm365 = vcmp.ne.s16.totalorder %v361, 0
      %v366 = vsel %vm364, %v342, 0
      %v367 = vsel %vm365, %v343, 0
      %v368 = vsel %vm364, %v344, 0
      %v369 = vsel %vm365, %v345, 0
      %v370 = vsel %vm313, 1, 0
      %v371 = vlaneseq
      %v372 = vshrl.u32 %v371, 7
      %v373 = vsub.s32 0, %v372
      %v374 = vrot.slane %v370, %v373
      %v375 = vlaneseq
      %v376 = vshrl.u32 %v375, 7
      %v377 = vsub.s32 1, %v376
      %v378 = vrot.slane %v370, %v377
      %vm379 = vcmp.eq.s32.totalorder %v374, 1
      %vm380 = vcmp.eq.s32.totalorder %v378, 1
      %vm381 = vmpackc.low %vm380, %vm379
      %v382 = vsel %vm381, 65537, 0
      %383 = vrot.lane.b32.xlu0 %v382, 112
      %v384 = vpop.permute.xlu0 %383
      %v385 = vrot.slane %v384, 4
      %vm386 = vcmask 916480
      %v387 = vsel %vm386, %v385, %v384
      %vm388 = vcmp.ne.s16.totalorder %v387, 0
      %vm389 = vcmp.ne.s16.totalorder %v385, 0
      %v390 = vsel %vm388, %v342, 0
      %v391 = vsel %vm389, %v343, 0
      %v392 = vsel %vm388, %v344, 0
      %v393 = vsel %vm389, %v345, 0
      %v394 = vsel %vm318, 1, 0
      %v395 = vlaneseq
      %v396 = vshrl.u32 %v395, 7
      %v397 = vsub.s32 0, %v396
      %v398 = vrot.slane %v394, %v397
      %v399 = vlaneseq
      %v400 = vshrl.u32 %v399, 7
      %v401 = vsub.s32 1, %v400
      %v402 = vrot.slane %v394, %v401
      %vm403 = vcmp.eq.s32.totalorder %v398, 1
      %vm404 = vcmp.eq.s32.totalorder %v402, 1
      %vm405 = vmpackc.low %vm404, %vm403
      %v406 = vsel %vm405, 65537, 0
      %407 = vrot.lane.b32.xlu0 %v406, 113
      %v408 = vpop.permute.xlu0 %407
      %v409 = vrot.slane %v408, 4
      %vm410 = vcmask 924672
      %v411 = vsel %vm410, %v409, %v408
      %vm412 = vcmp.ne.s16.totalorder %v411, 0
      %vm413 = vcmp.ne.s16.totalorder %v409, 0
      %v414 = vsel %vm412, %v342, 0
      %v415 = vsel %vm413, %v343, 0
      %v416 = vsel %vm412, %v344, 0
      %v417 = vsel %vm413, %v345, 0
      %v418 = vsel %vm323, 1, 0
      %v419 = vlaneseq
      %v420 = vshrl.u32 %v419, 7
      %v421 = vsub.s32 0, %v420
      %v422 = vrot.slane %v418, %v421
      %v423 = vlaneseq
      %v424 = vshrl.u32 %v423, 7
      %v425 = vsub.s32 1, %v424
      %v426 = vrot.slane %v418, %v425
      %vm427 = vcmp.eq.s32.totalorder %v422, 1
      %vm428 = vcmp.eq.s32.totalorder %v426, 1
      %vm429 = vmpackc.low %vm428, %vm427
      %v430 = vsel %vm429, 65537, 0
      %431 = vrot.lane.b32.xlu0 %v430, 127
      %v432 = vpop.permute.xlu0 %431
      %v433 = vrot.slane %v432, 4
      %vm434 = vcmask 1039360
      %v435 = vsel %vm434, %v433, %v432
      %vm436 = vcmp.ne.s16.totalorder %v435, 0
      %vm437 = vcmp.ne.s16.totalorder %v433, 0
      %v438 = vsel %vm436, %v342, 0
      %v439 = vsel %vm437, %v343, 0
      %v440 = vsel %vm436, %v344, 0
      %v441 = vsel %vm437, %v345, 0
      %v442 = vsel %vm325, 1, 0
      %v443 = vlaneseq
      %v444 = vshrl.u32 %v443, 7
      %v445 = vsub.s32 0, %v444
      %v446 = vrot.slane %v442, %v445
      %v447 = vlaneseq
      %v448 = vshrl.u32 %v447, 7
      %v449 = vsub.s32 1, %v448
      %v450 = vrot.slane %v442, %v449
      %vm451 = vcmp.eq.s32.totalorder %v446, 1
      %vm452 = vcmp.eq.s32.totalorder %v450, 1
      %vm453 = vmpackc.low %vm452, %vm451
      %v458 = vrot.slane %v342, 4
      %v459 = vrot.slane %v343, 4
      %v460 = vrot.slane %v344, 4
      %v461 = vrot.slane %v345, 4
      %vm462 = vcmask 1043456
      %v463 = vsel %vm462, %v458, %v459
      %v464 = vsel %vm462, %v460, %v461
      %v467 = vsel %vm453, %v463, 0
      %v468 = vsel %vm453, %v464, 0
      %v469 = vsel %vm327, 1, 0
      %v470 = vlaneseq
      %v471 = vshrl.u32 %v470, 7
      %v472 = vsub.s32 0, %v471
      %v473 = vrot.slane %v469, %v472
      %v474 = vlaneseq
      %v475 = vshrl.u32 %v474, 7
      %v476 = vsub.s32 1, %v475
      %v477 = vrot.slane %v469, %v476
      %vm478 = vcmp.eq.s32.totalorder %v473, 1
      %vm479 = vcmp.eq.s32.totalorder %v477, 1
      %vm480 = vmpackc.low %vm479, %vm478
      %481 = vrot.lane.b32.xlu0 %v342, 127
      %v482 = vpop.permute.xlu0 %481
      %483 = vrot.lane.b32.xlu0 %v343, 127
      %v484 = vpop.permute.xlu0 %483
      %485 = vrot.lane.b32.xlu0 %v344, 127
      %v486 = vpop.permute.xlu0 %485
      %487 = vrot.lane.b32.xlu0 %v345, 127
      %v488 = vpop.permute.xlu0 %487
      %v489 = vrot.slane %v482, 4
      %v490 = vrot.slane %v484, 4
      %v491 = vrot.slane %v486, 4
      %v492 = vrot.slane %v488, 4
      %v493 = vsel %vm462, %v489, %v490
      %v494 = vsel %vm434, %v493, %v484
      %v495 = vsel %vm462, %v491, %v492
      %v496 = vsel %vm434, %v495, %v488
      %v499 = vsel %vm480, %v494, 0
      %v500 = vsel %vm480, %v496, 0
      %v501 = vsel %vm333, 1, 0
      %v502 = vlaneseq
      %v503 = vshrl.u32 %v502, 7
      %v504 = vsub.s32 0, %v503
      %v505 = vrot.slane %v501, %v504
      %v506 = vlaneseq
      %v507 = vshrl.u32 %v506, 7
      %v508 = vsub.s32 1, %v507
      %v509 = vrot.slane %v501, %v508
      %vm510 = vcmp.eq.s32.totalorder %v505, 1
      %vm511 = vcmp.eq.s32.totalorder %v509, 1
      %vm512 = vmpackc.low %vm511, %vm510
      %513 = vrot.lane.b32.xlu0 %v342, 113
      %v514 = vpop.permute.xlu0 %513
      %515 = vrot.lane.b32.xlu0 %v343, 113
      %v516 = vpop.permute.xlu0 %515
      %517 = vrot.lane.b32.xlu0 %v344, 113
      %v518 = vpop.permute.xlu0 %517
      %519 = vrot.lane.b32.xlu0 %v345, 113
      %v520 = vpop.permute.xlu0 %519
      %v521 = vrot.slane %v514, 4
      %v522 = vrot.slane %v516, 4
      %v523 = vrot.slane %v518, 4
      %v524 = vrot.slane %v520, 4
      %v525 = vsel %vm462, %v521, %v522
      %v526 = vsel %vm410, %v525, %v516
      %v527 = vsel %vm462, %v523, %v524
      %v528 = vsel %vm410, %v527, %v520
      %v531 = vsel %vm512, %v526, 0
      %v532 = vsel %vm512, %v528, 0
      %v533 = vsel %vm335, 1, 0
      %v534 = vlaneseq
      %v535 = vshrl.u32 %v534, 7
      %v536 = vsub.s32 0, %v535
      %v537 = vrot.slane %v533, %v536
      %v538 = vlaneseq
      %v539 = vshrl.u32 %v538, 7
      %v540 = vsub.s32 1, %v539
      %v541 = vrot.slane %v533, %v540
      %vm542 = vcmp.eq.s32.totalorder %v537, 1
      %vm543 = vcmp.eq.s32.totalorder %v541, 1
      %vm544 = vmpackc.low %vm543, %vm542
      %545 = vrot.lane.b32.xlu0 %v342, 112
      %v546 = vpop.permute.xlu0 %545
      %547 = vrot.lane.b32.xlu0 %v343, 112
      %v548 = vpop.permute.xlu0 %547
      %549 = vrot.lane.b32.xlu0 %v344, 112
      %v550 = vpop.permute.xlu0 %549
      %551 = vrot.lane.b32.xlu0 %v345, 112
      %v552 = vpop.permute.xlu0 %551
      %v553 = vrot.slane %v546, 4
      %v554 = vrot.slane %v548, 4
      %v555 = vrot.slane %v550, 4
      %v556 = vrot.slane %v552, 4
      %v557 = vsel %vm462, %v553, %v554
      %v558 = vsel %vm386, %v557, %v548
      %v559 = vsel %vm462, %v555, %v556
      %v560 = vsel %vm386, %v559, %v552
      %v563 = vsel %vm544, %v558, 0
      %v564 = vsel %vm544, %v560, 0
      %v565 = vsel %vm337, 1, 0
      %v566 = vlaneseq
      %v567 = vshrl.u32 %v566, 7
      %v568 = vsub.s32 0, %v567
      %v569 = vrot.slane %v565, %v568
      %v570 = vlaneseq
      %v571 = vshrl.u32 %v570, 7
      %v572 = vsub.s32 1, %v571
      %v573 = vrot.slane %v565, %v572
      %vm574 = vcmp.eq.s32.totalorder %v569, 1
      %vm575 = vcmp.eq.s32.totalorder %v573, 1
      %vm576 = vmpackc.low %vm575, %vm574
      %577 = vrot.lane.b32.xlu0 %v342, 111
      %v578 = vpop.permute.xlu0 %577
      %579 = vrot.lane.b32.xlu0 %v343, 111
      %v580 = vpop.permute.xlu0 %579
      %581 = vrot.lane.b32.xlu0 %v344, 111
      %v582 = vpop.permute.xlu0 %581
      %583 = vrot.lane.b32.xlu0 %v345, 111
      %v584 = vpop.permute.xlu0 %583
      %v585 = vrot.slane %v578, 4
      %v586 = vrot.slane %v580, 4
      %v587 = vrot.slane %v582, 4
      %v588 = vrot.slane %v584, 4
      %v589 = vsel %vm462, %v585, %v586
      %v590 = vsel %vm362, %v589, %v580
      %v591 = vsel %vm462, %v587, %v588
      %v592 = vsel %vm362, %v591, %v584
      %v595 = vsel %vm576, %v590, 0
      %v596 = vsel %vm576, %v592, 0
      %v601 = vunpack.c.l.b16 %v366
      %v602 = vunpack.c.h.b16 %v366
      %v603 = vunpack.c.l.b16 %v367
      %v604 = vunpack.c.l.b16 %v368
      %v605 = vunpack.c.h.b16 %v368
      %v606 = vunpack.c.l.b16 %v369
      %v607 = vpack.c.b16 %v604, %v601
      %v608 = vpack.c.b16 %v605, %v602
      %v609 = vpack.c.b16 %v606, %v603
      %v614 = vunpack.c.l.b16 %v390
      %v615 = vunpack.c.h.b16 %v390
      %v616 = vunpack.c.l.b16 %v391
      %v617 = vunpack.c.l.b16 %v392
      %v618 = vunpack.c.h.b16 %v392
      %v619 = vunpack.c.l.b16 %v393
      %v620 = vpack.c.b16 %v617, %v614
      %v621 = vpack.c.b16 %v618, %v615
      %v622 = vpack.c.b16 %v619, %v616
      %623 = vrot.lane.b32.xlu0 %v620, 127
      %v624 = vpop.permute.xlu0 %623
      %625 = vrot.lane.b32.xlu0 %v621, 127
      %v626 = vpop.permute.xlu0 %625
      %627 = vrot.lane.b32.xlu0 %v622, 127
      %v628 = vpop.permute.xlu0 %627
      %v629 = vsel %vm434, %v624, %v626
      %v630 = vsel %vm434, %v626, %v628
      %v635 = vunpack.c.l.b16 %v414
      %v636 = vunpack.c.h.b16 %v414
      %v637 = vunpack.c.l.b16 %v415
      %v638 = vunpack.c.l.b16 %v416
      %v639 = vunpack.c.h.b16 %v416
      %v640 = vunpack.c.l.b16 %v417
      %v641 = vpack.c.b16 %v638, %v635
      %v642 = vpack.c.b16 %v639, %v636
      %v643 = vpack.c.b16 %v640, %v637
      %644 = vrot.lane.b32.xlu0 %v641, 126
      %v645 = vpop.permute.xlu0 %644
      %646 = vrot.lane.b32.xlu0 %v642, 126
      %v647 = vpop.permute.xlu0 %646
      %648 = vrot.lane.b32.xlu0 %v643, 126
      %v649 = vpop.permute.xlu0 %648
      %vm650 = vcmask 1031168
      %v651 = vsel %vm650, %v645, %v647
      %v652 = vsel %vm650, %v647, %v649
      %v657 = vunpack.c.l.b16 %v438
      %v658 = vunpack.c.h.b16 %v438
      %v659 = vunpack.c.l.b16 %v439
      %v660 = vunpack.c.l.b16 %v440
      %v661 = vunpack.c.h.b16 %v440
      %v662 = vunpack.c.l.b16 %v441
      %v663 = vpack.c.b16 %v660, %v657
      %v664 = vpack.c.b16 %v661, %v658
      %v665 = vpack.c.b16 %v662, %v659
      %666 = vrot.lane.b32.xlu0 %v663, 112
      %v667 = vpop.permute.xlu0 %666
      %668 = vrot.lane.b32.xlu0 %v664, 112
      %v669 = vpop.permute.xlu0 %668
      %670 = vrot.lane.b32.xlu0 %v665, 112
      %v671 = vpop.permute.xlu0 %670
      %v672 = vsel %vm386, %v667, %v669
      %v673 = vsel %vm386, %v669, %v671
      %v676 = vunpack.c.l.b16 %v467
      %v677 = vunpack.c.h.b16 %v467
      %v678 = vunpack.c.l.b16 %v468
      %v679 = vunpack.c.h.b16 %v468
      %v680 = vpack.c.b16 %v678, %v676
      %v681 = vpack.c.b16 %v679, %v677
      %682 = vrot.lane.b32.xlu0 %v680, 111
      %v683 = vpop.permute.xlu0 %682
      %684 = vrot.lane.b32.xlu0 %v681, 111
      %v685 = vpop.permute.xlu0 %684
      %v686 = vsel %vm362, %v683, %v685
      %v689 = vunpack.c.l.b16 %v499
      %v690 = vunpack.c.h.b16 %v499
      %v691 = vunpack.c.l.b16 %v500
      %v692 = vunpack.c.h.b16 %v500
      %v693 = vpack.c.b16 %v691, %v689
      %v694 = vpack.c.b16 %v692, %v690
      %695 = vrot.lane.b32.xlu0 %v693, 111
      %v696 = vpop.permute.xlu0 %695
      %697 = vrot.lane.b32.xlu0 %v694, 111
      %v698 = vpop.permute.xlu0 %697
      %v699 = vsel %vm362, %v696, %v698
      %v702 = vunpack.c.l.b16 %v531
      %v703 = vunpack.c.h.b16 %v531
      %v704 = vunpack.c.l.b16 %v532
      %v705 = vunpack.c.h.b16 %v532
      %v706 = vpack.c.b16 %v704, %v702
      %v707 = vpack.c.b16 %v705, %v703
      %708 = vrot.lane.b32.xlu0 %v706, 111
      %v709 = vpop.permute.xlu0 %708
      %710 = vrot.lane.b32.xlu0 %v707, 111
      %v711 = vpop.permute.xlu0 %710
      %v712 = vsel %vm362, %v709, %v711
      %v715 = vunpack.c.l.b16 %v563
      %v716 = vunpack.c.h.b16 %v563
      %v717 = vunpack.c.l.b16 %v564
      %v718 = vunpack.c.h.b16 %v564
      %v719 = vpack.c.b16 %v717, %v715
      %v720 = vpack.c.b16 %v718, %v716
      %721 = vrot.lane.b32.xlu0 %v719, 111
      %v722 = vpop.permute.xlu0 %721
      %723 = vrot.lane.b32.xlu0 %v720, 111
      %v724 = vpop.permute.xlu0 %723
      %v725 = vsel %vm362, %v722, %v724
      %v728 = vunpack.c.l.b16 %v595
      %v729 = vunpack.c.h.b16 %v595
      %v730 = vunpack.c.l.b16 %v596
      %v731 = vunpack.c.h.b16 %v596
      %v732 = vpack.c.b16 %v730, %v728
      %v733 = vpack.c.b16 %v731, %v729
      %734 = vrot.lane.b32.xlu0 %v732, 111
      %v735 = vpop.permute.xlu0 %734
      %736 = vrot.lane.b32.xlu0 %v733, 111
      %v737 = vpop.permute.xlu0 %736
      %v738 = vsel %vm362, %v735, %v737
      %v739 = vld [vmem:[%s3] sm:$0xf]
      %v740 = vld [vmem:[%s4] sm:$0xf]
      %742 = vset.pattern.permute.xlu0 0
      %743 = vperm.xlu0 %742, %v740
      %v744 = vpop.permute.xlu0 %743
      %v748 = vunpack.c.l.s4 1983009808
      %v749 = vunpack.c.0.s8 %v748
      %v750 = vlaneseq
      %v751 = vshrl.u32 %v750, 7
      %v752 = vsub.s32 %v749, %v751
      %v753 = vrot.slane %v739, %v752
      %v754 = vcombine.high %v753, %v753
      %756 = vrot.lane.b32.xlu0 %v607, 17
      %v757 = vpop.permute.xlu0 %756
      %758 = vrot.lane.b32.xlu0 %v608, 17
      %v759 = vpop.permute.xlu0 %758
      %760 = vrot.lane.b32.xlu0 %v609, 17
      %v761 = vpop.permute.xlu0 %760
      %762 = vrot.lane.b32.xlu0 %v629, 17
      %v763 = vpop.permute.xlu0 %762
      %764 = vrot.lane.b32.xlu0 %v630, 17
      %v765 = vpop.permute.xlu0 %764
      %766 = vrot.lane.b32.xlu0 %v628, 17
      %v767 = vpop.permute.xlu0 %766
      %768 = vrot.lane.b32.xlu0 %v651, 17
      %v769 = vpop.permute.xlu0 %768
      %770 = vrot.lane.b32.xlu0 %v652, 17
      %v771 = vpop.permute.xlu0 %770
      %772 = vrot.lane.b32.xlu0 %v649, 17
      %v773 = vpop.permute.xlu0 %772
      %774 = vrot.lane.b32.xlu0 %v672, 17
      %v775 = vpop.permute.xlu0 %774
      %776 = vrot.lane.b32.xlu0 %v673, 17
      %v777 = vpop.permute.xlu0 %776
      %778 = vrot.lane.b32.xlu0 %v671, 17
      %v779 = vpop.permute.xlu0 %778
      %780 = vrot.lane.b32.xlu0 %v683, 17
      %v781 = vpop.permute.xlu0 %780
      %782 = vrot.lane.b32.xlu0 %v686, 17
      %v783 = vpop.permute.xlu0 %782
      %784 = vrot.lane.b32.xlu0 %v685, 17
      %v785 = vpop.permute.xlu0 %784
      %786 = vrot.lane.b32.xlu0 %v696, 17
      %v787 = vpop.permute.xlu0 %786
      %788 = vrot.lane.b32.xlu0 %v699, 17
      %v789 = vpop.permute.xlu0 %788
      %790 = vrot.lane.b32.xlu0 %v698, 17
      %v791 = vpop.permute.xlu0 %790
      %792 = vrot.lane.b32.xlu0 %v709, 17
      %v793 = vpop.permute.xlu0 %792
      %794 = vrot.lane.b32.xlu0 %v712, 17
      %v795 = vpop.permute.xlu0 %794
      %796 = vrot.lane.b32.xlu0 %v711, 17
      %v797 = vpop.permute.xlu0 %796
      %798 = vrot.lane.b32.xlu0 %v722, 17
      %v799 = vpop.permute.xlu0 %798
      %800 = vrot.lane.b32.xlu0 %v725, 17
      %v801 = vpop.permute.xlu0 %800
      %802 = vrot.lane.b32.xlu0 %v724, 17
      %v803 = vpop.permute.xlu0 %802
      %804 = vrot.lane.b32.xlu0 %v735, 17
      %v805 = vpop.permute.xlu0 %804
      %806 = vrot.lane.b32.xlu0 %v738, 17
      %v807 = vpop.permute.xlu0 %806
      %808 = vrot.lane.b32.xlu0 %v737, 17
      %v809 = vpop.permute.xlu0 %808
      %vm810 = vcmask 138240
      %v811 = vsel %vm810, %v757, %v759
      %v812 = vsel %vm810, %v759, %v761
      %v813 = vsel %vm810, %v763, %v765
      %v814 = vsel %vm810, %v765, %v767
      %v815 = vsel %vm810, %v769, %v771
      %v816 = vsel %vm810, %v771, %v773
      %v817 = vsel %vm810, %v775, %v777
      %v818 = vsel %vm810, %v777, %v779
      %v819 = vsel %vm810, %v781, %v783
      %v820 = vsel %vm810, %v783, %v785
      %v821 = vsel %vm810, %v787, %v789
      %v822 = vsel %vm810, %v789, %v791
      %v823 = vsel %vm810, %v793, %v795
      %v824 = vsel %vm810, %v795, %v797
      %v825 = vsel %vm810, %v799, %v801
      %v826 = vsel %vm810, %v801, %v803
      %v827 = vsel %vm810, %v805, %v807
      %v828 = vsel %vm810, %v807, %v809
      %vm847 = vcmask 130048
      %v849 = vsel %vm847, %v754, 0
      %851 = vmatprep.subr.bf16.mxu0 %v826
      %852 = vmatpush1.bf16.msra.mxu0 %v825
      %853 = vmatprep.subr.bf16.mxu0 %v824
      %854 = vmatpush1.bf16.msra.mxu0 %v823
      %855 = vmatprep.subr.bf16.mxu0 %v822
      %856 = vmatpush1.bf16.msra.mxu0 %v821
      %857 = vmatprep.subr.bf16.mxu0 %v820
      %858 = vmatpush1.bf16.msra.mxu0 %v819
      %859 = vmatprep.subr.bf16.mxu0 %v818
      %860 = vmatpush1.bf16.msra.mxu0 %v817
      %861 = vmatprep.subr.bf16.mxu0 %v816
      %862 = vmatpush1.bf16.msra.mxu0 %v815
      %863 = vmatprep.subr.bf16.mxu0 %v814
      %864 = vmatpush1.bf16.msra.mxu0 %v813
      %865 = vmatprep.subr.bf16.mxu0 %v812
      %866 = vmatpush1.bf16.msra.mxu0 %v811
      %867 = vmatprep.subr.bf16.mxu0 0
      %868 = vmatpush2.bf16.msra.mxu0 0
      %869 = vmatprep.subr.bf16.mxu0 0
      %870 = vmatpush2.bf16.msra.mxu0 0
      %871 = vmatprep.subr.bf16.mxu0 0
      %872 = vmatpush2.bf16.msra.mxu0 0
      %873 = vmatprep.subr.bf16.mxu0 0
      %874 = vmatpush2.bf16.msra.mxu0 0
      %875 = vmatprep.subr.bf16.mxu0 0
      %876 = vmatpush2.bf16.msra.mxu0 0
      %877 = vmatprep.subr.bf16.mxu0 0
      %878 = vmatpush2.bf16.msra.mxu0 0
      %879 = vmatprep.subr.bf16.mxu0 0
      %880 = vmatpush2.bf16.msra.mxu0 0
      %881 = vmatprep.subr.bf16.mxu0 %v828
      %882 = vmatpush2.bf16.msra.mxu0 %v827
      %883 = vmatprep.mubr.bf16.mxu0 %v849
      %884 = vmatmul.mubr.bf16.gmra.mxu0 %v753
      %v885 = vpop.f32.mrf.mxu0
      %v886 = vadd.f32 %v744, %v885
      %v887 = vpop.f32.mrf.mxu0
      %v888 = vadd.f32 %v744, %v887
      %v889 = vpop.f32.mrf.mxu0
      %v890 = vpop.f32.mrf.mxu0
      %891 = vdwg.mxu0
      %v892 = vxor.u32 %v886, 2147483648
      %v893 = vxor.u32 %v888, 2147483648
      %v894 = vmul.f32 %v892, 1.442695
      %v895 = vpow.pop %v894
      %v896 = vmul.f32 %v893, 1.442695
      %v897 = vpow.pop %v896
      %v898 = vadd.f32 %v895, 1.0
      %v899 = vadd.f32 %v897, 1.0
      %v900 = vrcp.pop %v898
      %v901 = vmul.f32 1.0, %v900
      %v902 = vrcp.pop %v899
      %v903 = vmul.f32 1.0, %v902
      %v904 = vmul.f32 %v886, %v901
      %v905 = vmul.f32 %v888, %v903
      %v906 = vpack.c.bf16 %v904, %v904
      %v907 = vpack.c.bf16 %v905, %v905
      %v910 = vcombine.low %v906, %v907
      %v912 = vunpack.c.l.s4 1983009808
      %v913 = vunpack.c.0.s8 %v912
      %v914 = vlaneseq
      %v915 = vshrl.u32 %v914, 7
      %v916 = vsub.s32 %v913, %v915
      %v917 = vrot.slane %v910, %v916
      %919 = vst [vmem:[%s238] sm:$0xf] %v917
      %s920 = smul.u32 2, %s21
      %p921 = scmp.lt.s32.totalorder %s20, 1
      %s922 = scalar_select %p921, %s20, 1
      %p923 = scmp.lt.s32.totalorder %s920, 1
      %s924 = scalar_select %p923, %s920, 1
      %s925 = smul.addr %s922, 2
      %s926 = sadd.s32 %s924, %s925
      %s927 = smul.addr %s926, 2
      %s928 = scalar_lea.vmem %s5, %s927
      // Predicated region
      $region71: #{csp_forward.5} parent=35 // pred_check
        %p929 = pneg %p142
      $region72: #{csp_forward.5} parent=35 // pred_check_branch
        %931 = sbr.rel (%p929) target = $region74
      $region73: #{csp_forward.5} parent=35 // pred_region
        %s932 = smul.u32 2, %s21
      $region74: #{csp_forward.5} parent=35 // pred_fallthru
        _
    $region36: #{csp_forward.5} parent=5 // pred_fallthru
      _
    %p933 = scmp.le.s32.totalorder 2, %s11
    // Predicated region
    $region75: #{csp_forward.5} parent=5 // pred_check
      %p934 = pneg %p933
    $region76: #{csp_forward.5} parent=5 // pred_check_branch
      %936 = sbr.rel (%p934) target = $region78
    $region77: #{csp_forward.5} parent=5 // pred_region
      %s937 = ssub.s32 %s11, 2
      // Predicated region
      $region79: #{csp_forward.5} parent=77 // pred_check
        %p938 = pneg %p148
      $region80: #{csp_forward.5} parent=77 // pred_check_branch
        %940 = sbr.rel (%p938) target = $region82
      $region81: #{csp_forward.5} parent=77 // pred_region
        %s941 = smul.u32 2, %s23
        %p942 = scmp.lt.s32.totalorder %s22, 1
        %s943 = scalar_select %p942, %s22, 1
        %p944 = scmp.lt.s32.totalorder %s941, 1
        %s945 = scalar_select %p944, %s941, 1
        %s946 = smul.addr %s943, 2
        %s947 = sadd.s32 %s945, %s946
        %s948 = smul.addr %s947, 2
        %s949 = scalar_lea.vmem %s5, %s948
      $region82: #{csp_forward.5} parent=77 // pred_fallthru
        _
    $region78: #{csp_forward.5} parent=5 // pred_fallthru
      _
  $region6: #{csp_forward.5} parent=0 // loop_footer
    %s15 = sadd.s32 1, %s11
  $region7: #{csp_forward.5} parent=0 // loop_footer_branch
    %10 = sbr.rel target = $region3
  $region8: #{csp_forward.5} parent=0 // loop_exit
    _
  %950 = vsyncmov [#allocation3]
  %s951 = vpop.sfrf %950
  %p952 = scmp.eq.s32.totalorder %s951, 0
  %p953 = pneg %p952
  %955 = shalt.err (%p953)

</llo_original>
